<compile_context>
chip_gen: v7x
topology: tpu7x:2x2x1
jax: 0.10.0
libtpu: 0.0.40
codegen_flags: <defaults>
</compile_context>

<pallas_src>
import math

import jax
import jax.numpy as jnp
from jax.experimental import pallas as pl
from jax.experimental.pallas import tpu as pltpu

# ---------------- model hyperparameters (small, consistent with the module) ----------------
B = 2            # batch
N = 8            # sequence length
DIM = 32         # model dim
DEPTH = 2
HEADS = 4
DIM_HEAD = 8
INNER = HEADS * DIM_HEAD     # 32
MLP_DIM = 64
LN_EPS = 1e-5
SCALE = DIM_HEAD ** (-0.5)

# rows of the packed per-layer "small tensors" slab (width MLP_DIM, DIM-wide rows left-padded)
_ROW_ATTN_G, _ROW_ATTN_B, _ROW_B_OUT = 0, 1, 2
_ROW_FF_G, _ROW_FF_B, _ROW_B2, _ROW_B1 = 3, 4, 5, 6
_VEC_ROWS = 8


def _layernorm(x, gamma, beta):
    # PyTorch nn.LayerNorm over the last dim, biased variance, eps=1e-5.
    mu = jnp.mean(x, axis=-1, keepdims=True)
    xc = x - mu
    var = jnp.mean(xc * xc, axis=-1, keepdims=True)
    return xc * jax.lax.rsqrt(var + LN_EPS) * gamma + beta


def _gelu_exact(x):
    # torch.nn.GELU() default (erf form).
    return 0.5 * x * (1.0 + jax.lax.erf(x * 0.7071067811865476))


# ---------------- the single fused Pallas kernel ----------------
def transformer_kernel(x_ref, wqkv_ref, wout_ref, w1_ref, w2_ref, vec_ref, o_ref):
    """Entire DEPTH-layer forward in one invocation; activations never leave VMEM.

    x_ref    : (B*N, DIM)
    wqkv_ref : (DEPTH, DIM, 3*INNER)
    wout_ref : (DEPTH, INNER, DIM)
    w1_ref   : (DEPTH, DIM, MLP_DIM)
    w2_ref   : (DEPTH, MLP_DIM, DIM)
    vec_ref  : (DEPTH, 8, MLP_DIM)   packed LN gamma/beta + biases
    o_ref    : (B*N, DIM)
    """
    x = x_ref[...]                                                   # (B*N, DIM) f32, resident
    for layer in range(DEPTH):                                       # unrolled at trace time
        vecs = vec_ref[layer]                                        # (8, MLP_DIM)
        g_a = vecs[_ROW_ATTN_G:_ROW_ATTN_G + 1, :DIM]
        b_a = vecs[_ROW_ATTN_B:_ROW_ATTN_B + 1, :DIM]
        b_o = vecs[_ROW_B_OUT:_ROW_B_OUT + 1, :DIM]
        g_f = vecs[_ROW_FF_G:_ROW_FF_G + 1, :DIM]
        b_f = vecs[_ROW_FF_B:_ROW_FF_B + 1, :DIM]
        b2v = vecs[_ROW_B2:_ROW_B2 + 1, :DIM]
        b1v = vecs[_ROW_B1:_ROW_B1 + 1, :]                           # (1, MLP_DIM)

        # ---------------- x = Attention(LayerNorm(x)) + x ----------------
        xn = _layernorm(x, g_a, b_a)                                 # (B*N, DIM)
        # Single fused QKV projection (one MXU matmul instead of 3*HEADS narrow ones).
        qkv = jnp.dot(xn, wqkv_ref[layer],
                      preferred_element_type=jnp.float32)            # (B*N, 3*INNER)

        head_outs = []
        for h in range(HEADS):                                       # per-head scores only
            c = h * DIM_HEAD
            qh = qkv[:, c:c + DIM_HEAD].reshape(B, N, DIM_HEAD)
            kh = qkv[:, INNER + c:INNER + c + DIM_HEAD].reshape(B, N, DIM_HEAD)
            vh = qkv[:, 2 * INNER + c:2 * INNER + c + DIM_HEAD].reshape(B, N, DIM_HEAD)

            dots = jnp.einsum('bnd,bmd->bnm', qh, kh,
                              preferred_element_type=jnp.float32) * SCALE     # (B, N, N)
            dots = dots - jnp.max(dots, axis=-1, keepdims=True)
            p = jnp.exp(dots)
            attn = p / jnp.sum(p, axis=-1, keepdims=True)            # exact softmax
            oh = jnp.einsum('bnm,bmd->bnd', attn, vh,
                            preferred_element_type=jnp.float32)      # (B, N, DIM_HEAD)
            head_outs.append(oh.reshape(B * N, DIM_HEAD))

        # Concat heads then ONE projection matmul against the canonical (INNER, DIM) weight.
        out2d = jnp.concatenate(head_outs, axis=-1)                  # (B*N, INNER)
        proj = jnp.dot(out2d, wout_ref[layer],
                       preferred_element_type=jnp.float32) + b_o     # (B*N, DIM)
        x = proj + x                                                 # residual

        # ---------------- x = FeedForward(LayerNorm(x)) + x ----------------
        xn = _layernorm(x, g_f, b_f)
        h1 = jnp.dot(xn, w1_ref[layer],
                     preferred_element_type=jnp.float32) + b1v       # (B*N, MLP_DIM)
        h1 = _gelu_exact(h1)
        y = jnp.dot(h1, w2_ref[layer],
                    preferred_element_type=jnp.float32) + b2v        # (B*N, DIM)
        x = y + x                                                    # residual

    o_ref[...] = x


# ---------------- host/XLA-side parameter packing (cheap, outside the kernel) ----------------
def pack_params(params):
    """Stack canonical weights across layers and pack all small tensors into one slab."""
    wqkv = jnp.stack([p["w_qkv"] for p in params])                   # (DEPTH, DIM, 3*INNER)
    wout = jnp.stack([p["w_out"] for p in params])                   # (DEPTH, INNER, DIM)
    w1 = jnp.stack([p["w1"] for p in params])                        # (DEPTH, DIM, MLP_DIM)
    w2 = jnp.stack([p["w2"] for p in params])                        # (DEPTH, MLP_DIM, DIM)

    def pad_row(v):   # (1, DIM) -> (1, MLP_DIM)
        return jnp.pad(v, ((0, 0), (0, MLP_DIM - DIM)))

    vec_layers = []
    for p in params:
        rows = jnp.concatenate([
            pad_row(p["attn_ln_g"]), pad_row(p["attn_ln_b"]), pad_row(p["b_out"]),
            pad_row(p["ff_ln_g"]), pad_row(p["ff_ln_b"]), pad_row(p["b2"]),
            p["b1"], jnp.zeros((1, MLP_DIM), jnp.float32)], axis=0)  # (8, MLP_DIM)
        vec_layers.append(rows)
    vecs = jnp.stack(vec_layers)                                     # (DEPTH, 8, MLP_DIM)
    return wqkv, wout, w1, w2, vecs


@jax.jit
def transformer_forward(x, params):
    wqkv, wout, w1, w2, vecs = pack_params(params)
    x2d = x.reshape(B * N, DIM)                                      # lane-dense-ish 2-D activation
    out2d = pl.pallas_call(
        transformer_kernel,
        out_shape=jax.ShapeDtypeStruct((B * N, DIM), jnp.float32),
        # No grid: one invocation, all weights + activations resident in VMEM (< 200 KiB).
        in_specs=[pl.BlockSpec(memory_space=pltpu.MemorySpace.VMEM)] * 6,
        out_specs=pl.BlockSpec(memory_space=pltpu.MemorySpace.VMEM),
        # Explicit VMEM budget. TODO(synk): v7x has only 64 MiB physical VMEM; at real model
        # dims fall back to a layer-axis grid with buffered weight prefetch.
        compiler_params=pltpu.CompilerParams(vmem_limit_bytes=32 * 1024 * 1024),
    )(x2d, wqkv, wout, w1, w2, vecs)
    return out2d.reshape(B, N, DIM)


# ---------------- pure-JAX reference (sanity check in __main__) ----------------
def transformer_reference(x, params):
    for p in params:
        xn = _layernorm(x, p["attn_ln_g"], p["attn_ln_b"])
        qkv = xn @ p["w_qkv"]                                        # (B, N, 3*INNER)
        q, k, v = jnp.split(qkv, 3, axis=-1)
        to_heads = lambda t: t.reshape(B, N, HEADS, DIM_HEAD).transpose(0, 2, 1, 3)
        q, k, v = to_heads(q), to_heads(k), to_heads(v)
        dots = jnp.einsum('bhnd,bhmd->bhnm', q, k) * SCALE
        attn = jax.nn.softmax(dots, axis=-1)
        out = jnp.einsum('bhnm,bhmd->bhnd', attn, v)
        out = out.transpose(0, 2, 1, 3).reshape(B, N, INNER)
        x = out @ p["w_out"] + p["b_out"] + x
        xn = _layernorm(x, p["ff_ln_g"], p["ff_ln_b"])
        h = xn @ p["w1"] + p["b1"]
        h = _gelu_exact(h)
        x = h @ p["w2"] + p["b2"] + x
    return x


def init_params(key):
    """Deterministic synthetic parameters (shapes match the PyTorch module's __init__)."""
    params = []
    for _ in range(DEPTH):
        keys = jax.random.split(key, 9)
        key = keys[0]

        def lin(k, fan_in, fan_out):
            bound = 1.0 / math.sqrt(fan_in)
            return jax.random.uniform(k, (fan_in, fan_out), jnp.float32, -bound, bound)

        layer = dict(
            # PreNorm(Attention)
            attn_ln_g=jnp.ones((1, DIM), jnp.float32),
            attn_ln_b=jnp.zeros((1, DIM), jnp.float32),
            w_qkv=lin(keys[1], DIM, 3 * INNER),          # to_qkv (bias=False)
            w_out=lin(keys[2], INNER, DIM),              # to_out Linear weight
            b_out=jax.random.uniform(keys[3], (1, DIM), jnp.float32,
                                     -1.0 / math.sqrt(INNER), 1.0 / math.sqrt(INNER)),
            # PreNorm(FeedForward)
            ff_ln_g=jnp.ones((1, DIM), jnp.float32),
            ff_ln_b=jnp.zeros((1, DIM), jnp.float32),
            w1=lin(keys[4], DIM, MLP_DIM),
            b1=jax.random.uniform(keys[5], (1, MLP_DIM), jnp.float32,
                                  -1.0 / math.sqrt(DIM), 1.0 / math.sqrt(DIM)),
            w2=lin(keys[6], MLP_DIM, DIM),
            b2=jax.random.uniform(keys[7], (1, DIM), jnp.float32,
                                  -1.0 / math.sqrt(MLP_DIM), 1.0 / math.sqrt(MLP_DIM)),
        )
        params.append(layer)
    return params


if __name__ == "__main__":
    key = jax.random.PRNGKey(0)
    kx, kp = jax.random.split(key)
    x = jax.random.normal(kx, (B, N, DIM), jnp.float32)
    params = init_params(kp)

    out = transformer_forward(x, params)
    jax.block_until_ready(out)
    assert out.shape == (B, N, DIM) and out.dtype == jnp.float32

    # Tight tolerance: kernel softmax uses an exact divide, all math in f32.
    ref = transformer_reference(x, params)
    max_err = float(jnp.max(jnp.abs(out - ref)))
    assert jnp.allclose(out, ref, rtol=1e-4, atol=1e-4), f"max abs err {max_err}"

    print("KERNEL_OK")
</pallas_src>

<mosaic_0001>
module attributes {stable_mosaic.version = 11 : i64} {
  func.func @transformer_kernel(%arg0: memref<16x32xf32, #tpu.memory_space<vmem>>, %arg1: memref<2x32x96xf32, #tpu.memory_space<vmem>>, %arg2: memref<2x32x32xf32, #tpu.memory_space<vmem>>, %arg3: memref<2x32x64xf32, #tpu.memory_space<vmem>>, %arg4: memref<2x64x32xf32, #tpu.memory_space<vmem>>, %arg5: memref<2x8x64xf32, #tpu.memory_space<vmem>>, %arg6: memref<16x32xf32, #tpu.memory_space<vmem>>) attributes {dimension_semantics = [], scalar_prefetch = 0 : i64, scratch_operands = 0 : i64, tpu.core_type = #tpu.core_type<tc>} {
    %c0 = arith.constant 0 : index
    %c0_0 = arith.constant 0 : index
    %0 = vector.load %arg0[%c0, %c0_0] : memref<16x32xf32, #tpu.memory_space<vmem>>, vector<16x32xf32>
    %c0_1 = arith.constant 0 : index
    %c0_2 = arith.constant 0 : index
    %c0_3 = arith.constant 0 : index
    %1 = vector.load %arg5[%c0_1, %c0_2, %c0_3] : memref<2x8x64xf32, #tpu.memory_space<vmem>>, vector<1x8x64xf32>
    %2 = vector.shape_cast %1 : vector<1x8x64xf32> to vector<8x64xf32>
    %3 = vector.extract_strided_slice %2 {offsets = [0, 0], sizes = [1, 32], strides = [1, 1]} : vector<8x64xf32> to vector<1x32xf32>
    %4 = vector.extract_strided_slice %2 {offsets = [1, 0], sizes = [1, 32], strides = [1, 1]} : vector<8x64xf32> to vector<1x32xf32>
    %5 = vector.extract_strided_slice %2 {offsets = [2, 0], sizes = [1, 32], strides = [1, 1]} : vector<8x64xf32> to vector<1x32xf32>
    %6 = vector.extract_strided_slice %2 {offsets = [3, 0], sizes = [1, 32], strides = [1, 1]} : vector<8x64xf32> to vector<1x32xf32>
    %7 = vector.extract_strided_slice %2 {offsets = [4, 0], sizes = [1, 32], strides = [1, 1]} : vector<8x64xf32> to vector<1x32xf32>
    %8 = vector.extract_strided_slice %2 {offsets = [5, 0], sizes = [1, 32], strides = [1, 1]} : vector<8x64xf32> to vector<1x32xf32>
    %9 = vector.extract_strided_slice %2 {offsets = [6, 0], sizes = [1, 64], strides = [1, 1]} : vector<8x64xf32> to vector<1x64xf32>
    %cst = arith.constant dense<0.000000e+00> : vector<16xf32>
    %10 = vector.multi_reduction <add>, %0, %cst [1] : vector<16x32xf32> to vector<16xf32>
    %11 = vector.shape_cast %10 : vector<16xf32> to vector<16x1xf32>
    %cst_4 = arith.constant 3.200000e+01 : f32
    %12 = vector.broadcast %cst_4 : f32 to vector<16x1xf32>
    %13 = arith.divf %11, %12 : vector<16x1xf32>
    %14 = vector.broadcast %13 : vector<16x1xf32> to vector<16x32xf32>
    %15 = arith.subf %0, %14 : vector<16x32xf32>
    %16 = arith.mulf %15, %15 : vector<16x32xf32>
    %cst_5 = arith.constant dense<0.000000e+00> : vector<16xf32>
    %17 = vector.multi_reduction <add>, %16, %cst_5 [1] : vector<16x32xf32> to vector<16xf32>
    %18 = vector.shape_cast %17 : vector<16xf32> to vector<16x1xf32>
    %cst_6 = arith.constant 3.200000e+01 : f32
    %19 = vector.broadcast %cst_6 : f32 to vector<16x1xf32>
    %20 = arith.divf %18, %19 : vector<16x1xf32>
    %cst_7 = arith.constant 9.99999974E-6 : f32
    %21 = vector.broadcast %cst_7 : f32 to vector<16x1xf32>
    %22 = arith.addf %20, %21 : vector<16x1xf32>
    %23 = math.rsqrt %22 : vector<16x1xf32>
    %24 = vector.broadcast %23 : vector<16x1xf32> to vector<16x32xf32>
    %25 = arith.mulf %15, %24 : vector<16x32xf32>
    %26 = vector.broadcast %3 : vector<1x32xf32> to vector<16x32xf32>
    %27 = arith.mulf %25, %26 : vector<16x32xf32>
    %28 = vector.broadcast %4 : vector<1x32xf32> to vector<16x32xf32>
    %29 = arith.addf %27, %28 : vector<16x32xf32>
    %c0_8 = arith.constant 0 : index
    %c0_9 = arith.constant 0 : index
    %c0_10 = arith.constant 0 : index
    %30 = vector.load %arg1[%c0_8, %c0_9, %c0_10] : memref<2x32x96xf32, #tpu.memory_space<vmem>>, vector<1x32x96xf32>
    %31 = vector.shape_cast %30 : vector<1x32x96xf32> to vector<32x96xf32>
    %cst_11 = arith.constant dense<0.000000e+00> : vector<16x96xf32>
    %32 = tpu.matmul %29, %31, %cst_11 {dimension_numbers = #tpu.dot_dimension_numbers<[1], [0], [0], [1], [0, 0, 1, 1], [], []>} : vector<16x32xf32>, vector<32x96xf32>, vector<16x96xf32> -> vector<16x96xf32>
    %33 = vector.extract_strided_slice %32 {offsets = [0, 0], sizes = [16, 8], strides = [1, 1]} : vector<16x96xf32> to vector<16x8xf32>
    %34 = vector.shape_cast %33 : vector<16x8xf32> to vector<2x8x8xf32>
    %35 = vector.extract_strided_slice %32 {offsets = [0, 32], sizes = [16, 8], strides = [1, 1]} : vector<16x96xf32> to vector<16x8xf32>
    %36 = vector.shape_cast %35 : vector<16x8xf32> to vector<2x8x8xf32>
    %37 = vector.extract_strided_slice %32 {offsets = [0, 64], sizes = [16, 8], strides = [1, 1]} : vector<16x96xf32> to vector<16x8xf32>
    %38 = vector.shape_cast %37 : vector<16x8xf32> to vector<2x8x8xf32>
    "tpu.trace_start"() <{level = 10 : i32, message = "bnd,bmd->bnm"}> : () -> ()
    %cst_12 = arith.constant dense<0.000000e+00> : vector<2x8x8xf32>
    %39 = tpu.matmul %34, %36, %cst_12 {dimension_numbers = #tpu.dot_dimension_numbers<[2], [2], [1], [1], [0, 0, 0, 1, 1, 1], [0], [0]>} : vector<2x8x8xf32>, vector<2x8x8xf32>, vector<2x8x8xf32> -> vector<2x8x8xf32>
    "tpu.trace_stop"() : () -> ()
    %cst_13 = arith.constant 0.353553385 : f32
    %40 = vector.broadcast %cst_13 : f32 to vector<2x8x8xf32>
    %41 = arith.mulf %39, %40 : vector<2x8x8xf32>
    %cst_14 = arith.constant dense<0xFF800000> : vector<2x8xf32>
    %42 = vector.multi_reduction <maximumf>, %41, %cst_14 [2] : vector<2x8x8xf32> to vector<2x8xf32>
    %43 = vector.shape_cast %42 : vector<2x8xf32> to vector<2x8x1xf32>
    %44 = vector.broadcast %43 : vector<2x8x1xf32> to vector<2x8x8xf32>
    %45 = arith.subf %41, %44 : vector<2x8x8xf32>
    %46 = math.exp %45 : vector<2x8x8xf32>
    %cst_15 = arith.constant dense<0.000000e+00> : vector<2x8xf32>
    %47 = vector.multi_reduction <add>, %46, %cst_15 [2] : vector<2x8x8xf32> to vector<2x8xf32>
    %48 = vector.shape_cast %47 : vector<2x8xf32> to vector<2x8x1xf32>
    %49 = vector.broadcast %48 : vector<2x8x1xf32> to vector<2x8x8xf32>
    %50 = arith.divf %46, %49 : vector<2x8x8xf32>
    "tpu.trace_start"() <{level = 10 : i32, message = "bnm,bmd->bnd"}> : () -> ()
    %cst_16 = arith.constant dense<0.000000e+00> : vector<2x8x8xf32>
    %51 = tpu.matmul %50, %38, %cst_16 {dimension_numbers = #tpu.dot_dimension_numbers<[2], [1], [1], [2], [0, 0, 0, 1, 1, 2], [0], [0]>} : vector<2x8x8xf32>, vector<2x8x8xf32>, vector<2x8x8xf32> -> vector<2x8x8xf32>
    "tpu.trace_stop"() : () -> ()
    %52 = vector.shape_cast %51 : vector<2x8x8xf32> to vector<16x8xf32>
    %53 = vector.extract_strided_slice %32 {offsets = [0, 8], sizes = [16, 8], strides = [1, 1]} : vector<16x96xf32> to vector<16x8xf32>
    %54 = vector.shape_cast %53 : vector<16x8xf32> to vector<2x8x8xf32>
    %55 = vector.extract_strided_slice %32 {offsets = [0, 40], sizes = [16, 8], strides = [1, 1]} : vector<16x96xf32> to vector<16x8xf32>
    %56 = vector.shape_cast %55 : vector<16x8xf32> to vector<2x8x8xf32>
    %57 = vector.extract_strided_slice %32 {offsets = [0, 72], sizes = [16, 8], strides = [1, 1]} : vector<16x96xf32> to vector<16x8xf32>
    %58 = vector.shape_cast %57 : vector<16x8xf32> to vector<2x8x8xf32>
    "tpu.trace_start"() <{level = 10 : i32, message = "bnd,bmd->bnm"}> : () -> ()
    %cst_17 = arith.constant dense<0.000000e+00> : vector<2x8x8xf32>
    %59 = tpu.matmul %54, %56, %cst_17 {dimension_numbers = #tpu.dot_dimension_numbers<[2], [2], [1], [1], [0, 0, 0, 1, 1, 1], [0], [0]>} : vector<2x8x8xf32>, vector<2x8x8xf32>, vector<2x8x8xf32> -> vector<2x8x8xf32>
    "tpu.trace_stop"() : () -> ()
    %cst_18 = arith.constant 0.353553385 : f32
    %60 = vector.broadcast %cst_18 : f32 to vector<2x8x8xf32>
    %61 = arith.mulf %59, %60 : vector<2x8x8xf32>
    %cst_19 = arith.constant dense<0xFF800000> : vector<2x8xf32>
    %62 = vector.multi_reduction <maximumf>, %61, %cst_19 [2] : vector<2x8x8xf32> to vector<2x8xf32>
    %63 = vector.shape_cast %62 : vector<2x8xf32> to vector<2x8x1xf32>
    %64 = vector.broadcast %63 : vector<2x8x1xf32> to vector<2x8x8xf32>
    %65 = arith.subf %61, %64 : vector<2x8x8xf32>
    %66 = math.exp %65 : vector<2x8x8xf32>
    %cst_20 = arith.constant dense<0.000000e+00> : vector<2x8xf32>
    %67 = vector.multi_reduction <add>, %66, %cst_20 [2] : vector<2x8x8xf32> to vector<2x8xf32>
    %68 = vector.shape_cast %67 : vector<2x8xf32> to vector<2x8x1xf32>
    %69 = vector.broadcast %68 : vector<2x8x1xf32> to vector<2x8x8xf32>
    %70 = arith.divf %66, %69 : vector<2x8x8xf32>
    "tpu.trace_start"() <{level = 10 : i32, message = "bnm,bmd->bnd"}> : () -> ()
    %cst_21 = arith.constant dense<0.000000e+00> : vector<2x8x8xf32>
    %71 = tpu.matmul %70, %58, %cst_21 {dimension_numbers = #tpu.dot_dimension_numbers<[2], [1], [1], [2], [0, 0, 0, 1, 1, 2], [0], [0]>} : vector<2x8x8xf32>, vector<2x8x8xf32>, vector<2x8x8xf32> -> vector<2x8x8xf32>
    "tpu.trace_stop"() : () -> ()
    %72 = vector.shape_cast %71 : vector<2x8x8xf32> to vector<16x8xf32>
    %73 = vector.extract_strided_slice %32 {offsets = [0, 16], sizes = [16, 8], strides = [1, 1]} : vector<16x96xf32> to vector<16x8xf32>
    %74 = vector.shape_cast %73 : vector<16x8xf32> to vector<2x8x8xf32>
    %75 = vector.extract_strided_slice %32 {offsets = [0, 48], sizes = [16, 8], strides = [1, 1]} : vector<16x96xf32> to vector<16x8xf32>
    %76 = vector.shape_cast %75 : vector<16x8xf32> to vector<2x8x8xf32>
    %77 = vector.extract_strided_slice %32 {offsets = [0, 80], sizes = [16, 8], strides = [1, 1]} : vector<16x96xf32> to vector<16x8xf32>
    %78 = vector.shape_cast %77 : vector<16x8xf32> to vector<2x8x8xf32>
    "tpu.trace_start"() <{level = 10 : i32, message = "bnd,bmd->bnm"}> : () -> ()
    %cst_22 = arith.constant dense<0.000000e+00> : vector<2x8x8xf32>
    %79 = tpu.matmul %74, %76, %cst_22 {dimension_numbers = #tpu.dot_dimension_numbers<[2], [2], [1], [1], [0, 0, 0, 1, 1, 1], [0], [0]>} : vector<2x8x8xf32>, vector<2x8x8xf32>, vector<2x8x8xf32> -> vector<2x8x8xf32>
    "tpu.trace_stop"() : () -> ()
    %cst_23 = arith.constant 0.353553385 : f32
    %80 = vector.broadcast %cst_23 : f32 to vector<2x8x8xf32>
    %81 = arith.mulf %79, %80 : vector<2x8x8xf32>
    %cst_24 = arith.constant dense<0xFF800000> : vector<2x8xf32>
    %82 = vector.multi_reduction <maximumf>, %81, %cst_24 [2] : vector<2x8x8xf32> to vector<2x8xf32>
    %83 = vector.shape_cast %82 : vector<2x8xf32> to vector<2x8x1xf32>
    %84 = vector.broadcast %83 : vector<2x8x1xf32> to vector<2x8x8xf32>
    %85 = arith.subf %81, %84 : vector<2x8x8xf32>
    %86 = math.exp %85 : vector<2x8x8xf32>
    %cst_25 = arith.constant dense<0.000000e+00> : vector<2x8xf32>
    %87 = vector.multi_reduction <add>, %86, %cst_25 [2] : vector<2x8x8xf32> to vector<2x8xf32>
    %88 = vector.shape_cast %87 : vector<2x8xf32> to vector<2x8x1xf32>
    %89 = vector.broadcast %88 : vector<2x8x1xf32> to vector<2x8x8xf32>
    %90 = arith.divf %86, %89 : vector<2x8x8xf32>
    "tpu.trace_start"() <{level = 10 : i32, message = "bnm,bmd->bnd"}> : () -> ()
    %cst_26 = arith.constant dense<0.000000e+00> : vector<2x8x8xf32>
    %91 = tpu.matmul %90, %78, %cst_26 {dimension_numbers = #tpu.dot_dimension_numbers<[2], [1], [1], [2], [0, 0, 0, 1, 1, 2], [0], [0]>} : vector<2x8x8xf32>, vector<2x8x8xf32>, vector<2x8x8xf32> -> vector<2x8x8xf32>
    "tpu.trace_stop"() : () -> ()
    %92 = vector.shape_cast %91 : vector<2x8x8xf32> to vector<16x8xf32>
    %93 = vector.extract_strided_slice %32 {offsets = [0, 24], sizes = [16, 8], strides = [1, 1]} : vector<16x96xf32> to vector<16x8xf32>
    %94 = vector.shape_cast %93 : vector<16x8xf32> to vector<2x8x8xf32>
    %95 = vector.extract_strided_slice %32 {offsets = [0, 56], sizes = [16, 8], strides = [1, 1]} : vector<16x96xf32> to vector<16x8xf32>
    %96 = vector.shape_cast %95 : vector<16x8xf32> to vector<2x8x8xf32>
    %97 = vector.extract_strided_slice %32 {offsets = [0, 88], sizes = [16, 8], strides = [1, 1]} : vector<16x96xf32> to vector<16x8xf32>
    %98 = vector.shape_cast %97 : vector<16x8xf32> to vector<2x8x8xf32>
    "tpu.trace_start"() <{level = 10 : i32, message = "bnd,bmd->bnm"}> : () -> ()
    %cst_27 = arith.constant dense<0.000000e+00> : vector<2x8x8xf32>
    %99 = tpu.matmul %94, %96, %cst_27 {dimension_numbers = #tpu.dot_dimension_numbers<[2], [2], [1], [1], [0, 0, 0, 1, 1, 1], [0], [0]>} : vector<2x8x8xf32>, vector<2x8x8xf32>, vector<2x8x8xf32> -> vector<2x8x8xf32>
    "tpu.trace_stop"() : () -> ()
    %cst_28 = arith.constant 0.353553385 : f32
    %100 = vector.broadcast %cst_28 : f32 to vector<2x8x8xf32>
    %101 = arith.mulf %99, %100 : vector<2x8x8xf32>
    %cst_29 = arith.constant dense<0xFF800000> : vector<2x8xf32>
    %102 = vector.multi_reduction <maximumf>, %101, %cst_29 [2] : vector<2x8x8xf32> to vector<2x8xf32>
    %103 = vector.shape_cast %102 : vector<2x8xf32> to vector<2x8x1xf32>
    %104 = vector.broadcast %103 : vector<2x8x1xf32> to vector<2x8x8xf32>
    %105 = arith.subf %101, %104 : vector<2x8x8xf32>
    %106 = math.exp %105 : vector<2x8x8xf32>
    %cst_30 = arith.constant dense<0.000000e+00> : vector<2x8xf32>
    %107 = vector.multi_reduction <add>, %106, %cst_30 [2] : vector<2x8x8xf32> to vector<2x8xf32>
    %108 = vector.shape_cast %107 : vector<2x8xf32> to vector<2x8x1xf32>
    %109 = vector.broadcast %108 : vector<2x8x1xf32> to vector<2x8x8xf32>
    %110 = arith.divf %106, %109 : vector<2x8x8xf32>
    "tpu.trace_start"() <{level = 10 : i32, message = "bnm,bmd->bnd"}> : () -> ()
    %cst_31 = arith.constant dense<0.000000e+00> : vector<2x8x8xf32>
    %111 = tpu.matmul %110, %98, %cst_31 {dimension_numbers = #tpu.dot_dimension_numbers<[2], [1], [1], [2], [0, 0, 0, 1, 1, 2], [0], [0]>} : vector<2x8x8xf32>, vector<2x8x8xf32>, vector<2x8x8xf32> -> vector<2x8x8xf32>
    "tpu.trace_stop"() : () -> ()
    %112 = vector.shape_cast %111 : vector<2x8x8xf32> to vector<16x8xf32>
    %113 = tpu.concatenate %52, %72, %92, %112 in 1 : vector<16x8xf32>, vector<16x8xf32>, vector<16x8xf32>, vector<16x8xf32> -> vector<16x32xf32>
    %c0_32 = arith.constant 0 : index
    %c0_33 = arith.constant 0 : index
    %c0_34 = arith.constant 0 : index
    %114 = vector.load %arg2[%c0_32, %c0_33, %c0_34] : memref<2x32x32xf32, #tpu.memory_space<vmem>>, vector<1x32x32xf32>
    %115 = vector.shape_cast %114 : vector<1x32x32xf32> to vector<32x32xf32>
    %cst_35 = arith.constant dense<0.000000e+00> : vector<16x32xf32>
    %116 = tpu.matmul %113, %115, %cst_35 {dimension_numbers = #tpu.dot_dimension_numbers<[1], [0], [0], [1], [0, 0, 1, 1], [], []>} : vector<16x32xf32>, vector<32x32xf32>, vector<16x32xf32> -> vector<16x32xf32>
    %117 = vector.broadcast %5 : vector<1x32xf32> to vector<16x32xf32>
    %118 = arith.addf %116, %117 : vector<16x32xf32>
    %119 = arith.addf %118, %0 : vector<16x32xf32>
    %cst_36 = arith.constant dense<0.000000e+00> : vector<16xf32>
    %120 = vector.multi_reduction <add>, %119, %cst_36 [1] : vector<16x32xf32> to vector<16xf32>
    %121 = vector.shape_cast %120 : vector<16xf32> to vector<16x1xf32>
    %cst_37 = arith.constant 3.200000e+01 : f32
    %122 = vector.broadcast %cst_37 : f32 to vector<16x1xf32>
    %123 = arith.divf %121, %122 : vector<16x1xf32>
    %124 = vector.broadcast %123 : vector<16x1xf32> to vector<16x32xf32>
    %125 = arith.subf %119, %124 : vector<16x32xf32>
    %126 = arith.mulf %125, %125 : vector<16x32xf32>
    %cst_38 = arith.constant dense<0.000000e+00> : vector<16xf32>
    %127 = vector.multi_reduction <add>, %126, %cst_38 [1] : vector<16x32xf32> to vector<16xf32>
    %128 = vector.shape_cast %127 : vector<16xf32> to vector<16x1xf32>
    %cst_39 = arith.constant 3.200000e+01 : f32
    %129 = vector.broadcast %cst_39 : f32 to vector<16x1xf32>
    %130 = arith.divf %128, %129 : vector<16x1xf32>
    %cst_40 = arith.constant 9.99999974E-6 : f32
    %131 = vector.broadcast %cst_40 : f32 to vector<16x1xf32>
    %132 = arith.addf %130, %131 : vector<16x1xf32>
    %133 = math.rsqrt %132 : vector<16x1xf32>
    %134 = vector.broadcast %133 : vector<16x1xf32> to vector<16x32xf32>
    %135 = arith.mulf %125, %134 : vector<16x32xf32>
    %136 = vector.broadcast %6 : vector<1x32xf32> to vector<16x32xf32>
    %137 = arith.mulf %135, %136 : vector<16x32xf32>
    %138 = vector.broadcast %7 : vector<1x32xf32> to vector<16x32xf32>
    %139 = arith.addf %137, %138 : vector<16x32xf32>
    %c0_41 = arith.constant 0 : index
    %c0_42 = arith.constant 0 : index
    %c0_43 = arith.constant 0 : index
    %140 = vector.load %arg3[%c0_41, %c0_42, %c0_43] : memref<2x32x64xf32, #tpu.memory_space<vmem>>, vector<1x32x64xf32>
    %141 = vector.shape_cast %140 : vector<1x32x64xf32> to vector<32x64xf32>
    %cst_44 = arith.constant dense<0.000000e+00> : vector<16x64xf32>
    %142 = tpu.matmul %139, %141, %cst_44 {dimension_numbers = #tpu.dot_dimension_numbers<[1], [0], [0], [1], [0, 0, 1, 1], [], []>} : vector<16x32xf32>, vector<32x64xf32>, vector<16x64xf32> -> vector<16x64xf32>
    %143 = vector.broadcast %9 : vector<1x64xf32> to vector<16x64xf32>
    %144 = arith.addf %142, %143 : vector<16x64xf32>
    %cst_45 = arith.constant 5.000000e-01 : f32
    %145 = vector.broadcast %cst_45 : f32 to vector<16x64xf32>
    %146 = arith.mulf %145, %144 : vector<16x64xf32>
    %cst_46 = arith.constant 0.707106769 : f32
    %147 = vector.broadcast %cst_46 : f32 to vector<16x64xf32>
    %148 = arith.mulf %144, %147 : vector<16x64xf32>
    %149 = math.erf %148 : vector<16x64xf32>
    %cst_47 = arith.constant 1.000000e+00 : f32
    %150 = vector.broadcast %cst_47 : f32 to vector<16x64xf32>
    %151 = arith.addf %150, %149 : vector<16x64xf32>
    %152 = arith.mulf %146, %151 : vector<16x64xf32>
    %c0_48 = arith.constant 0 : index
    %c0_49 = arith.constant 0 : index
    %c0_50 = arith.constant 0 : index
    %153 = vector.load %arg4[%c0_48, %c0_49, %c0_50] : memref<2x64x32xf32, #tpu.memory_space<vmem>>, vector<1x64x32xf32>
    %154 = vector.shape_cast %153 : vector<1x64x32xf32> to vector<64x32xf32>
    %cst_51 = arith.constant dense<0.000000e+00> : vector<16x32xf32>
    %155 = tpu.matmul %152, %154, %cst_51 {dimension_numbers = #tpu.dot_dimension_numbers<[1], [0], [0], [1], [0, 0, 1, 1], [], []>} : vector<16x64xf32>, vector<64x32xf32>, vector<16x32xf32> -> vector<16x32xf32>
    %156 = vector.broadcast %8 : vector<1x32xf32> to vector<16x32xf32>
    %157 = arith.addf %155, %156 : vector<16x32xf32>
    %158 = arith.addf %157, %119 : vector<16x32xf32>
    %c1 = arith.constant 1 : index
    %c0_52 = arith.constant 0 : index
    %c0_53 = arith.constant 0 : index
    %159 = vector.load %arg5[%c1, %c0_52, %c0_53] : memref<2x8x64xf32, #tpu.memory_space<vmem>>, vector<1x8x64xf32>
    %160 = vector.shape_cast %159 : vector<1x8x64xf32> to vector<8x64xf32>
    %161 = vector.extract_strided_slice %160 {offsets = [0, 0], sizes = [1, 32], strides = [1, 1]} : vector<8x64xf32> to vector<1x32xf32>
    %162 = vector.extract_strided_slice %160 {offsets = [1, 0], sizes = [1, 32], strides = [1, 1]} : vector<8x64xf32> to vector<1x32xf32>
    %163 = vector.extract_strided_slice %160 {offsets = [2, 0], sizes = [1, 32], strides = [1, 1]} : vector<8x64xf32> to vector<1x32xf32>
    %164 = vector.extract_strided_slice %160 {offsets = [3, 0], sizes = [1, 32], strides = [1, 1]} : vector<8x64xf32> to vector<1x32xf32>
    %165 = vector.extract_strided_slice %160 {offsets = [4, 0], sizes = [1, 32], strides = [1, 1]} : vector<8x64xf32> to vector<1x32xf32>
    %166 = vector.extract_strided_slice %160 {offsets = [5, 0], sizes = [1, 32], strides = [1, 1]} : vector<8x64xf32> to vector<1x32xf32>
    %167 = vector.extract_strided_slice %160 {offsets = [6, 0], sizes = [1, 64], strides = [1, 1]} : vector<8x64xf32> to vector<1x64xf32>
    %cst_54 = arith.constant dense<0.000000e+00> : vector<16xf32>
    %168 = vector.multi_reduction <add>, %158, %cst_54 [1] : vector<16x32xf32> to vector<16xf32>
    %169 = vector.shape_cast %168 : vector<16xf32> to vector<16x1xf32>
    %cst_55 = arith.constant 3.200000e+01 : f32
    %170 = vector.broadcast %cst_55 : f32 to vector<16x1xf32>
    %171 = arith.divf %169, %170 : vector<16x1xf32>
    %172 = vector.broadcast %171 : vector<16x1xf32> to vector<16x32xf32>
    %173 = arith.subf %158, %172 : vector<16x32xf32>
    %174 = arith.mulf %173, %173 : vector<16x32xf32>
    %cst_56 = arith.constant dense<0.000000e+00> : vector<16xf32>
    %175 = vector.multi_reduction <add>, %174, %cst_56 [1] : vector<16x32xf32> to vector<16xf32>
    %176 = vector.shape_cast %175 : vector<16xf32> to vector<16x1xf32>
    %cst_57 = arith.constant 3.200000e+01 : f32
    %177 = vector.broadcast %cst_57 : f32 to vector<16x1xf32>
    %178 = arith.divf %176, %177 : vector<16x1xf32>
    %cst_58 = arith.constant 9.99999974E-6 : f32
    %179 = vector.broadcast %cst_58 : f32 to vector<16x1xf32>
    %180 = arith.addf %178, %179 : vector<16x1xf32>
    %181 = math.rsqrt %180 : vector<16x1xf32>
    %182 = vector.broadcast %181 : vector<16x1xf32> to vector<16x32xf32>
    %183 = arith.mulf %173, %182 : vector<16x32xf32>
    %184 = vector.broadcast %161 : vector<1x32xf32> to vector<16x32xf32>
    %185 = arith.mulf %183, %184 : vector<16x32xf32>
    %186 = vector.broadcast %162 : vector<1x32xf32> to vector<16x32xf32>
    %187 = arith.addf %185, %186 : vector<16x32xf32>
    %c1_59 = arith.constant 1 : index
    %c0_60 = arith.constant 0 : index
    %c0_61 = arith.constant 0 : index
    %188 = vector.load %arg1[%c1_59, %c0_60, %c0_61] : memref<2x32x96xf32, #tpu.memory_space<vmem>>, vector<1x32x96xf32>
    %189 = vector.shape_cast %188 : vector<1x32x96xf32> to vector<32x96xf32>
    %cst_62 = arith.constant dense<0.000000e+00> : vector<16x96xf32>
    %190 = tpu.matmul %187, %189, %cst_62 {dimension_numbers = #tpu.dot_dimension_numbers<[1], [0], [0], [1], [0, 0, 1, 1], [], []>} : vector<16x32xf32>, vector<32x96xf32>, vector<16x96xf32> -> vector<16x96xf32>
    %191 = vector.extract_strided_slice %190 {offsets = [0, 0], sizes = [16, 8], strides = [1, 1]} : vector<16x96xf32> to vector<16x8xf32>
    %192 = vector.shape_cast %191 : vector<16x8xf32> to vector<2x8x8xf32>
    %193 = vector.extract_strided_slice %190 {offsets = [0, 32], sizes = [16, 8], strides = [1, 1]} : vector<16x96xf32> to vector<16x8xf32>
    %194 = vector.shape_cast %193 : vector<16x8xf32> to vector<2x8x8xf32>
    %195 = vector.extract_strided_slice %190 {offsets = [0, 64], sizes = [16, 8], strides = [1, 1]} : vector<16x96xf32> to vector<16x8xf32>
    %196 = vector.shape_cast %195 : vector<16x8xf32> to vector<2x8x8xf32>
    "tpu.trace_start"() <{level = 10 : i32, message = "bnd,bmd->bnm"}> : () -> ()
    %cst_63 = arith.constant dense<0.000000e+00> : vector<2x8x8xf32>
    %197 = tpu.matmul %192, %194, %cst_63 {dimension_numbers = #tpu.dot_dimension_numbers<[2], [2], [1], [1], [0, 0, 0, 1, 1, 1], [0], [0]>} : vector<2x8x8xf32>, vector<2x8x8xf32>, vector<2x8x8xf32> -> vector<2x8x8xf32>
    "tpu.trace_stop"() : () -> ()
    %cst_64 = arith.constant 0.353553385 : f32
    %198 = vector.broadcast %cst_64 : f32 to vector<2x8x8xf32>
    %199 = arith.mulf %197, %198 : vector<2x8x8xf32>
    %cst_65 = arith.constant dense<0xFF800000> : vector<2x8xf32>
    %200 = vector.multi_reduction <maximumf>, %199, %cst_65 [2] : vector<2x8x8xf32> to vector<2x8xf32>
    %201 = vector.shape_cast %200 : vector<2x8xf32> to vector<2x8x1xf32>
    %202 = vector.broadcast %201 : vector<2x8x1xf32> to vector<2x8x8xf32>
    %203 = arith.subf %199, %202 : vector<2x8x8xf32>
    %204 = math.exp %203 : vector<2x8x8xf32>
    %cst_66 = arith.constant dense<0.000000e+00> : vector<2x8xf32>
    %205 = vector.multi_reduction <add>, %204, %cst_66 [2] : vector<2x8x8xf32> to vector<2x8xf32>
    %206 = vector.shape_cast %205 : vector<2x8xf32> to vector<2x8x1xf32>
    %207 = vector.broadcast %206 : vector<2x8x1xf32> to vector<2x8x8xf32>
    %208 = arith.divf %204, %207 : vector<2x8x8xf32>
    "tpu.trace_start"() <{level = 10 : i32, message = "bnm,bmd->bnd"}> : () -> ()
    %cst_67 = arith.constant dense<0.000000e+00> : vector<2x8x8xf32>
    %209 = tpu.matmul %208, %196, %cst_67 {dimension_numbers = #tpu.dot_dimension_numbers<[2], [1], [1], [2], [0, 0, 0, 1, 1, 2], [0], [0]>} : vector<2x8x8xf32>, vector<2x8x8xf32>, vector<2x8x8xf32> -> vector<2x8x8xf32>
    "tpu.trace_stop"() : () -> ()
    %210 = vector.shape_cast %209 : vector<2x8x8xf32> to vector<16x8xf32>
    %211 = vector.extract_strided_slice %190 {offsets = [0, 8], sizes = [16, 8], strides = [1, 1]} : vector<16x96xf32> to vector<16x8xf32>
    %212 = vector.shape_cast %211 : vector<16x8xf32> to vector<2x8x8xf32>
    %213 = vector.extract_strided_slice %190 {offsets = [0, 40], sizes = [16, 8], strides = [1, 1]} : vector<16x96xf32> to vector<16x8xf32>
    %214 = vector.shape_cast %213 : vector<16x8xf32> to vector<2x8x8xf32>
    %215 = vector.extract_strided_slice %190 {offsets = [0, 72], sizes = [16, 8], strides = [1, 1]} : vector<16x96xf32> to vector<16x8xf32>
    %216 = vector.shape_cast %215 : vector<16x8xf32> to vector<2x8x8xf32>
    "tpu.trace_start"() <{level = 10 : i32, message = "bnd,bmd->bnm"}> : () -> ()
    %cst_68 = arith.constant dense<0.000000e+00> : vector<2x8x8xf32>
    %217 = tpu.matmul %212, %214, %cst_68 {dimension_numbers = #tpu.dot_dimension_numbers<[2], [2], [1], [1], [0, 0, 0, 1, 1, 1], [0], [0]>} : vector<2x8x8xf32>, vector<2x8x8xf32>, vector<2x8x8xf32> -> vector<2x8x8xf32>
    "tpu.trace_stop"() : () -> ()
    %cst_69 = arith.constant 0.353553385 : f32
    %218 = vector.broadcast %cst_69 : f32 to vector<2x8x8xf32>
    %219 = arith.mulf %217, %218 : vector<2x8x8xf32>
    %cst_70 = arith.constant dense<0xFF800000> : vector<2x8xf32>
    %220 = vector.multi_reduction <maximumf>, %219, %cst_70 [2] : vector<2x8x8xf32> to vector<2x8xf32>
    %221 = vector.shape_cast %220 : vector<2x8xf32> to vector<2x8x1xf32>
    %222 = vector.broadcast %221 : vector<2x8x1xf32> to vector<2x8x8xf32>
    %223 = arith.subf %219, %222 : vector<2x8x8xf32>
    %224 = math.exp %223 : vector<2x8x8xf32>
    %cst_71 = arith.constant dense<0.000000e+00> : vector<2x8xf32>
    %225 = vector.multi_reduction <add>, %224, %cst_71 [2] : vector<2x8x8xf32> to vector<2x8xf32>
    %226 = vector.shape_cast %225 : vector<2x8xf32> to vector<2x8x1xf32>
    %227 = vector.broadcast %226 : vector<2x8x1xf32> to vector<2x8x8xf32>
    %228 = arith.divf %224, %227 : vector<2x8x8xf32>
    "tpu.trace_start"() <{level = 10 : i32, message = "bnm,bmd->bnd"}> : () -> ()
    %cst_72 = arith.constant dense<0.000000e+00> : vector<2x8x8xf32>
    %229 = tpu.matmul %228, %216, %cst_72 {dimension_numbers = #tpu.dot_dimension_numbers<[2], [1], [1], [2], [0, 0, 0, 1, 1, 2], [0], [0]>} : vector<2x8x8xf32>, vector<2x8x8xf32>, vector<2x8x8xf32> -> vector<2x8x8xf32>
    "tpu.trace_stop"() : () -> ()
    %230 = vector.shape_cast %229 : vector<2x8x8xf32> to vector<16x8xf32>
    %231 = vector.extract_strided_slice %190 {offsets = [0, 16], sizes = [16, 8], strides = [1, 1]} : vector<16x96xf32> to vector<16x8xf32>
    %232 = vector.shape_cast %231 : vector<16x8xf32> to vector<2x8x8xf32>
    %233 = vector.extract_strided_slice %190 {offsets = [0, 48], sizes = [16, 8], strides = [1, 1]} : vector<16x96xf32> to vector<16x8xf32>
    %234 = vector.shape_cast %233 : vector<16x8xf32> to vector<2x8x8xf32>
    %235 = vector.extract_strided_slice %190 {offsets = [0, 80], sizes = [16, 8], strides = [1, 1]} : vector<16x96xf32> to vector<16x8xf32>
    %236 = vector.shape_cast %235 : vector<16x8xf32> to vector<2x8x8xf32>
    "tpu.trace_start"() <{level = 10 : i32, message = "bnd,bmd->bnm"}> : () -> ()
    %cst_73 = arith.constant dense<0.000000e+00> : vector<2x8x8xf32>
    %237 = tpu.matmul %232, %234, %cst_73 {dimension_numbers = #tpu.dot_dimension_numbers<[2], [2], [1], [1], [0, 0, 0, 1, 1, 1], [0], [0]>} : vector<2x8x8xf32>, vector<2x8x8xf32>, vector<2x8x8xf32> -> vector<2x8x8xf32>
    "tpu.trace_stop"() : () -> ()
    %cst_74 = arith.constant 0.353553385 : f32
    %238 = vector.broadcast %cst_74 : f32 to vector<2x8x8xf32>
    %239 = arith.mulf %237, %238 : vector<2x8x8xf32>
    %cst_75 = arith.constant dense<0xFF800000> : vector<2x8xf32>
    %240 = vector.multi_reduction <maximumf>, %239, %cst_75 [2] : vector<2x8x8xf32> to vector<2x8xf32>
    %241 = vector.shape_cast %240 : vector<2x8xf32> to vector<2x8x1xf32>
    %242 = vector.broadcast %241 : vector<2x8x1xf32> to vector<2x8x8xf32>
    %243 = arith.subf %239, %242 : vector<2x8x8xf32>
    %244 = math.exp %243 : vector<2x8x8xf32>
    %cst_76 = arith.constant dense<0.000000e+00> : vector<2x8xf32>
    %245 = vector.multi_reduction <add>, %244, %cst_76 [2] : vector<2x8x8xf32> to vector<2x8xf32>
    %246 = vector.shape_cast %245 : vector<2x8xf32> to vector<2x8x1xf32>
    %247 = vector.broadcast %246 : vector<2x8x1xf32> to vector<2x8x8xf32>
    %248 = arith.divf %244, %247 : vector<2x8x8xf32>
    "tpu.trace_start"() <{level = 10 : i32, message = "bnm,bmd->bnd"}> : () -> ()
    %cst_77 = arith.constant dense<0.000000e+00> : vector<2x8x8xf32>
    %249 = tpu.matmul %248, %236, %cst_77 {dimension_numbers = #tpu.dot_dimension_numbers<[2], [1], [1], [2], [0, 0, 0, 1, 1, 2], [0], [0]>} : vector<2x8x8xf32>, vector<2x8x8xf32>, vector<2x8x8xf32> -> vector<2x8x8xf32>
    "tpu.trace_stop"() : () -> ()
    %250 = vector.shape_cast %249 : vector<2x8x8xf32> to vector<16x8xf32>
    %251 = vector.extract_strided_slice %190 {offsets = [0, 24], sizes = [16, 8], strides = [1, 1]} : vector<16x96xf32> to vector<16x8xf32>
    %252 = vector.shape_cast %251 : vector<16x8xf32> to vector<2x8x8xf32>
    %253 = vector.extract_strided_slice %190 {offsets = [0, 56], sizes = [16, 8], strides = [1, 1]} : vector<16x96xf32> to vector<16x8xf32>
    %254 = vector.shape_cast %253 : vector<16x8xf32> to vector<2x8x8xf32>
    %255 = vector.extract_strided_slice %190 {offsets = [0, 88], sizes = [16, 8], strides = [1, 1]} : vector<16x96xf32> to vector<16x8xf32>
    %256 = vector.shape_cast %255 : vector<16x8xf32> to vector<2x8x8xf32>
    "tpu.trace_start"() <{level = 10 : i32, message = "bnd,bmd->bnm"}> : () -> ()
    %cst_78 = arith.constant dense<0.000000e+00> : vector<2x8x8xf32>
    %257 = tpu.matmul %252, %254, %cst_78 {dimension_numbers = #tpu.dot_dimension_numbers<[2], [2], [1], [1], [0, 0, 0, 1, 1, 1], [0], [0]>} : vector<2x8x8xf32>, vector<2x8x8xf32>, vector<2x8x8xf32> -> vector<2x8x8xf32>
    "tpu.trace_stop"() : () -> ()
    %cst_79 = arith.constant 0.353553385 : f32
    %258 = vector.broadcast %cst_79 : f32 to vector<2x8x8xf32>
    %259 = arith.mulf %257, %258 : vector<2x8x8xf32>
    %cst_80 = arith.constant dense<0xFF800000> : vector<2x8xf32>
    %260 = vector.multi_reduction <maximumf>, %259, %cst_80 [2] : vector<2x8x8xf32> to vector<2x8xf32>
    %261 = vector.shape_cast %260 : vector<2x8xf32> to vector<2x8x1xf32>
    %262 = vector.broadcast %261 : vector<2x8x1xf32> to vector<2x8x8xf32>
    %263 = arith.subf %259, %262 : vector<2x8x8xf32>
    %264 = math.exp %263 : vector<2x8x8xf32>
    %cst_81 = arith.constant dense<0.000000e+00> : vector<2x8xf32>
    %265 = vector.multi_reduction <add>, %264, %cst_81 [2] : vector<2x8x8xf32> to vector<2x8xf32>
    %266 = vector.shape_cast %265 : vector<2x8xf32> to vector<2x8x1xf32>
    %267 = vector.broadcast %266 : vector<2x8x1xf32> to vector<2x8x8xf32>
    %268 = arith.divf %264, %267 : vector<2x8x8xf32>
    "tpu.trace_start"() <{level = 10 : i32, message = "bnm,bmd->bnd"}> : () -> ()
    %cst_82 = arith.constant dense<0.000000e+00> : vector<2x8x8xf32>
    %269 = tpu.matmul %268, %256, %cst_82 {dimension_numbers = #tpu.dot_dimension_numbers<[2], [1], [1], [2], [0, 0, 0, 1, 1, 2], [0], [0]>} : vector<2x8x8xf32>, vector<2x8x8xf32>, vector<2x8x8xf32> -> vector<2x8x8xf32>
    "tpu.trace_stop"() : () -> ()
    %270 = vector.shape_cast %269 : vector<2x8x8xf32> to vector<16x8xf32>
    %271 = tpu.concatenate %210, %230, %250, %270 in 1 : vector<16x8xf32>, vector<16x8xf32>, vector<16x8xf32>, vector<16x8xf32> -> vector<16x32xf32>
    %c1_83 = arith.constant 1 : index
    %c0_84 = arith.constant 0 : index
    %c0_85 = arith.constant 0 : index
    %272 = vector.load %arg2[%c1_83, %c0_84, %c0_85] : memref<2x32x32xf32, #tpu.memory_space<vmem>>, vector<1x32x32xf32>
    %273 = vector.shape_cast %272 : vector<1x32x32xf32> to vector<32x32xf32>
    %cst_86 = arith.constant dense<0.000000e+00> : vector<16x32xf32>
    %274 = tpu.matmul %271, %273, %cst_86 {dimension_numbers = #tpu.dot_dimension_numbers<[1], [0], [0], [1], [0, 0, 1, 1], [], []>} : vector<16x32xf32>, vector<32x32xf32>, vector<16x32xf32> -> vector<16x32xf32>
    %275 = vector.broadcast %163 : vector<1x32xf32> to vector<16x32xf32>
    %276 = arith.addf %274, %275 : vector<16x32xf32>
    %277 = arith.addf %276, %158 : vector<16x32xf32>
    %cst_87 = arith.constant dense<0.000000e+00> : vector<16xf32>
    %278 = vector.multi_reduction <add>, %277, %cst_87 [1] : vector<16x32xf32> to vector<16xf32>
    %279 = vector.shape_cast %278 : vector<16xf32> to vector<16x1xf32>
    %cst_88 = arith.constant 3.200000e+01 : f32
    %280 = vector.broadcast %cst_88 : f32 to vector<16x1xf32>
    %281 = arith.divf %279, %280 : vector<16x1xf32>
    %282 = vector.broadcast %281 : vector<16x1xf32> to vector<16x32xf32>
    %283 = arith.subf %277, %282 : vector<16x32xf32>
    %284 = arith.mulf %283, %283 : vector<16x32xf32>
    %cst_89 = arith.constant dense<0.000000e+00> : vector<16xf32>
    %285 = vector.multi_reduction <add>, %284, %cst_89 [1] : vector<16x32xf32> to vector<16xf32>
    %286 = vector.shape_cast %285 : vector<16xf32> to vector<16x1xf32>
    %cst_90 = arith.constant 3.200000e+01 : f32
    %287 = vector.broadcast %cst_90 : f32 to vector<16x1xf32>
    %288 = arith.divf %286, %287 : vector<16x1xf32>
    %cst_91 = arith.constant 9.99999974E-6 : f32
    %289 = vector.broadcast %cst_91 : f32 to vector<16x1xf32>
    %290 = arith.addf %288, %289 : vector<16x1xf32>
    %291 = math.rsqrt %290 : vector<16x1xf32>
    %292 = vector.broadcast %291 : vector<16x1xf32> to vector<16x32xf32>
    %293 = arith.mulf %283, %292 : vector<16x32xf32>
    %294 = vector.broadcast %164 : vector<1x32xf32> to vector<16x32xf32>
    %295 = arith.mulf %293, %294 : vector<16x32xf32>
    %296 = vector.broadcast %165 : vector<1x32xf32> to vector<16x32xf32>
    %297 = arith.addf %295, %296 : vector<16x32xf32>
    %c1_92 = arith.constant 1 : index
    %c0_93 = arith.constant 0 : index
    %c0_94 = arith.constant 0 : index
    %298 = vector.load %arg3[%c1_92, %c0_93, %c0_94] : memref<2x32x64xf32, #tpu.memory_space<vmem>>, vector<1x32x64xf32>
    %299 = vector.shape_cast %298 : vector<1x32x64xf32> to vector<32x64xf32>
    %cst_95 = arith.constant dense<0.000000e+00> : vector<16x64xf32>
    %300 = tpu.matmul %297, %299, %cst_95 {dimension_numbers = #tpu.dot_dimension_numbers<[1], [0], [0], [1], [0, 0, 1, 1], [], []>} : vector<16x32xf32>, vector<32x64xf32>, vector<16x64xf32> -> vector<16x64xf32>
    %301 = vector.broadcast %167 : vector<1x64xf32> to vector<16x64xf32>
    %302 = arith.addf %300, %301 : vector<16x64xf32>
    %cst_96 = arith.constant 5.000000e-01 : f32
    %303 = vector.broadcast %cst_96 : f32 to vector<16x64xf32>
    %304 = arith.mulf %303, %302 : vector<16x64xf32>
    %cst_97 = arith.constant 0.707106769 : f32
    %305 = vector.broadcast %cst_97 : f32 to vector<16x64xf32>
    %306 = arith.mulf %302, %305 : vector<16x64xf32>
    %307 = math.erf %306 : vector<16x64xf32>
    %cst_98 = arith.constant 1.000000e+00 : f32
    %308 = vector.broadcast %cst_98 : f32 to vector<16x64xf32>
    %309 = arith.addf %308, %307 : vector<16x64xf32>
    %310 = arith.mulf %304, %309 : vector<16x64xf32>
    %c1_99 = arith.constant 1 : index
    %c0_100 = arith.constant 0 : index
    %c0_101 = arith.constant 0 : index
    %311 = vector.load %arg4[%c1_99, %c0_100, %c0_101] : memref<2x64x32xf32, #tpu.memory_space<vmem>>, vector<1x64x32xf32>
    %312 = vector.shape_cast %311 : vector<1x64x32xf32> to vector<64x32xf32>
    %cst_102 = arith.constant dense<0.000000e+00> : vector<16x32xf32>
    %313 = tpu.matmul %310, %312, %cst_102 {dimension_numbers = #tpu.dot_dimension_numbers<[1], [0], [0], [1], [0, 0, 1, 1], [], []>} : vector<16x64xf32>, vector<64x32xf32>, vector<16x32xf32> -> vector<16x32xf32>
    %314 = vector.broadcast %166 : vector<1x32xf32> to vector<16x32xf32>
    %315 = arith.addf %313, %314 : vector<16x32xf32>
    %316 = arith.addf %315, %277 : vector<16x32xf32>
    %c0_103 = arith.constant 0 : index
    %c0_104 = arith.constant 0 : index
    %317 = vector.load %arg6[%c0_103, %c0_104] : memref<16x32xf32, #tpu.memory_space<vmem>>, vector<16x32xf32>
    tpu.vector_store %arg6[%c0_103, %c0_104], %316 {strides = array<i32>} : memref<16x32xf32, #tpu.memory_space<vmem>>, vector<16x32xf32>,
    return
  }
}

</mosaic_0001>

<llo_original>
// kernel: transformer_forward.1
$region0: #{transformer_forward.1}
  #allocation0 [shape = 'u32[]', space=smem, size = 0x4, offset = 0x4, fixed_abs, tag = 'smem constant byte address 0x4 - core index']
  #allocation1 [shape = 'u32[144,128]{1,0:T(1,128)}', space=vmem, size = 0x12000, scoped, tag = 'internal scratch']
  %s0 = inlined_call_operand.vmem [shape: f32[16,32], index: 0, kind: input, shape index: {}]
  %s1 = inlined_call_operand.vmem [shape: f32[2,32,96], index: 1, kind: input, shape index: {}]
  %s2 = inlined_call_operand.vmem [shape: f32[2,32,32], index: 2, kind: input, shape index: {}]
  %s3 = inlined_call_operand.vmem [shape: f32[2,32,64], index: 3, kind: input, shape index: {}]
  %s4 = inlined_call_operand.vmem [shape: f32[2,64,32], index: 4, kind: input, shape index: {}]
  %s5 = inlined_call_operand.vmem [shape: f32[2,8,64], index: 5, kind: input, shape index: {}]
  %s6 = inlined_call_operand.hbm [shape: f32[16,32], index: 6, kind: output, shape index: {}]
  %s7 = sld [smem:[#allocation0]]
  $region34: #{transformer_forward.1} parent=0
    _
  %s9 = ssub.s32 1, %s7
  %s10 = scalar_select 0, %s9, %s7
  $region1: #{transformer_forward.1} parent=0
    #allocation2 [shape = 'u8[8192]{0}', space=vmem, size = 0x2000, scoped, tag = 'output window, operand 0, single buffered']
    #allocation3 [shape = 's32[1]{0}', space=sflag, size = 0x4, scoped, tag = 'scoped memory for transformer_forward.1']
    %11 = vsyncpa [#allocation3], 0
    // Predicated region
    $region2: #{transformer_forward.1} parent=1 // pred_check
      _
    $region3: #{transformer_forward.1} parent=1 // pred_check_branch
      %13 = sbr.rel (0) target = $region5
    $region4: #{transformer_forward.1} parent=1 // pred_region
      _
    $region5: #{transformer_forward.1} parent=1 // pred_fallthru
      _
    // Predicated region
    $region6: #{transformer_forward.1} parent=1 // pred_check
      _
    $region7: #{transformer_forward.1} parent=1 // pred_check_branch
      %15 = sbr.rel (0) target = $region9
    $region8: #{transformer_forward.1} parent=1 // pred_region
      _
    $region9: #{transformer_forward.1} parent=1 // pred_fallthru
      _
    // Predicated region
    $region10: #{transformer_forward.1} parent=1 // pred_check
      _
    $region11: #{transformer_forward.1} parent=1 // pred_check_branch
      %17 = sbr.rel (0) target = $region13
    $region12: #{transformer_forward.1} parent=1 // pred_region
      _
    $region13: #{transformer_forward.1} parent=1 // pred_fallthru
      _
    // Predicated region
    $region14: #{transformer_forward.1} parent=1 // pred_check
      _
    $region15: #{transformer_forward.1} parent=1 // pred_check_branch
      %19 = sbr.rel (0) target = $region17
    $region16: #{transformer_forward.1} parent=1 // pred_region
      _
    $region17: #{transformer_forward.1} parent=1 // pred_fallthru
      _
    // Predicated region
    $region18: #{transformer_forward.1} parent=1 // pred_check
      _
    $region19: #{transformer_forward.1} parent=1 // pred_check_branch
      %21 = sbr.rel (0) target = $region21
    $region20: #{transformer_forward.1} parent=1 // pred_region
      _
    $region21: #{transformer_forward.1} parent=1 // pred_fallthru
      _
    // Predicated region
    $region22: #{transformer_forward.1} parent=1 // pred_check
      _
    $region23: #{transformer_forward.1} parent=1 // pred_check_branch
      %23 = sbr.rel (0) target = $region25
    $region24: #{transformer_forward.1} parent=1 // pred_region
      _
    $region25: #{transformer_forward.1} parent=1 // pred_fallthru
      _
    %v24 = vld [vmem:[%s0] sm:$0xff]
    %v25 = vld [vmem:[%s0 + $0x8] sm:$0xff]
    %v26 = vld [vmem:[%s5] sm:$0xff]
    %vm27 = vcmask 261120
    %v28 = vsel %vm27, %v24, 0.0
    %29 = vadd.xlane.f32.xlu0 %v28
    %v30 = vpop.xlane.xlu0 %29
    %v31 = vsel %vm27, %v25, 0.0
    %32 = vadd.xlane.f32.xlu0 %v31
    %v33 = vpop.xlane.xlu0 %32
    %v34 = vrcp.pop 32.0
    %v35 = vmul.f32 %v30, %v34
    %v36 = vmul.f32 %v33, %v34
    %v37 = vsub.f32 %v24, %v35
    %v38 = vsub.f32 %v25, %v36
    %v39 = vmul.f32 %v37, %v37
    %v40 = vmul.f32 %v38, %v38
    %v41 = vsel %vm27, %v39, 0.0
    %42 = vadd.xlane.f32.xlu0 %v41
    %v43 = vpop.xlane.xlu0 %42
    %v44 = vsel %vm27, %v40, 0.0
    %45 = vadd.xlane.f32.xlu0 %v44
    %v46 = vpop.xlane.xlu0 %45
    %v47 = vmul.f32 %v43, %v34
    %v48 = vmul.f32 %v46, %v34
    %v49 = vadd.f32 %v47, 1e-05
    %v50 = vadd.f32 %v48, 1e-05
    %v51 = vrsqrt.pop %v49
    %v52 = vrsqrt.pop %v50
    %v53 = vmul.f32 %v37, %v51
    %v54 = vmul.f32 %v38, %v52
    %v55 = vlaneseq
    %v56 = vshrl.u32 %v55, 7
    %v57 = vsub.s32 0, %v56
    %v58 = vrot.slane %v26, %v57
    %v59 = vmul.f32 %v53, %v58
    %v60 = vmul.f32 %v54, %v58
    %v61 = vlaneseq
    %v62 = vshrl.u32 %v61, 7
    %v63 = vsub.s32 1, %v62
    %v64 = vrot.slane %v26, %v63
    %v65 = vadd.f32 %v59, %v64
    %v66 = vadd.f32 %v60, %v64
    %v67 = vld [vmem:[%s1] sm:$0xff]
    %v68 = vld [vmem:[%s1 + $0x8] sm:$0xff]
    %v69 = vld [vmem:[%s1 + $0x10] sm:$0xff]
    %v70 = vld [vmem:[%s1 + $0x18] sm:$0xff]
    %v72 = vsel %vm27, %v65, 0
    %v75 = vsel %vm27, %v66, 0
    %77 = vmatprep.subr.mxu0 0.0
    %78 = vmatpush1.msra.mxu0 %v67
    %79 = vmatprep.subr.mxu0 0.0
    %80 = vmatpush1.msra.mxu0 %v68
    %81 = vmatprep.subr.mxu0 0.0
    %82 = vmatpush1.msra.mxu0 %v69
    %83 = vmatprep.subr.mxu0 0.0
    %84 = vmatpush1.msra.mxu0 %v70
    %85 = vmatprep.subr.mxu0 0.0
    %86 = vmatpush1.msra.mxu0 0.0
    %87 = vmatprep.subr.mxu0 0.0
    %88 = vmatpush1.msra.mxu0 0.0
    %89 = vmatprep.subr.mxu0 0.0
    %90 = vmatpush1.msra.mxu0 0.0
    %91 = vmatprep.subr.mxu0 0.0
    %92 = vmatpush1.msra.mxu0 0.0
    %93 = vmatprep.subr.mxu0 0.0
    %94 = vmatpush1.msra.mxu0 0.0
    %95 = vmatprep.subr.mxu0 0.0
    %96 = vmatpush1.msra.mxu0 0.0
    %97 = vmatprep.subr.mxu0 0.0
    %98 = vmatpush1.msra.mxu0 0.0
    %99 = vmatprep.subr.mxu0 0.0
    %100 = vmatpush1.msra.mxu0 0.0
    %101 = vmatprep.subr.mxu0 0.0
    %102 = vmatpush1.msra.mxu0 0.0
    %103 = vmatprep.subr.mxu0 0.0
    %104 = vmatpush1.msra.mxu0 0.0
    %105 = vmatprep.subr.mxu0 0.0
    %106 = vmatpush1.msra.mxu0 0.0
    %107 = vmatprep.subr.mxu0 0.0
    %108 = vmatpush1.msra.mxu0 0.0
    %109 = vmatprep.subr.mxu0 0.0
    %110 = vmatpush1.msra.mxu0 0.0
    %111 = vmatprep.subr.mxu0 0.0
    %112 = vmatpush1.msra.mxu0 0.0
    %113 = vmatprep.subr.mxu0 0.0
    %114 = vmatpush1.msra.mxu0 0.0
    %115 = vmatprep.subr.mxu0 0.0
    %116 = vmatpush1.msra.mxu0 0.0
    %117 = vmatprep.subr.mxu0 0.0
    %118 = vmatpush1.msra.mxu0 0.0
    %119 = vmatprep.subr.mxu0 0.0
    %120 = vmatpush1.msra.mxu0 0.0
    %121 = vmatprep.subr.mxu0 0.0
    %122 = vmatpush1.msra.mxu0 0.0
    %123 = vmatprep.subr.mxu0 0.0
    %124 = vmatpush1.msra.mxu0 0.0
    %125 = vmatprep.subr.mxu0 0.0
    %126 = vmatpush1.msra.mxu0 0.0
    %127 = vmatprep.subr.mxu0 0.0
    %128 = vmatpush1.msra.mxu0 0.0
    %129 = vmatprep.subr.mxu0 0.0
    %130 = vmatpush1.msra.mxu0 0.0
    %131 = vmatprep.subr.mxu0 0.0
    %132 = vmatpush1.msra.mxu0 0.0
    %133 = vmatprep.subr.mxu0 0.0
    %134 = vmatpush1.msra.mxu0 0.0
    %135 = vmatprep.subr.mxu0 0.0
    %136 = vmatpush1.msra.mxu0 0.0
    %137 = vmatprep.subr.mxu0 0.0
    %138 = vmatpush1.msra.mxu0 0.0
    %139 = vmatprep.subr.mxu0 0.0
    %140 = vmatpush1.msra.mxu0 0.0
    %141 = vmatprep.mubr.f32.mxu0 0.0
    %142 = vmatmul.mubr.f32.gmra.mrb[0].mxu0 %v72
    %v143 = vpop.f32.mrb[0].mxu0
    %v144 = vadd.f32 0.0, %v143
    %v145 = vpop.f32.mrb[0].mxu0
    %146 = vmatprep.mubr.f32.mxu0 0.0
    %147 = vmatmul.mubr.f32.gmra.mrb[0].mxu0 %v75
    %v148 = vpop.f32.mrb[0].mxu0
    %v149 = vadd.f32 0.0, %v148
    %v150 = vpop.f32.mrb[0].mxu0
    %151 = vdwg.mxu0
    %153 = vrot.lane.b32.xlu0 %v144, 96
    %v154 = vpop.permute.xlu0 %153
    %vm155 = vcmask 64512
    %v156 = vsel %vm155, %v144, 0
    %v158 = vsel %vm155, %v154, 0
    %160 = vmatprep.subr.mxu0 0.0
    %161 = vmatpush1.xpose.msra.mxu0 %v158
    %162 = vmatprep.subr.mxu0 0.0
    %163 = vmatpush1.xpose.msra.mxu0 0.0
    %164 = vmatprep.subr.mxu0 0.0
    %165 = vmatpush1.xpose.msra.mxu0 0.0
    %166 = vmatprep.subr.mxu0 0.0
    %167 = vmatpush1.xpose.msra.mxu0 0.0
    %168 = vmatprep.subr.mxu0 0.0
    %169 = vmatpush1.xpose.msra.mxu0 0.0
    %170 = vmatprep.subr.mxu0 0.0
    %171 = vmatpush1.xpose.msra.mxu0 0.0
    %172 = vmatprep.subr.mxu0 0.0
    %173 = vmatpush1.xpose.msra.mxu0 0.0
    %174 = vmatprep.subr.mxu0 0.0
    %175 = vmatpush1.xpose.msra.mxu0 0.0
    %176 = vmatprep.subr.mxu0 0.0
    %177 = vmatpush1.xpose.msra.mxu0 0.0
    %178 = vmatprep.subr.mxu0 0.0
    %179 = vmatpush1.xpose.msra.mxu0 0.0
    %180 = vmatprep.subr.mxu0 0.0
    %181 = vmatpush1.xpose.msra.mxu0 0.0
    %182 = vmatprep.subr.mxu0 0.0
    %183 = vmatpush1.xpose.msra.mxu0 0.0
    %184 = vmatprep.subr.mxu0 0.0
    %185 = vmatpush1.xpose.msra.mxu0 0.0
    %186 = vmatprep.subr.mxu0 0.0
    %187 = vmatpush1.xpose.msra.mxu0 0.0
    %188 = vmatprep.subr.mxu0 0.0
    %189 = vmatpush1.xpose.msra.mxu0 0.0
    %190 = vmatprep.subr.mxu0 0.0
    %191 = vmatpush1.xpose.msra.mxu0 0.0
    %192 = vmatprep.subr.mxu0 0.0
    %193 = vmatpush1.xpose.msra.mxu0 0.0
    %194 = vmatprep.subr.mxu0 0.0
    %195 = vmatpush1.xpose.msra.mxu0 0.0
    %196 = vmatprep.subr.mxu0 0.0
    %197 = vmatpush1.xpose.msra.mxu0 0.0
    %198 = vmatprep.subr.mxu0 0.0
    %199 = vmatpush1.xpose.msra.mxu0 0.0
    %200 = vmatprep.subr.mxu0 0.0
    %201 = vmatpush1.xpose.msra.mxu0 0.0
    %202 = vmatprep.subr.mxu0 0.0
    %203 = vmatpush1.xpose.msra.mxu0 0.0
    %204 = vmatprep.subr.mxu0 0.0
    %205 = vmatpush1.xpose.msra.mxu0 0.0
    %206 = vmatprep.subr.mxu0 0.0
    %207 = vmatpush1.xpose.msra.mxu0 0.0
    %208 = vmatprep.subr.mxu0 0.0
    %209 = vmatpush1.xpose.msra.mxu0 0.0
    %210 = vmatprep.subr.mxu0 0.0
    %211 = vmatpush1.xpose.msra.mxu0 0.0
    %212 = vmatprep.subr.mxu0 0.0
    %213 = vmatpush1.xpose.msra.mxu0 0.0
    %214 = vmatprep.subr.mxu0 0.0
    %215 = vmatpush1.xpose.msra.mxu0 0.0
    %216 = vmatprep.subr.mxu0 0.0
    %217 = vmatpush1.xpose.msra.mxu0 0.0
    %218 = vmatprep.subr.mxu0 0.0
    %219 = vmatpush1.xpose.msra.mxu0 0.0
    %220 = vmatprep.subr.mxu0 0.0
    %221 = vmatpush1.xpose.msra.mxu0 0.0
    %222 = vmatprep.subr.mxu0 0.0
    %223 = vmatpush1.xpose.msra.mxu0 0.0
    %224 = vmatprep.mubr.f32.mxu0 0.0
    %225 = vmatmul.mubr.f32.gmra.mrb[0].mxu0 %v156
    %v226 = vpop.f32.mrb[0].mxu0
    %v227 = vadd.f32 0.0, %v226
    %v228 = vpop.f32.mrb[0].mxu0
    %229 = vdwg.mxu0
    %231 = vrot.lane.b32.xlu0 %v149, 96
    %v232 = vpop.permute.xlu0 %231
    %v233 = vsel %vm155, %v149, 0
    %v235 = vsel %vm155, %v232, 0
    %237 = vmatprep.subr.mxu0 0.0
    %238 = vmatpush1.xpose.msra.mxu0 %v235
    %239 = vmatprep.subr.mxu0 0.0
    %240 = vmatpush1.xpose.msra.mxu0 0.0
    %241 = vmatprep.subr.mxu0 0.0
    %242 = vmatpush1.xpose.msra.mxu0 0.0
    %243 = vmatprep.subr.mxu0 0.0
    %244 = vmatpush1.xpose.msra.mxu0 0.0
    %245 = vmatprep.subr.mxu0 0.0
    %246 = vmatpush1.xpose.msra.mxu0 0.0
    %247 = vmatprep.subr.mxu0 0.0
    %248 = vmatpush1.xpose.msra.mxu0 0.0
    %249 = vmatprep.subr.mxu0 0.0
    %250 = vmatpush1.xpose.msra.mxu0 0.0
    %251 = vmatprep.subr.mxu0 0.0
    %252 = vmatpush1.xpose.msra.mxu0 0.0
    %253 = vmatprep.subr.mxu0 0.0
    %254 = vmatpush1.xpose.msra.mxu0 0.0
    %255 = vmatprep.subr.mxu0 0.0
    %256 = vmatpush1.xpose.msra.mxu0 0.0
    %257 = vmatprep.subr.mxu0 0.0
    %258 = vmatpush1.xpose.msra.mxu0 0.0
    %259 = vmatprep.subr.mxu0 0.0
    %260 = vmatpush1.xpose.msra.mxu0 0.0
    %261 = vmatprep.subr.mxu0 0.0
    %262 = vmatpush1.xpose.msra.mxu0 0.0
    %263 = vmatprep.subr.mxu0 0.0
    %264 = vmatpush1.xpose.msra.mxu0 0.0
    %265 = vmatprep.subr.mxu0 0.0
    %266 = vmatpush1.xpose.msra.mxu0 0.0
    %267 = vmatprep.subr.mxu0 0.0
    %268 = vmatpush1.xpose.msra.mxu0 0.0
    %269 = vmatprep.subr.mxu0 0.0
    %270 = vmatpush1.xpose.msra.mxu0 0.0
    %271 = vmatprep.subr.mxu0 0.0
    %272 = vmatpush1.xpose.msra.mxu0 0.0
    %273 = vmatprep.subr.mxu0 0.0
    %274 = vmatpush1.xpose.msra.mxu0 0.0
    %275 = vmatprep.subr.mxu0 0.0
    %276 = vmatpush1.xpose.msra.mxu0 0.0
    %277 = vmatprep.subr.mxu0 0.0
    %278 = vmatpush1.xpose.msra.mxu0 0.0
    %279 = vmatprep.subr.mxu0 0.0
    %280 = vmatpush1.xpose.msra.mxu0 0.0
    %281 = vmatprep.subr.mxu0 0.0
    %282 = vmatpush1.xpose.msra.mxu0 0.0
    %283 = vmatprep.subr.mxu0 0.0
    %284 = vmatpush1.xpose.msra.mxu0 0.0
    %285 = vmatprep.subr.mxu0 0.0
    %286 = vmatpush1.xpose.msra.mxu0 0.0
    %287 = vmatprep.subr.mxu0 0.0
    %288 = vmatpush1.xpose.msra.mxu0 0.0
    %289 = vmatprep.subr.mxu0 0.0
    %290 = vmatpush1.xpose.msra.mxu0 0.0
    %291 = vmatprep.subr.mxu0 0.0
    %292 = vmatpush1.xpose.msra.mxu0 0.0
    %293 = vmatprep.subr.mxu0 0.0
    %294 = vmatpush1.xpose.msra.mxu0 0.0
    %295 = vmatprep.subr.mxu0 0.0
    %296 = vmatpush1.xpose.msra.mxu0 0.0
    %297 = vmatprep.subr.mxu0 0.0
    %298 = vmatpush1.xpose.msra.mxu0 0.0
    %299 = vmatprep.subr.mxu0 0.0
    %300 = vmatpush1.xpose.msra.mxu0 0.0
    %301 = vmatprep.mubr.f32.mxu0 0.0
    %302 = vmatmul.mubr.f32.gmra.mrb[0].mxu0 %v233
    %v303 = vpop.f32.mrb[0].mxu0
    %v304 = vadd.f32 0.0, %v303
    %v305 = vpop.f32.mrb[0].mxu0
    %306 = vdwg.mxu0
    %v307 = vmul.f32 %v227, 0.35355338
    %v308 = vmul.f32 %v304, 0.35355338
    %v309 = vsel %vm155, %v307, -inf
    %310 = vmax.xlane.f32.xlu0 %v309
    %v311 = vpop.xlane.xlu0 %310
    %v312 = vsel %vm155, %v308, -inf
    %313 = vmax.xlane.f32.xlu0 %v312
    %v314 = vpop.xlane.xlu0 %313
    %v315 = vsub.f32 %v307, %v311
    %v316 = vsub.f32 %v308, %v314
    %v317 = vmul.f32 %v315, 1.442695
    %v318 = vpow.pop %v317
    %v319 = vmul.f32 %v316, 1.442695
    %v320 = vpow.pop %v319
    %v321 = vsel %vm155, %v318, 0.0
    %322 = vadd.xlane.f32.xlu0 %v321
    %v323 = vpop.xlane.xlu0 %322
    %v324 = vsel %vm155, %v320, 0.0
    %325 = vadd.xlane.f32.xlu0 %v324
    %v326 = vpop.xlane.xlu0 %325
    %v327 = vrcp.pop %v323
    %v328 = vmul.f32 %v318, %v327
    %v329 = vrcp.pop %v326
    %v330 = vmul.f32 %v320, %v329
    %331 = vrot.lane.b32.xlu0 %v144, 64
    %v332 = vpop.permute.xlu0 %331
    %v335 = vsel %vm155, %v328, 0
    %337 = vmatprep.subr.mxu0 0.0
    %338 = vmatpush1.msra.mxu0 %v332
    %339 = vmatprep.subr.mxu0 0.0
    %340 = vmatpush1.msra.mxu0 0.0
    %341 = vmatprep.subr.mxu0 0.0
    %342 = vmatpush1.msra.mxu0 0.0
    %343 = vmatprep.subr.mxu0 0.0
    %344 = vmatpush1.msra.mxu0 0.0
    %345 = vmatprep.subr.mxu0 0.0
    %346 = vmatpush1.msra.mxu0 0.0
    %347 = vmatprep.subr.mxu0 0.0
    %348 = vmatpush1.msra.mxu0 0.0
    %349 = vmatprep.subr.mxu0 0.0
    %350 = vmatpush1.msra.mxu0 0.0
    %351 = vmatprep.subr.mxu0 0.0
    %352 = vmatpush1.msra.mxu0 0.0
    %353 = vmatprep.subr.mxu0 0.0
    %354 = vmatpush1.msra.mxu0 0.0
    %355 = vmatprep.subr.mxu0 0.0
    %356 = vmatpush1.msra.mxu0 0.0
    %357 = vmatprep.subr.mxu0 0.0
    %358 = vmatpush1.msra.mxu0 0.0
    %359 = vmatprep.subr.mxu0 0.0
    %360 = vmatpush1.msra.mxu0 0.0
    %361 = vmatprep.subr.mxu0 0.0
    %362 = vmatpush1.msra.mxu0 0.0
    %363 = vmatprep.subr.mxu0 0.0
    %364 = vmatpush1.msra.mxu0 0.0
    %365 = vmatprep.subr.mxu0 0.0
    %366 = vmatpush1.msra.mxu0 0.0
    %367 = vmatprep.subr.mxu0 0.0
    %368 = vmatpush1.msra.mxu0 0.0
    %369 = vmatprep.subr.mxu0 0.0
    %370 = vmatpush1.msra.mxu0 0.0
    %371 = vmatprep.subr.mxu0 0.0
    %372 = vmatpush1.msra.mxu0 0.0
    %373 = vmatprep.subr.mxu0 0.0
    %374 = vmatpush1.msra.mxu0 0.0
    %375 = vmatprep.subr.mxu0 0.0
    %376 = vmatpush1.msra.mxu0 0.0
    %377 = vmatprep.subr.mxu0 0.0
    %378 = vmatpush1.msra.mxu0 0.0
    %379 = vmatprep.subr.mxu0 0.0
    %380 = vmatpush1.msra.mxu0 0.0
    %381 = vmatprep.subr.mxu0 0.0
    %382 = vmatpush1.msra.mxu0 0.0
    %383 = vmatprep.subr.mxu0 0.0
    %384 = vmatpush1.msra.mxu0 0.0
    %385 = vmatprep.subr.mxu0 0.0
    %386 = vmatpush1.msra.mxu0 0.0
    %387 = vmatprep.subr.mxu0 0.0
    %388 = vmatpush1.msra.mxu0 0.0
    %389 = vmatprep.subr.mxu0 0.0
    %390 = vmatpush1.msra.mxu0 0.0
    %391 = vmatprep.subr.mxu0 0.0
    %392 = vmatpush1.msra.mxu0 0.0
    %393 = vmatprep.subr.mxu0 0.0
    %394 = vmatpush1.msra.mxu0 0.0
    %395 = vmatprep.subr.mxu0 0.0
    %396 = vmatpush1.msra.mxu0 0.0
    %397 = vmatprep.subr.mxu0 0.0
    %398 = vmatpush1.msra.mxu0 0.0
    %399 = vmatprep.subr.mxu0 0.0
    %400 = vmatpush1.msra.mxu0 0.0
    %401 = vmatprep.mubr.f32.mxu0 0.0
    %402 = vmatmul.mubr.f32.gmra.mrb[0].mxu0 %v335
    %v403 = vpop.f32.mrb[0].mxu0
    %v404 = vadd.f32 0.0, %v403
    %v405 = vpop.f32.mrb[0].mxu0
    %406 = vdwg.mxu0
    %407 = vrot.lane.b32.xlu0 %v149, 64
    %v408 = vpop.permute.xlu0 %407
    %v411 = vsel %vm155, %v330, 0
    %413 = vmatprep.subr.mxu0 0.0
    %414 = vmatpush1.msra.mxu0 %v408
    %415 = vmatprep.subr.mxu0 0.0
    %416 = vmatpush1.msra.mxu0 0.0
    %417 = vmatprep.subr.mxu0 0.0
    %418 = vmatpush1.msra.mxu0 0.0
    %419 = vmatprep.subr.mxu0 0.0
    %420 = vmatpush1.msra.mxu0 0.0
    %421 = vmatprep.subr.mxu0 0.0
    %422 = vmatpush1.msra.mxu0 0.0
    %423 = vmatprep.subr.mxu0 0.0
    %424 = vmatpush1.msra.mxu0 0.0
    %425 = vmatprep.subr.mxu0 0.0
    %426 = vmatpush1.msra.mxu0 0.0
    %427 = vmatprep.subr.mxu0 0.0
    %428 = vmatpush1.msra.mxu0 0.0
    %429 = vmatprep.subr.mxu0 0.0
    %430 = vmatpush1.msra.mxu0 0.0
    %431 = vmatprep.subr.mxu0 0.0
    %432 = vmatpush1.msra.mxu0 0.0
    %433 = vmatprep.subr.mxu0 0.0
    %434 = vmatpush1.msra.mxu0 0.0
    %435 = vmatprep.subr.mxu0 0.0
    %436 = vmatpush1.msra.mxu0 0.0
    %437 = vmatprep.subr.mxu0 0.0
    %438 = vmatpush1.msra.mxu0 0.0
    %439 = vmatprep.subr.mxu0 0.0
    %440 = vmatpush1.msra.mxu0 0.0
    %441 = vmatprep.subr.mxu0 0.0
    %442 = vmatpush1.msra.mxu0 0.0
    %443 = vmatprep.subr.mxu0 0.0
    %444 = vmatpush1.msra.mxu0 0.0
    %445 = vmatprep.subr.mxu0 0.0
    %446 = vmatpush1.msra.mxu0 0.0
    %447 = vmatprep.subr.mxu0 0.0
    %448 = vmatpush1.msra.mxu0 0.0
    %449 = vmatprep.subr.mxu0 0.0
    %450 = vmatpush1.msra.mxu0 0.0
    %451 = vmatprep.subr.mxu0 0.0
    %452 = vmatpush1.msra.mxu0 0.0
    %453 = vmatprep.subr.mxu0 0.0
    %454 = vmatpush1.msra.mxu0 0.0
    %455 = vmatprep.subr.mxu0 0.0
    %456 = vmatpush1.msra.mxu0 0.0
    %457 = vmatprep.subr.mxu0 0.0
    %458 = vmatpush1.msra.mxu0 0.0
    %459 = vmatprep.subr.mxu0 0.0
    %460 = vmatpush1.msra.mxu0 0.0
    %461 = vmatprep.subr.mxu0 0.0
    %462 = vmatpush1.msra.mxu0 0.0
    %463 = vmatprep.subr.mxu0 0.0
    %464 = vmatpush1.msra.mxu0 0.0
    %465 = vmatprep.subr.mxu0 0.0
    %466 = vmatpush1.msra.mxu0 0.0
    %467 = vmatprep.subr.mxu0 0.0
    %468 = vmatpush1.msra.mxu0 0.0
    %469 = vmatprep.subr.mxu0 0.0
    %470 = vmatpush1.msra.mxu0 0.0
    %471 = vmatprep.subr.mxu0 0.0
    %472 = vmatpush1.msra.mxu0 0.0
    %473 = vmatprep.subr.mxu0 0.0
    %474 = vmatpush1.msra.mxu0 0.0
    %475 = vmatprep.subr.mxu0 0.0
    %476 = vmatpush1.msra.mxu0 0.0
    %477 = vmatprep.mubr.f32.mxu0 0.0
    %478 = vmatmul.mubr.f32.gmra.mrb[0].mxu0 %v411
    %v479 = vpop.f32.mrb[0].mxu0
    %v480 = vadd.f32 0.0, %v479
    %v481 = vpop.f32.mrb[0].mxu0
    %482 = vdwg.mxu0
    %483 = vrot.lane.b32.xlu0 %v144, 120
    %v484 = vpop.permute.xlu0 %483
    %485 = vrot.lane.b32.xlu0 %v144, 88
    %v486 = vpop.permute.xlu0 %485
    %v487 = vsel %vm155, %v484, 0
    %v489 = vsel %vm155, %v486, 0
    %491 = vmatprep.subr.mxu0 0.0
    %492 = vmatpush1.xpose.msra.mxu0 %v489
    %493 = vmatprep.subr.mxu0 0.0
    %494 = vmatpush1.xpose.msra.mxu0 0.0
    %495 = vmatprep.subr.mxu0 0.0
    %496 = vmatpush1.xpose.msra.mxu0 0.0
    %497 = vmatprep.subr.mxu0 0.0
    %498 = vmatpush1.xpose.msra.mxu0 0.0
    %499 = vmatprep.subr.mxu0 0.0
    %500 = vmatpush1.xpose.msra.mxu0 0.0
    %501 = vmatprep.subr.mxu0 0.0
    %502 = vmatpush1.xpose.msra.mxu0 0.0
    %503 = vmatprep.subr.mxu0 0.0
    %504 = vmatpush1.xpose.msra.mxu0 0.0
    %505 = vmatprep.subr.mxu0 0.0
    %506 = vmatpush1.xpose.msra.mxu0 0.0
    %507 = vmatprep.subr.mxu0 0.0
    %508 = vmatpush1.xpose.msra.mxu0 0.0
    %509 = vmatprep.subr.mxu0 0.0
    %510 = vmatpush1.xpose.msra.mxu0 0.0
    %511 = vmatprep.subr.mxu0 0.0
    %512 = vmatpush1.xpose.msra.mxu0 0.0
    %513 = vmatprep.subr.mxu0 0.0
    %514 = vmatpush1.xpose.msra.mxu0 0.0
    %515 = vmatprep.subr.mxu0 0.0
    %516 = vmatpush1.xpose.msra.mxu0 0.0
    %517 = vmatprep.subr.mxu0 0.0
    %518 = vmatpush1.xpose.msra.mxu0 0.0
    %519 = vmatprep.subr.mxu0 0.0
    %520 = vmatpush1.xpose.msra.mxu0 0.0
    %521 = vmatprep.subr.mxu0 0.0
    %522 = vmatpush1.xpose.msra.mxu0 0.0
    %523 = vmatprep.subr.mxu0 0.0
    %524 = vmatpush1.xpose.msra.mxu0 0.0
    %525 = vmatprep.subr.mxu0 0.0
    %526 = vmatpush1.xpose.msra.mxu0 0.0
    %527 = vmatprep.subr.mxu0 0.0
    %528 = vmatpush1.xpose.msra.mxu0 0.0
    %529 = vmatprep.subr.mxu0 0.0
    %530 = vmatpush1.xpose.msra.mxu0 0.0
    %531 = vmatprep.subr.mxu0 0.0
    %532 = vmatpush1.xpose.msra.mxu0 0.0
    %533 = vmatprep.subr.mxu0 0.0
    %534 = vmatpush1.xpose.msra.mxu0 0.0
    %535 = vmatprep.subr.mxu0 0.0
    %536 = vmatpush1.xpose.msra.mxu0 0.0
    %537 = vmatprep.subr.mxu0 0.0
    %538 = vmatpush1.xpose.msra.mxu0 0.0
    %539 = vmatprep.subr.mxu0 0.0
    %540 = vmatpush1.xpose.msra.mxu0 0.0
    %541 = vmatprep.subr.mxu0 0.0
    %542 = vmatpush1.xpose.msra.mxu0 0.0
    %543 = vmatprep.subr.mxu0 0.0
    %544 = vmatpush1.xpose.msra.mxu0 0.0
    %545 = vmatprep.subr.mxu0 0.0
    %546 = vmatpush1.xpose.msra.mxu0 0.0
    %547 = vmatprep.subr.mxu0 0.0
    %548 = vmatpush1.xpose.msra.mxu0 0.0
    %549 = vmatprep.subr.mxu0 0.0
    %550 = vmatpush1.xpose.msra.mxu0 0.0
    %551 = vmatprep.subr.mxu0 0.0
    %552 = vmatpush1.xpose.msra.mxu0 0.0
    %553 = vmatprep.subr.mxu0 0.0
    %554 = vmatpush1.xpose.msra.mxu0 0.0
    %555 = vmatprep.mubr.f32.mxu0 0.0
    %556 = vmatmul.mubr.f32.gmra.mrb[0].mxu0 %v487
    %v557 = vpop.f32.mrb[0].mxu0
    %v558 = vadd.f32 0.0, %v557
    %v559 = vpop.f32.mrb[0].mxu0
    %560 = vdwg.mxu0
    %561 = vrot.lane.b32.xlu0 %v149, 120
    %v562 = vpop.permute.xlu0 %561
    %563 = vrot.lane.b32.xlu0 %v149, 88
    %v564 = vpop.permute.xlu0 %563
    %v565 = vsel %vm155, %v562, 0
    %v567 = vsel %vm155, %v564, 0
    %569 = vmatprep.subr.mxu0 0.0
    %570 = vmatpush1.xpose.msra.mxu0 %v567
    %571 = vmatprep.subr.mxu0 0.0
    %572 = vmatpush1.xpose.msra.mxu0 0.0
    %573 = vmatprep.subr.mxu0 0.0
    %574 = vmatpush1.xpose.msra.mxu0 0.0
    %575 = vmatprep.subr.mxu0 0.0
    %576 = vmatpush1.xpose.msra.mxu0 0.0
    %577 = vmatprep.subr.mxu0 0.0
    %578 = vmatpush1.xpose.msra.mxu0 0.0
    %579 = vmatprep.subr.mxu0 0.0
    %580 = vmatpush1.xpose.msra.mxu0 0.0
    %581 = vmatprep.subr.mxu0 0.0
    %582 = vmatpush1.xpose.msra.mxu0 0.0
    %583 = vmatprep.subr.mxu0 0.0
    %584 = vmatpush1.xpose.msra.mxu0 0.0
    %585 = vmatprep.subr.mxu0 0.0
    %586 = vmatpush1.xpose.msra.mxu0 0.0
    %587 = vmatprep.subr.mxu0 0.0
    %588 = vmatpush1.xpose.msra.mxu0 0.0
    %589 = vmatprep.subr.mxu0 0.0
    %590 = vmatpush1.xpose.msra.mxu0 0.0
    %591 = vmatprep.subr.mxu0 0.0
    %592 = vmatpush1.xpose.msra.mxu0 0.0
    %593 = vmatprep.subr.mxu0 0.0
    %594 = vmatpush1.xpose.msra.mxu0 0.0
    %595 = vmatprep.subr.mxu0 0.0
    %596 = vmatpush1.xpose.msra.mxu0 0.0
    %597 = vmatprep.subr.mxu0 0.0
    %598 = vmatpush1.xpose.msra.mxu0 0.0
    %599 = vmatprep.subr.mxu0 0.0
    %600 = vmatpush1.xpose.msra.mxu0 0.0
    %601 = vmatprep.subr.mxu0 0.0
    %602 = vmatpush1.xpose.msra.mxu0 0.0
    %603 = vmatprep.subr.mxu0 0.0
    %604 = vmatpush1.xpose.msra.mxu0 0.0
    %605 = vmatprep.subr.mxu0 0.0
    %606 = vmatpush1.xpose.msra.mxu0 0.0
    %607 = vmatprep.subr.mxu0 0.0
    %608 = vmatpush1.xpose.msra.mxu0 0.0
    %609 = vmatprep.subr.mxu0 0.0
    %610 = vmatpush1.xpose.msra.mxu0 0.0
    %611 = vmatprep.subr.mxu0 0.0
    %612 = vmatpush1.xpose.msra.mxu0 0.0
    %613 = vmatprep.subr.mxu0 0.0
    %614 = vmatpush1.xpose.msra.mxu0 0.0
    %615 = vmatprep.subr.mxu0 0.0
    %616 = vmatpush1.xpose.msra.mxu0 0.0
    %617 = vmatprep.subr.mxu0 0.0
    %618 = vmatpush1.xpose.msra.mxu0 0.0
    %619 = vmatprep.subr.mxu0 0.0
    %620 = vmatpush1.xpose.msra.mxu0 0.0
    %621 = vmatprep.subr.mxu0 0.0
    %622 = vmatpush1.xpose.msra.mxu0 0.0
    %623 = vmatprep.subr.mxu0 0.0
    %624 = vmatpush1.xpose.msra.mxu0 0.0
    %625 = vmatprep.subr.mxu0 0.0
    %626 = vmatpush1.xpose.msra.mxu0 0.0
    %627 = vmatprep.subr.mxu0 0.0
    %628 = vmatpush1.xpose.msra.mxu0 0.0
    %629 = vmatprep.subr.mxu0 0.0
    %630 = vmatpush1.xpose.msra.mxu0 0.0
    %631 = vmatprep.subr.mxu0 0.0
    %632 = vmatpush1.xpose.msra.mxu0 0.0
    %633 = vmatprep.mubr.f32.mxu0 0.0
    %634 = vmatmul.mubr.f32.gmra.mrb[0].mxu0 %v565
    %v635 = vpop.f32.mrb[0].mxu0
    %v636 = vadd.f32 0.0, %v635
    %v637 = vpop.f32.mrb[0].mxu0
    %638 = vdwg.mxu0
    %v639 = vmul.f32 %v558, 0.35355338
    %v640 = vmul.f32 %v636, 0.35355338
    %v641 = vsel %vm155, %v639, -inf
    %642 = vmax.xlane.f32.xlu0 %v641
    %v643 = vpop.xlane.xlu0 %642
    %v644 = vsel %vm155, %v640, -inf
    %645 = vmax.xlane.f32.xlu0 %v644
    %v646 = vpop.xlane.xlu0 %645
    %v647 = vsub.f32 %v639, %v643
    %v648 = vsub.f32 %v640, %v646
    %v649 = vmul.f32 %v647, 1.442695
    %v650 = vpow.pop %v649
    %v651 = vmul.f32 %v648, 1.442695
    %v652 = vpow.pop %v651
    %v653 = vsel %vm155, %v650, 0.0
    %654 = vadd.xlane.f32.xlu0 %v653
    %v655 = vpop.xlane.xlu0 %654
    %v656 = vsel %vm155, %v652, 0.0
    %657 = vadd.xlane.f32.xlu0 %v656
    %v658 = vpop.xlane.xlu0 %657
    %v659 = vrcp.pop %v655
    %v660 = vmul.f32 %v650, %v659
    %v661 = vrcp.pop %v658
    %v662 = vmul.f32 %v652, %v661
    %663 = vrot.lane.b32.xlu0 %v144, 56
    %v664 = vpop.permute.xlu0 %663
    %v667 = vsel %vm155, %v660, 0
    %669 = vmatprep.subr.mxu0 0.0
    %670 = vmatpush1.msra.mxu0 %v664
    %671 = vmatprep.subr.mxu0 0.0
    %672 = vmatpush1.msra.mxu0 0.0
    %673 = vmatprep.subr.mxu0 0.0
    %674 = vmatpush1.msra.mxu0 0.0
    %675 = vmatprep.subr.mxu0 0.0
    %676 = vmatpush1.msra.mxu0 0.0
    %677 = vmatprep.subr.mxu0 0.0
    %678 = vmatpush1.msra.mxu0 0.0
    %679 = vmatprep.subr.mxu0 0.0
    %680 = vmatpush1.msra.mxu0 0.0
    %681 = vmatprep.subr.mxu0 0.0
    %682 = vmatpush1.msra.mxu0 0.0
    %683 = vmatprep.subr.mxu0 0.0
    %684 = vmatpush1.msra.mxu0 0.0
    %685 = vmatprep.subr.mxu0 0.0
    %686 = vmatpush1.msra.mxu0 0.0
    %687 = vmatprep.subr.mxu0 0.0
    %688 = vmatpush1.msra.mxu0 0.0
    %689 = vmatprep.subr.mxu0 0.0
    %690 = vmatpush1.msra.mxu0 0.0
    %691 = vmatprep.subr.mxu0 0.0
    %692 = vmatpush1.msra.mxu0 0.0
    %693 = vmatprep.subr.mxu0 0.0
    %694 = vmatpush1.msra.mxu0 0.0
    %695 = vmatprep.subr.mxu0 0.0
    %696 = vmatpush1.msra.mxu0 0.0
    %697 = vmatprep.subr.mxu0 0.0
    %698 = vmatpush1.msra.mxu0 0.0
    %699 = vmatprep.subr.mxu0 0.0
    %700 = vmatpush1.msra.mxu0 0.0
    %701 = vmatprep.subr.mxu0 0.0
    %702 = vmatpush1.msra.mxu0 0.0
    %703 = vmatprep.subr.mxu0 0.0
    %704 = vmatpush1.msra.mxu0 0.0
    %705 = vmatprep.subr.mxu0 0.0
    %706 = vmatpush1.msra.mxu0 0.0
    %707 = vmatprep.subr.mxu0 0.0
    %708 = vmatpush1.msra.mxu0 0.0
    %709 = vmatprep.subr.mxu0 0.0
    %710 = vmatpush1.msra.mxu0 0.0
    %711 = vmatprep.subr.mxu0 0.0
    %712 = vmatpush1.msra.mxu0 0.0
    %713 = vmatprep.subr.mxu0 0.0
    %714 = vmatpush1.msra.mxu0 0.0
    %715 = vmatprep.subr.mxu0 0.0
    %716 = vmatpush1.msra.mxu0 0.0
    %717 = vmatprep.subr.mxu0 0.0
    %718 = vmatpush1.msra.mxu0 0.0
    %719 = vmatprep.subr.mxu0 0.0
    %720 = vmatpush1.msra.mxu0 0.0
    %721 = vmatprep.subr.mxu0 0.0
    %722 = vmatpush1.msra.mxu0 0.0
    %723 = vmatprep.subr.mxu0 0.0
    %724 = vmatpush1.msra.mxu0 0.0
    %725 = vmatprep.subr.mxu0 0.0
    %726 = vmatpush1.msra.mxu0 0.0
    %727 = vmatprep.subr.mxu0 0.0
    %728 = vmatpush1.msra.mxu0 0.0
    %729 = vmatprep.subr.mxu0 0.0
    %730 = vmatpush1.msra.mxu0 0.0
    %731 = vmatprep.subr.mxu0 0.0
    %732 = vmatpush1.msra.mxu0 0.0
    %733 = vmatprep.mubr.f32.mxu0 0.0
    %734 = vmatmul.mubr.f32.gmra.mrb[0].mxu0 %v667
    %v735 = vpop.f32.mrb[0].mxu0
    %v736 = vadd.f32 0.0, %v735
    %v737 = vpop.f32.mrb[0].mxu0
    %738 = vdwg.mxu0
    %739 = vrot.lane.b32.xlu0 %v149, 56
    %v740 = vpop.permute.xlu0 %739
    %v743 = vsel %vm155, %v662, 0
    %745 = vmatprep.subr.mxu0 0.0
    %746 = vmatpush1.msra.mxu0 %v740
    %747 = vmatprep.subr.mxu0 0.0
    %748 = vmatpush1.msra.mxu0 0.0
    %749 = vmatprep.subr.mxu0 0.0
    %750 = vmatpush1.msra.mxu0 0.0
    %751 = vmatprep.subr.mxu0 0.0
    %752 = vmatpush1.msra.mxu0 0.0
    %753 = vmatprep.subr.mxu0 0.0
    %754 = vmatpush1.msra.mxu0 0.0
    %755 = vmatprep.subr.mxu0 0.0
    %756 = vmatpush1.msra.mxu0 0.0
    %757 = vmatprep.subr.mxu0 0.0
    %758 = vmatpush1.msra.mxu0 0.0
    %759 = vmatprep.subr.mxu0 0.0
    %760 = vmatpush1.msra.mxu0 0.0
    %761 = vmatprep.subr.mxu0 0.0
    %762 = vmatpush1.msra.mxu0 0.0
    %763 = vmatprep.subr.mxu0 0.0
    %764 = vmatpush1.msra.mxu0 0.0
    %765 = vmatprep.subr.mxu0 0.0
    %766 = vmatpush1.msra.mxu0 0.0
    %767 = vmatprep.subr.mxu0 0.0
    %768 = vmatpush1.msra.mxu0 0.0
    %769 = vmatprep.subr.mxu0 0.0
    %770 = vmatpush1.msra.mxu0 0.0
    %771 = vmatprep.subr.mxu0 0.0
    %772 = vmatpush1.msra.mxu0 0.0
    %773 = vmatprep.subr.mxu0 0.0
    %774 = vmatpush1.msra.mxu0 0.0
    %775 = vmatprep.subr.mxu0 0.0
    %776 = vmatpush1.msra.mxu0 0.0
    %777 = vmatprep.subr.mxu0 0.0
    %778 = vmatpush1.msra.mxu0 0.0
    %779 = vmatprep.subr.mxu0 0.0
    %780 = vmatpush1.msra.mxu0 0.0
    %781 = vmatprep.subr.mxu0 0.0
    %782 = vmatpush1.msra.mxu0 0.0
    %783 = vmatprep.subr.mxu0 0.0
    %784 = vmatpush1.msra.mxu0 0.0
    %785 = vmatprep.subr.mxu0 0.0
    %786 = vmatpush1.msra.mxu0 0.0
    %787 = vmatprep.subr.mxu0 0.0
    %788 = vmatpush1.msra.mxu0 0.0
    %789 = vmatprep.subr.mxu0 0.0
    %790 = vmatpush1.msra.mxu0 0.0
    %791 = vmatprep.subr.mxu0 0.0
    %792 = vmatpush1.msra.mxu0 0.0
    %793 = vmatprep.subr.mxu0 0.0
    %794 = vmatpush1.msra.mxu0 0.0
    %795 = vmatprep.subr.mxu0 0.0
    %796 = vmatpush1.msra.mxu0 0.0
    %797 = vmatprep.subr.mxu0 0.0
    %798 = vmatpush1.msra.mxu0 0.0
    %799 = vmatprep.subr.mxu0 0.0
    %800 = vmatpush1.msra.mxu0 0.0
    %801 = vmatprep.subr.mxu0 0.0
    %802 = vmatpush1.msra.mxu0 0.0
    %803 = vmatprep.subr.mxu0 0.0
    %804 = vmatpush1.msra.mxu0 0.0
    %805 = vmatprep.subr.mxu0 0.0
    %806 = vmatpush1.msra.mxu0 0.0
    %807 = vmatprep.subr.mxu0 0.0
    %808 = vmatpush1.msra.mxu0 0.0
    %809 = vmatprep.mubr.f32.mxu0 0.0
    %810 = vmatmul.mubr.f32.gmra.mrb[0].mxu0 %v743
    %v811 = vpop.f32.mrb[0].mxu0
    %v812 = vadd.f32 0.0, %v811
    %v813 = vpop.f32.mrb[0].mxu0
    %814 = vdwg.mxu0
    %815 = vrot.lane.b32.xlu0 %v144, 112
    %v816 = vpop.permute.xlu0 %815
    %817 = vrot.lane.b32.xlu0 %v144, 80
    %v818 = vpop.permute.xlu0 %817
    %v819 = vsel %vm155, %v816, 0
    %v821 = vsel %vm155, %v818, 0
    %823 = vmatprep.subr.mxu0 0.0
    %824 = vmatpush1.xpose.msra.mxu0 %v821
    %825 = vmatprep.subr.mxu0 0.0
    %826 = vmatpush1.xpose.msra.mxu0 0.0
    %827 = vmatprep.subr.mxu0 0.0
    %828 = vmatpush1.xpose.msra.mxu0 0.0
    %829 = vmatprep.subr.mxu0 0.0
    %830 = vmatpush1.xpose.msra.mxu0 0.0
    %831 = vmatprep.subr.mxu0 0.0
    %832 = vmatpush1.xpose.msra.mxu0 0.0
    %833 = vmatprep.subr.mxu0 0.0
    %834 = vmatpush1.xpose.msra.mxu0 0.0
    %835 = vmatprep.subr.mxu0 0.0
    %836 = vmatpush1.xpose.msra.mxu0 0.0
    %837 = vmatprep.subr.mxu0 0.0
    %838 = vmatpush1.xpose.msra.mxu0 0.0
    %839 = vmatprep.subr.mxu0 0.0
    %840 = vmatpush1.xpose.msra.mxu0 0.0
    %841 = vmatprep.subr.mxu0 0.0
    %842 = vmatpush1.xpose.msra.mxu0 0.0
    %843 = vmatprep.subr.mxu0 0.0
    %844 = vmatpush1.xpose.msra.mxu0 0.0
    %845 = vmatprep.subr.mxu0 0.0
    %846 = vmatpush1.xpose.msra.mxu0 0.0
    %847 = vmatprep.subr.mxu0 0.0
    %848 = vmatpush1.xpose.msra.mxu0 0.0
    %849 = vmatprep.subr.mxu0 0.0
    %850 = vmatpush1.xpose.msra.mxu0 0.0
    %851 = vmatprep.subr.mxu0 0.0
    %852 = vmatpush1.xpose.msra.mxu0 0.0
    %853 = vmatprep.subr.mxu0 0.0
    %854 = vmatpush1.xpose.msra.mxu0 0.0
    %855 = vmatprep.subr.mxu0 0.0
    %856 = vmatpush1.xpose.msra.mxu0 0.0
    %857 = vmatprep.subr.mxu0 0.0
    %858 = vmatpush1.xpose.msra.mxu0 0.0
    %859 = vmatprep.subr.mxu0 0.0
    %860 = vmatpush1.xpose.msra.mxu0 0.0
    %861 = vmatprep.subr.mxu0 0.0
    %862 = vmatpush1.xpose.msra.mxu0 0.0
    %863 = vmatprep.subr.mxu0 0.0
    %864 = vmatpush1.xpose.msra.mxu0 0.0
    %865 = vmatprep.subr.mxu0 0.0
    %866 = vmatpush1.xpose.msra.mxu0 0.0
    %867 = vmatprep.subr.mxu0 0.0
    %868 = vmatpush1.xpose.msra.mxu0 0.0
    %869 = vmatprep.subr.mxu0 0.0
    %870 = vmatpush1.xpose.msra.mxu0 0.0
    %871 = vmatprep.subr.mxu0 0.0
    %872 = vmatpush1.xpose.msra.mxu0 0.0
    %873 = vmatprep.subr.mxu0 0.0
    %874 = vmatpush1.xpose.msra.mxu0 0.0
    %875 = vmatprep.subr.mxu0 0.0
    %876 = vmatpush1.xpose.msra.mxu0 0.0
    %877 = vmatprep.subr.mxu0 0.0
    %878 = vmatpush1.xpose.msra.mxu0 0.0
    %879 = vmatprep.subr.mxu0 0.0
    %880 = vmatpush1.xpose.msra.mxu0 0.0
    %881 = vmatprep.subr.mxu0 0.0
    %882 = vmatpush1.xpose.msra.mxu0 0.0
    %883 = vmatprep.subr.mxu0 0.0
    %884 = vmatpush1.xpose.msra.mxu0 0.0
    %885 = vmatprep.subr.mxu0 0.0
    %886 = vmatpush1.xpose.msra.mxu0 0.0
    %887 = vmatprep.mubr.f32.mxu0 0.0
    %888 = vmatmul.mubr.f32.gmra.mrb[0].mxu0 %v819
    %v889 = vpop.f32.mrb[0].mxu0
    %v890 = vadd.f32 0.0, %v889
    %v891 = vpop.f32.mrb[0].mxu0
    %892 = vdwg.mxu0
    %893 = vrot.lane.b32.xlu0 %v149, 112
    %v894 = vpop.permute.xlu0 %893
    %895 = vrot.lane.b32.xlu0 %v149, 80
    %v896 = vpop.permute.xlu0 %895
    %v897 = vsel %vm155, %v894, 0
    %v899 = vsel %vm155, %v896, 0
    %901 = vmatprep.subr.mxu0 0.0
    %902 = vmatpush1.xpose.msra.mxu0 %v899
    %903 = vmatprep.subr.mxu0 0.0
    %904 = vmatpush1.xpose.msra.mxu0 0.0
    %905 = vmatprep.subr.mxu0 0.0
    %906 = vmatpush1.xpose.msra.mxu0 0.0
    %907 = vmatprep.subr.mxu0 0.0
    %908 = vmatpush1.xpose.msra.mxu0 0.0
    %909 = vmatprep.subr.mxu0 0.0
    %910 = vmatpush1.xpose.msra.mxu0 0.0
    %911 = vmatprep.subr.mxu0 0.0
    %912 = vmatpush1.xpose.msra.mxu0 0.0
    %913 = vmatprep.subr.mxu0 0.0
    %914 = vmatpush1.xpose.msra.mxu0 0.0
    %915 = vmatprep.subr.mxu0 0.0
    %916 = vmatpush1.xpose.msra.mxu0 0.0
    %917 = vmatprep.subr.mxu0 0.0
    %918 = vmatpush1.xpose.msra.mxu0 0.0
    %919 = vmatprep.subr.mxu0 0.0
    %920 = vmatpush1.xpose.msra.mxu0 0.0
    %921 = vmatprep.subr.mxu0 0.0
    %922 = vmatpush1.xpose.msra.mxu0 0.0
    %923 = vmatprep.subr.mxu0 0.0
    %924 = vmatpush1.xpose.msra.mxu0 0.0
    %925 = vmatprep.subr.mxu0 0.0
    %926 = vmatpush1.xpose.msra.mxu0 0.0
    %927 = vmatprep.subr.mxu0 0.0
    %928 = vmatpush1.xpose.msra.mxu0 0.0
    %929 = vmatprep.subr.mxu0 0.0
    %930 = vmatpush1.xpose.msra.mxu0 0.0
    %931 = vmatprep.subr.mxu0 0.0
    %932 = vmatpush1.xpose.msra.mxu0 0.0
    %933 = vmatprep.subr.mxu0 0.0
    %934 = vmatpush1.xpose.msra.mxu0 0.0
    %935 = vmatprep.subr.mxu0 0.0
    %936 = vmatpush1.xpose.msra.mxu0 0.0
    %937 = vmatprep.subr.mxu0 0.0
    %938 = vmatpush1.xpose.msra.mxu0 0.0
    %939 = vmatprep.subr.mxu0 0.0
    %940 = vmatpush1.xpose.msra.mxu0 0.0
    %941 = vmatprep.subr.mxu0 0.0
    %942 = vmatpush1.xpose.msra.mxu0 0.0
    %943 = vmatprep.subr.mxu0 0.0
    %944 = vmatpush1.xpose.msra.mxu0 0.0
    %945 = vmatprep.subr.mxu0 0.0
    %946 = vmatpush1.xpose.msra.mxu0 0.0
    %947 = vmatprep.subr.mxu0 0.0
    %948 = vmatpush1.xpose.msra.mxu0 0.0
    %949 = vmatprep.subr.mxu0 0.0
    %950 = vmatpush1.xpose.msra.mxu0 0.0
    %951 = vmatprep.subr.mxu0 0.0
    %952 = vmatpush1.xpose.msra.mxu0 0.0
    %953 = vmatprep.subr.mxu0 0.0
    %954 = vmatpush1.xpose.msra.mxu0 0.0
    %955 = vmatprep.subr.mxu0 0.0
    %956 = vmatpush1.xpose.msra.mxu0 0.0
    %957 = vmatprep.subr.mxu0 0.0
    %958 = vmatpush1.xpose.msra.mxu0 0.0
    %959 = vmatprep.subr.mxu0 0.0
    %960 = vmatpush1.xpose.msra.mxu0 0.0
    %961 = vmatprep.subr.mxu0 0.0
    %962 = vmatpush1.xpose.msra.mxu0 0.0
    %963 = vmatprep.subr.mxu0 0.0
    %964 = vmatpush1.xpose.msra.mxu0 0.0
    %965 = vmatprep.mubr.f32.mxu0 0.0
    %966 = vmatmul.mubr.f32.gmra.mrb[0].mxu0 %v897
    %v967 = vpop.f32.mrb[0].mxu0
    %v968 = vadd.f32 0.0, %v967
    %v969 = vpop.f32.mrb[0].mxu0
    %970 = vdwg.mxu0
    %v971 = vmul.f32 %v890, 0.35355338
    %v972 = vmul.f32 %v968, 0.35355338
    %v973 = vsel %vm155, %v971, -inf
    %974 = vmax.xlane.f32.xlu0 %v973
    %v975 = vpop.xlane.xlu0 %974
    %v976 = vsel %vm155, %v972, -inf
    %977 = vmax.xlane.f32.xlu0 %v976
    %v978 = vpop.xlane.xlu0 %977
    %v979 = vsub.f32 %v971, %v975
    %v980 = vsub.f32 %v972, %v978
    %v981 = vmul.f32 %v979, 1.442695
    %v982 = vpow.pop %v981
    %v983 = vmul.f32 %v980, 1.442695
    %v984 = vpow.pop %v983
    %v985 = vsel %vm155, %v982, 0.0
    %986 = vadd.xlane.f32.xlu0 %v985
    %v987 = vpop.xlane.xlu0 %986
    %v988 = vsel %vm155, %v984, 0.0
    %989 = vadd.xlane.f32.xlu0 %v988
    %v990 = vpop.xlane.xlu0 %989
    %v991 = vrcp.pop %v987
    %v992 = vmul.f32 %v982, %v991
    %v993 = vrcp.pop %v990
    %v994 = vmul.f32 %v984, %v993
    %995 = vrot.lane.b32.xlu0 %v144, 48
    %v996 = vpop.permute.xlu0 %995
    %v999 = vsel %vm155, %v992, 0
    %1001 = vmatprep.subr.mxu0 0.0
    %1002 = vmatpush1.msra.mxu0 %v996
    %1003 = vmatprep.subr.mxu0 0.0
    %1004 = vmatpush1.msra.mxu0 0.0
    %1005 = vmatprep.subr.mxu0 0.0
    %1006 = vmatpush1.msra.mxu0 0.0
    %1007 = vmatprep.subr.mxu0 0.0
    %1008 = vmatpush1.msra.mxu0 0.0
    %1009 = vmatprep.subr.mxu0 0.0
    %1010 = vmatpush1.msra.mxu0 0.0
    %1011 = vmatprep.subr.mxu0 0.0
    %1012 = vmatpush1.msra.mxu0 0.0
    %1013 = vmatprep.subr.mxu0 0.0
    %1014 = vmatpush1.msra.mxu0 0.0
    %1015 = vmatprep.subr.mxu0 0.0
    %1016 = vmatpush1.msra.mxu0 0.0
    %1017 = vmatprep.subr.mxu0 0.0
    %1018 = vmatpush1.msra.mxu0 0.0
    %1019 = vmatprep.subr.mxu0 0.0
    %1020 = vmatpush1.msra.mxu0 0.0
    %1021 = vmatprep.subr.mxu0 0.0
    %1022 = vmatpush1.msra.mxu0 0.0
    %1023 = vmatprep.subr.mxu0 0.0
    %1024 = vmatpush1.msra.mxu0 0.0
    %1025 = vmatprep.subr.mxu0 0.0
    %1026 = vmatpush1.msra.mxu0 0.0
    %1027 = vmatprep.subr.mxu0 0.0
    %1028 = vmatpush1.msra.mxu0 0.0
    %1029 = vmatprep.subr.mxu0 0.0
    %1030 = vmatpush1.msra.mxu0 0.0
    %1031 = vmatprep.subr.mxu0 0.0
    %1032 = vmatpush1.msra.mxu0 0.0
    %1033 = vmatprep.subr.mxu0 0.0
    %1034 = vmatpush1.msra.mxu0 0.0
    %1035 = vmatprep.subr.mxu0 0.0
    %1036 = vmatpush1.msra.mxu0 0.0
    %1037 = vmatprep.subr.mxu0 0.0
    %1038 = vmatpush1.msra.mxu0 0.0
    %1039 = vmatprep.subr.mxu0 0.0
    %1040 = vmatpush1.msra.mxu0 0.0
    %1041 = vmatprep.subr.mxu0 0.0
    %1042 = vmatpush1.msra.mxu0 0.0
    %1043 = vmatprep.subr.mxu0 0.0
    %1044 = vmatpush1.msra.mxu0 0.0
    %1045 = vmatprep.subr.mxu0 0.0
    %1046 = vmatpush1.msra.mxu0 0.0
    %1047 = vmatprep.subr.mxu0 0.0
    %1048 = vmatpush1.msra.mxu0 0.0
    %1049 = vmatprep.subr.mxu0 0.0
    %1050 = vmatpush1.msra.mxu0 0.0
    %1051 = vmatprep.subr.mxu0 0.0
    %1052 = vmatpush1.msra.mxu0 0.0
    %1053 = vmatprep.subr.mxu0 0.0
    %1054 = vmatpush1.msra.mxu0 0.0
    %1055 = vmatprep.subr.mxu0 0.0
    %1056 = vmatpush1.msra.mxu0 0.0
    %1057 = vmatprep.subr.mxu0 0.0
    %1058 = vmatpush1.msra.mxu0 0.0
    %1059 = vmatprep.subr.mxu0 0.0
    %1060 = vmatpush1.msra.mxu0 0.0
    %1061 = vmatprep.subr.mxu0 0.0
    %1062 = vmatpush1.msra.mxu0 0.0
    %1063 = vmatprep.subr.mxu0 0.0
    %1064 = vmatpush1.msra.mxu0 0.0
    %1065 = vmatprep.mubr.f32.mxu0 0.0
    %1066 = vmatmul.mubr.f32.gmra.mrb[0].mxu0 %v999
    %v1067 = vpop.f32.mrb[0].mxu0
    %v1068 = vadd.f32 0.0, %v1067
    %v1069 = vpop.f32.mrb[0].mxu0
    %1070 = vdwg.mxu0
    %1071 = vrot.lane.b32.xlu0 %v149, 48
    %v1072 = vpop.permute.xlu0 %1071
    %v1075 = vsel %vm155, %v994, 0
    %1077 = vmatprep.subr.mxu0 0.0
    %1078 = vmatpush1.msra.mxu0 %v1072
    %1079 = vmatprep.subr.mxu0 0.0
    %1080 = vmatpush1.msra.mxu0 0.0
    %1081 = vmatprep.subr.mxu0 0.0
    %1082 = vmatpush1.msra.mxu0 0.0
    %1083 = vmatprep.subr.mxu0 0.0
    %1084 = vmatpush1.msra.mxu0 0.0
    %1085 = vmatprep.subr.mxu0 0.0
    %1086 = vmatpush1.msra.mxu0 0.0
    %1087 = vmatprep.subr.mxu0 0.0
    %1088 = vmatpush1.msra.mxu0 0.0
    %1089 = vmatprep.subr.mxu0 0.0
    %1090 = vmatpush1.msra.mxu0 0.0
    %1091 = vmatprep.subr.mxu0 0.0
    %1092 = vmatpush1.msra.mxu0 0.0
    %1093 = vmatprep.subr.mxu0 0.0
    %1094 = vmatpush1.msra.mxu0 0.0
    %1095 = vmatprep.subr.mxu0 0.0
    %1096 = vmatpush1.msra.mxu0 0.0
    %1097 = vmatprep.subr.mxu0 0.0
    %1098 = vmatpush1.msra.mxu0 0.0
    %1099 = vmatprep.subr.mxu0 0.0
    %1100 = vmatpush1.msra.mxu0 0.0
    %1101 = vmatprep.subr.mxu0 0.0
    %1102 = vmatpush1.msra.mxu0 0.0
    %1103 = vmatprep.subr.mxu0 0.0
    %1104 = vmatpush1.msra.mxu0 0.0
    %1105 = vmatprep.subr.mxu0 0.0
    %1106 = vmatpush1.msra.mxu0 0.0
    %1107 = vmatprep.subr.mxu0 0.0
    %1108 = vmatpush1.msra.mxu0 0.0
    %1109 = vmatprep.subr.mxu0 0.0
    %1110 = vmatpush1.msra.mxu0 0.0
    %1111 = vmatprep.subr.mxu0 0.0
    %1112 = vmatpush1.msra.mxu0 0.0
    %1113 = vmatprep.subr.mxu0 0.0
    %1114 = vmatpush1.msra.mxu0 0.0
    %1115 = vmatprep.subr.mxu0 0.0
    %1116 = vmatpush1.msra.mxu0 0.0
    %1117 = vmatprep.subr.mxu0 0.0
    %1118 = vmatpush1.msra.mxu0 0.0
    %1119 = vmatprep.subr.mxu0 0.0
    %1120 = vmatpush1.msra.mxu0 0.0
    %1121 = vmatprep.subr.mxu0 0.0
    %1122 = vmatpush1.msra.mxu0 0.0
    %1123 = vmatprep.subr.mxu0 0.0
    %1124 = vmatpush1.msra.mxu0 0.0
    %1125 = vmatprep.subr.mxu0 0.0
    %1126 = vmatpush1.msra.mxu0 0.0
    %1127 = vmatprep.subr.mxu0 0.0
    %1128 = vmatpush1.msra.mxu0 0.0
    %1129 = vmatprep.subr.mxu0 0.0
    %1130 = vmatpush1.msra.mxu0 0.0
    %1131 = vmatprep.subr.mxu0 0.0
    %1132 = vmatpush1.msra.mxu0 0.0
    %1133 = vmatprep.subr.mxu0 0.0
    %1134 = vmatpush1.msra.mxu0 0.0
    %1135 = vmatprep.subr.mxu0 0.0
    %1136 = vmatpush1.msra.mxu0 0.0
    %1137 = vmatprep.subr.mxu0 0.0
    %1138 = vmatpush1.msra.mxu0 0.0
    %1139 = vmatprep.subr.mxu0 0.0
    %1140 = vmatpush1.msra.mxu0 0.0
    %1141 = vmatprep.mubr.f32.mxu0 0.0
    %1142 = vmatmul.mubr.f32.gmra.mrb[0].mxu0 %v1075
    %v1143 = vpop.f32.mrb[0].mxu0
    %v1144 = vadd.f32 0.0, %v1143
    %v1145 = vpop.f32.mrb[0].mxu0
    %1146 = vdwg.mxu0
    %1147 = vrot.lane.b32.xlu0 %v144, 104
    %v1148 = vpop.permute.xlu0 %1147
    %1149 = vrot.lane.b32.xlu0 %v144, 72
    %v1150 = vpop.permute.xlu0 %1149
    %v1151 = vsel %vm155, %v1148, 0
    %v1153 = vsel %vm155, %v1150, 0
    %1155 = vmatprep.subr.mxu0 0.0
    %1156 = vmatpush1.xpose.msra.mxu0 %v1153
    %1157 = vmatprep.subr.mxu0 0.0
    %1158 = vmatpush1.xpose.msra.mxu0 0.0
    %1159 = vmatprep.subr.mxu0 0.0
    %1160 = vmatpush1.xpose.msra.mxu0 0.0
    %1161 = vmatprep.subr.mxu0 0.0
    %1162 = vmatpush1.xpose.msra.mxu0 0.0
    %1163 = vmatprep.subr.mxu0 0.0
    %1164 = vmatpush1.xpose.msra.mxu0 0.0
    %1165 = vmatprep.subr.mxu0 0.0
    %1166 = vmatpush1.xpose.msra.mxu0 0.0
    %1167 = vmatprep.subr.mxu0 0.0
    %1168 = vmatpush1.xpose.msra.mxu0 0.0
    %1169 = vmatprep.subr.mxu0 0.0
    %1170 = vmatpush1.xpose.msra.mxu0 0.0
    %1171 = vmatprep.subr.mxu0 0.0
    %1172 = vmatpush1.xpose.msra.mxu0 0.0
    %1173 = vmatprep.subr.mxu0 0.0
    %1174 = vmatpush1.xpose.msra.mxu0 0.0
    %1175 = vmatprep.subr.mxu0 0.0
    %1176 = vmatpush1.xpose.msra.mxu0 0.0
    %1177 = vmatprep.subr.mxu0 0.0
    %1178 = vmatpush1.xpose.msra.mxu0 0.0
    %1179 = vmatprep.subr.mxu0 0.0
    %1180 = vmatpush1.xpose.msra.mxu0 0.0
    %1181 = vmatprep.subr.mxu0 0.0
    %1182 = vmatpush1.xpose.msra.mxu0 0.0
    %1183 = vmatprep.subr.mxu0 0.0
    %1184 = vmatpush1.xpose.msra.mxu0 0.0
    %1185 = vmatprep.subr.mxu0 0.0
    %1186 = vmatpush1.xpose.msra.mxu0 0.0
    %1187 = vmatprep.subr.mxu0 0.0
    %1188 = vmatpush1.xpose.msra.mxu0 0.0
    %1189 = vmatprep.subr.mxu0 0.0
    %1190 = vmatpush1.xpose.msra.mxu0 0.0
    %1191 = vmatprep.subr.mxu0 0.0
    %1192 = vmatpush1.xpose.msra.mxu0 0.0
    %1193 = vmatprep.subr.mxu0 0.0
    %1194 = vmatpush1.xpose.msra.mxu0 0.0
    %1195 = vmatprep.subr.mxu0 0.0
    %1196 = vmatpush1.xpose.msra.mxu0 0.0
    %1197 = vmatprep.subr.mxu0 0.0
    %1198 = vmatpush1.xpose.msra.mxu0 0.0
    %1199 = vmatprep.subr.mxu0 0.0
    %1200 = vmatpush1.xpose.msra.mxu0 0.0
    %1201 = vmatprep.subr.mxu0 0.0
    %1202 = vmatpush1.xpose.msra.mxu0 0.0
    %1203 = vmatprep.subr.mxu0 0.0
    %1204 = vmatpush1.xpose.msra.mxu0 0.0
    %1205 = vmatprep.subr.mxu0 0.0
    %1206 = vmatpush1.xpose.msra.mxu0 0.0
    %1207 = vmatprep.subr.mxu0 0.0
    %1208 = vmatpush1.xpose.msra.mxu0 0.0
    %1209 = vmatprep.subr.mxu0 0.0
    %1210 = vmatpush1.xpose.msra.mxu0 0.0
    %1211 = vmatprep.subr.mxu0 0.0
    %1212 = vmatpush1.xpose.msra.mxu0 0.0
    %1213 = vmatprep.subr.mxu0 0.0
    %1214 = vmatpush1.xpose.msra.mxu0 0.0
    %1215 = vmatprep.subr.mxu0 0.0
    %1216 = vmatpush1.xpose.msra.mxu0 0.0
    %1217 = vmatprep.subr.mxu0 0.0
    %1218 = vmatpush1.xpose.msra.mxu0 0.0
    %1219 = vmatprep.mubr.f32.mxu0 0.0
    %1220 = vmatmul.mubr.f32.gmra.mrb[0].mxu0 %v1151
    %v1221 = vpop.f32.mrb[0].mxu0
    %v1222 = vadd.f32 0.0, %v1221
    %v1223 = vpop.f32.mrb[0].mxu0
    %1224 = vdwg.mxu0
    %1225 = vrot.lane.b32.xlu0 %v149, 104
    %v1226 = vpop.permute.xlu0 %1225
    %1227 = vrot.lane.b32.xlu0 %v149, 72
    %v1228 = vpop.permute.xlu0 %1227
    %v1229 = vsel %vm155, %v1226, 0
    %v1231 = vsel %vm155, %v1228, 0
    %1233 = vmatprep.subr.mxu0 0.0
    %1234 = vmatpush1.xpose.msra.mxu0 %v1231
    %1235 = vmatprep.subr.mxu0 0.0
    %1236 = vmatpush1.xpose.msra.mxu0 0.0
    %1237 = vmatprep.subr.mxu0 0.0
    %1238 = vmatpush1.xpose.msra.mxu0 0.0
    %1239 = vmatprep.subr.mxu0 0.0
    %1240 = vmatpush1.xpose.msra.mxu0 0.0
    %1241 = vmatprep.subr.mxu0 0.0
    %1242 = vmatpush1.xpose.msra.mxu0 0.0
    %1243 = vmatprep.subr.mxu0 0.0
    %1244 = vmatpush1.xpose.msra.mxu0 0.0
    %1245 = vmatprep.subr.mxu0 0.0
    %1246 = vmatpush1.xpose.msra.mxu0 0.0
    %1247 = vmatprep.subr.mxu0 0.0
    %1248 = vmatpush1.xpose.msra.mxu0 0.0
    %1249 = vmatprep.subr.mxu0 0.0
    %1250 = vmatpush1.xpose.msra.mxu0 0.0
    %1251 = vmatprep.subr.mxu0 0.0
    %1252 = vmatpush1.xpose.msra.mxu0 0.0
    %1253 = vmatprep.subr.mxu0 0.0
    %1254 = vmatpush1.xpose.msra.mxu0 0.0
    %1255 = vmatprep.subr.mxu0 0.0
    %1256 = vmatpush1.xpose.msra.mxu0 0.0
    %1257 = vmatprep.subr.mxu0 0.0
    %1258 = vmatpush1.xpose.msra.mxu0 0.0
    %1259 = vmatprep.subr.mxu0 0.0
    %1260 = vmatpush1.xpose.msra.mxu0 0.0
    %1261 = vmatprep.subr.mxu0 0.0
    %1262 = vmatpush1.xpose.msra.mxu0 0.0
    %1263 = vmatprep.subr.mxu0 0.0
    %1264 = vmatpush1.xpose.msra.mxu0 0.0
    %1265 = vmatprep.subr.mxu0 0.0
    %1266 = vmatpush1.xpose.msra.mxu0 0.0
    %1267 = vmatprep.subr.mxu0 0.0
    %1268 = vmatpush1.xpose.msra.mxu0 0.0
    %1269 = vmatprep.subr.mxu0 0.0
    %1270 = vmatpush1.xpose.msra.mxu0 0.0
    %1271 = vmatprep.subr.mxu0 0.0
    %1272 = vmatpush1.xpose.msra.mxu0 0.0
    %1273 = vmatprep.subr.mxu0 0.0
    %1274 = vmatpush1.xpose.msra.mxu0 0.0
    %1275 = vmatprep.subr.mxu0 0.0
    %1276 = vmatpush1.xpose.msra.mxu0 0.0
    %1277 = vmatprep.subr.mxu0 0.0
    %1278 = vmatpush1.xpose.msra.mxu0 0.0
    %1279 = vmatprep.subr.mxu0 0.0
    %1280 = vmatpush1.xpose.msra.mxu0 0.0
    %1281 = vmatprep.subr.mxu0 0.0
    %1282 = vmatpush1.xpose.msra.mxu0 0.0
    %1283 = vmatprep.subr.mxu0 0.0
    %1284 = vmatpush1.xpose.msra.mxu0 0.0
    %1285 = vmatprep.subr.mxu0 0.0
    %1286 = vmatpush1.xpose.msra.mxu0 0.0
    %1287 = vmatprep.subr.mxu0 0.0
    %1288 = vmatpush1.xpose.msra.mxu0 0.0
    %1289 = vmatprep.subr.mxu0 0.0
    %1290 = vmatpush1.xpose.msra.mxu0 0.0
    %1291 = vmatprep.subr.mxu0 0.0
    %1292 = vmatpush1.xpose.msra.mxu0 0.0
    %1293 = vmatprep.subr.mxu0 0.0
    %1294 = vmatpush1.xpose.msra.mxu0 0.0
    %1295 = vmatprep.subr.mxu0 0.0
    %1296 = vmatpush1.xpose.msra.mxu0 0.0
    %1297 = vmatprep.mubr.f32.mxu0 0.0
    %1298 = vmatmul.mubr.f32.gmra.mrb[0].mxu0 %v1229
    %v1299 = vpop.f32.mrb[0].mxu0
    %v1300 = vadd.f32 0.0, %v1299
    %v1301 = vpop.f32.mrb[0].mxu0
    %1302 = vdwg.mxu0
    %v1303 = vmul.f32 %v1222, 0.35355338
    %v1304 = vmul.f32 %v1300, 0.35355338
    %v1305 = vsel %vm155, %v1303, -inf
    %1306 = vmax.xlane.f32.xlu0 %v1305
    %v1307 = vpop.xlane.xlu0 %1306
    %v1308 = vsel %vm155, %v1304, -inf
    %1309 = vmax.xlane.f32.xlu0 %v1308
    %v1310 = vpop.xlane.xlu0 %1309
    %v1311 = vsub.f32 %v1303, %v1307
    %v1312 = vsub.f32 %v1304, %v1310
    %v1313 = vmul.f32 %v1311, 1.442695
    %v1314 = vpow.pop %v1313
    %v1315 = vmul.f32 %v1312, 1.442695
    %v1316 = vpow.pop %v1315
    %v1317 = vsel %vm155, %v1314, 0.0
    %1318 = vadd.xlane.f32.xlu0 %v1317
    %v1319 = vpop.xlane.xlu0 %1318
    %v1320 = vsel %vm155, %v1316, 0.0
    %1321 = vadd.xlane.f32.xlu0 %v1320
    %v1322 = vpop.xlane.xlu0 %1321
    %v1323 = vrcp.pop %v1319
    %v1324 = vmul.f32 %v1314, %v1323
    %v1325 = vrcp.pop %v1322
    %v1326 = vmul.f32 %v1316, %v1325
    %1327 = vrot.lane.b32.xlu0 %v144, 40
    %v1328 = vpop.permute.xlu0 %1327
    %v1331 = vsel %vm155, %v1324, 0
    %1333 = vmatprep.subr.mxu0 0.0
    %1334 = vmatpush1.msra.mxu0 %v1328
    %1335 = vmatprep.subr.mxu0 0.0
    %1336 = vmatpush1.msra.mxu0 0.0
    %1337 = vmatprep.subr.mxu0 0.0
    %1338 = vmatpush1.msra.mxu0 0.0
    %1339 = vmatprep.subr.mxu0 0.0
    %1340 = vmatpush1.msra.mxu0 0.0
    %1341 = vmatprep.subr.mxu0 0.0
    %1342 = vmatpush1.msra.mxu0 0.0
    %1343 = vmatprep.subr.mxu0 0.0
    %1344 = vmatpush1.msra.mxu0 0.0
    %1345 = vmatprep.subr.mxu0 0.0
    %1346 = vmatpush1.msra.mxu0 0.0
    %1347 = vmatprep.subr.mxu0 0.0
    %1348 = vmatpush1.msra.mxu0 0.0
    %1349 = vmatprep.subr.mxu0 0.0
    %1350 = vmatpush1.msra.mxu0 0.0
    %1351 = vmatprep.subr.mxu0 0.0
    %1352 = vmatpush1.msra.mxu0 0.0
    %1353 = vmatprep.subr.mxu0 0.0
    %1354 = vmatpush1.msra.mxu0 0.0
    %1355 = vmatprep.subr.mxu0 0.0
    %1356 = vmatpush1.msra.mxu0 0.0
    %1357 = vmatprep.subr.mxu0 0.0
    %1358 = vmatpush1.msra.mxu0 0.0
    %1359 = vmatprep.subr.mxu0 0.0
    %1360 = vmatpush1.msra.mxu0 0.0
    %1361 = vmatprep.subr.mxu0 0.0
    %1362 = vmatpush1.msra.mxu0 0.0
    %1363 = vmatprep.subr.mxu0 0.0
    %1364 = vmatpush1.msra.mxu0 0.0
    %1365 = vmatprep.subr.mxu0 0.0
    %1366 = vmatpush1.msra.mxu0 0.0
    %1367 = vmatprep.subr.mxu0 0.0
    %1368 = vmatpush1.msra.mxu0 0.0
    %1369 = vmatprep.subr.mxu0 0.0
    %1370 = vmatpush1.msra.mxu0 0.0
    %1371 = vmatprep.subr.mxu0 0.0
    %1372 = vmatpush1.msra.mxu0 0.0
    %1373 = vmatprep.subr.mxu0 0.0
    %1374 = vmatpush1.msra.mxu0 0.0
    %1375 = vmatprep.subr.mxu0 0.0
    %1376 = vmatpush1.msra.mxu0 0.0
    %1377 = vmatprep.subr.mxu0 0.0
    %1378 = vmatpush1.msra.mxu0 0.0
    %1379 = vmatprep.subr.mxu0 0.0
    %1380 = vmatpush1.msra.mxu0 0.0
    %1381 = vmatprep.subr.mxu0 0.0
    %1382 = vmatpush1.msra.mxu0 0.0
    %1383 = vmatprep.subr.mxu0 0.0
    %1384 = vmatpush1.msra.mxu0 0.0
    %1385 = vmatprep.subr.mxu0 0.0
    %1386 = vmatpush1.msra.mxu0 0.0
    %1387 = vmatprep.subr.mxu0 0.0
    %1388 = vmatpush1.msra.mxu0 0.0
    %1389 = vmatprep.subr.mxu0 0.0
    %1390 = vmatpush1.msra.mxu0 0.0
    %1391 = vmatprep.subr.mxu0 0.0
    %1392 = vmatpush1.msra.mxu0 0.0
    %1393 = vmatprep.subr.mxu0 0.0
    %1394 = vmatpush1.msra.mxu0 0.0
    %1395 = vmatprep.subr.mxu0 0.0
    %1396 = vmatpush1.msra.mxu0 0.0
    %1397 = vmatprep.mubr.f32.mxu0 0.0
    %1398 = vmatmul.mubr.f32.gmra.mrb[0].mxu0 %v1331
    %v1399 = vpop.f32.mrb[0].mxu0
    %v1400 = vadd.f32 0.0, %v1399
    %v1401 = vpop.f32.mrb[0].mxu0
    %1402 = vdwg.mxu0
    %1403 = vrot.lane.b32.xlu0 %v149, 40
    %v1404 = vpop.permute.xlu0 %1403
    %v1407 = vsel %vm155, %v1326, 0
    %1409 = vmatprep.subr.mxu0 0.0
    %1410 = vmatpush1.msra.mxu0 %v1404
    %1411 = vmatprep.subr.mxu0 0.0
    %1412 = vmatpush1.msra.mxu0 0.0
    %1413 = vmatprep.subr.mxu0 0.0
    %1414 = vmatpush1.msra.mxu0 0.0
    %1415 = vmatprep.subr.mxu0 0.0
    %1416 = vmatpush1.msra.mxu0 0.0
    %1417 = vmatprep.subr.mxu0 0.0
    %1418 = vmatpush1.msra.mxu0 0.0
    %1419 = vmatprep.subr.mxu0 0.0
    %1420 = vmatpush1.msra.mxu0 0.0
    %1421 = vmatprep.subr.mxu0 0.0
    %1422 = vmatpush1.msra.mxu0 0.0
    %1423 = vmatprep.subr.mxu0 0.0
    %1424 = vmatpush1.msra.mxu0 0.0
    %1425 = vmatprep.subr.mxu0 0.0
    %1426 = vmatpush1.msra.mxu0 0.0
    %1427 = vmatprep.subr.mxu0 0.0
    %1428 = vmatpush1.msra.mxu0 0.0
    %1429 = vmatprep.subr.mxu0 0.0
    %1430 = vmatpush1.msra.mxu0 0.0
    %1431 = vmatprep.subr.mxu0 0.0
    %1432 = vmatpush1.msra.mxu0 0.0
    %1433 = vmatprep.subr.mxu0 0.0
    %1434 = vmatpush1.msra.mxu0 0.0
    %1435 = vmatprep.subr.mxu0 0.0
    %1436 = vmatpush1.msra.mxu0 0.0
    %1437 = vmatprep.subr.mxu0 0.0
    %1438 = vmatpush1.msra.mxu0 0.0
    %1439 = vmatprep.subr.mxu0 0.0
    %1440 = vmatpush1.msra.mxu0 0.0
    %1441 = vmatprep.subr.mxu0 0.0
    %1442 = vmatpush1.msra.mxu0 0.0
    %1443 = vmatprep.subr.mxu0 0.0
    %1444 = vmatpush1.msra.mxu0 0.0
    %1445 = vmatprep.subr.mxu0 0.0
    %1446 = vmatpush1.msra.mxu0 0.0
    %1447 = vmatprep.subr.mxu0 0.0
    %1448 = vmatpush1.msra.mxu0 0.0
    %1449 = vmatprep.subr.mxu0 0.0
    %1450 = vmatpush1.msra.mxu0 0.0
    %1451 = vmatprep.subr.mxu0 0.0
    %1452 = vmatpush1.msra.mxu0 0.0
    %1453 = vmatprep.subr.mxu0 0.0
    %1454 = vmatpush1.msra.mxu0 0.0
    %1455 = vmatprep.subr.mxu0 0.0
    %1456 = vmatpush1.msra.mxu0 0.0
    %1457 = vmatprep.subr.mxu0 0.0
    %1458 = vmatpush1.msra.mxu0 0.0
    %1459 = vmatprep.subr.mxu0 0.0
    %1460 = vmatpush1.msra.mxu0 0.0
    %1461 = vmatprep.subr.mxu0 0.0
    %1462 = vmatpush1.msra.mxu0 0.0
    %1463 = vmatprep.subr.mxu0 0.0
    %1464 = vmatpush1.msra.mxu0 0.0
    %1465 = vmatprep.subr.mxu0 0.0
    %1466 = vmatpush1.msra.mxu0 0.0
    %1467 = vmatprep.subr.mxu0 0.0
    %1468 = vmatpush1.msra.mxu0 0.0
    %1469 = vmatprep.subr.mxu0 0.0
    %1470 = vmatpush1.msra.mxu0 0.0
    %1471 = vmatprep.subr.mxu0 0.0
    %1472 = vmatpush1.msra.mxu0 0.0
    %1473 = vmatprep.mubr.f32.mxu0 0.0
    %1474 = vmatmul.mubr.f32.gmra.mrb[0].mxu0 %v1407
    %v1475 = vpop.f32.mrb[0].mxu0
    %v1476 = vadd.f32 0.0, %v1475
    %v1477 = vpop.f32.mrb[0].mxu0
    %1478 = vdwg.mxu0
    %1481 = vrot.lane.b32.xlu0 %v736, 8
    %v1482 = vpop.permute.xlu0 %1481
    %1483 = vrot.lane.b32.xlu0 %v812, 8
    %v1484 = vpop.permute.xlu0 %1483
    %1489 = vrot.lane.b32.xlu0 %v1068, 16
    %v1490 = vpop.permute.xlu0 %1489
    %1491 = vrot.lane.b32.xlu0 %v1144, 16
    %v1492 = vpop.permute.xlu0 %1491
    %1497 = vrot.lane.b32.xlu0 %v1400, 24
    %v1498 = vpop.permute.xlu0 %1497
    %1499 = vrot.lane.b32.xlu0 %v1476, 24
    %v1500 = vpop.permute.xlu0 %1499
    %v1503 = vsel %vm155, %v404, %v1482
    %v1504 = vsel %vm155, %v480, %v1484
    %vm1505 = vcmask 130048
    %v1506 = vsel %vm1505, %v1503, %v1490
    %v1507 = vsel %vm1505, %v1504, %v1492
    %vm1508 = vcmask 195584
    %v1509 = vsel %vm1508, %v1506, %v1498
    %v1510 = vsel %vm1508, %v1507, %v1500
    %v1511 = vld [vmem:[%s2] sm:$0xff]
    %v1512 = vld [vmem:[%s2 + $0x8] sm:$0xff]
    %v1513 = vld [vmem:[%s2 + $0x10] sm:$0xff]
    %v1514 = vld [vmem:[%s2 + $0x18] sm:$0xff]
    %v1515 = vlaneseq
    %v1516 = vshrl.u32 %v1515, 7
    %v1517 = vsub.s32 2, %v1516
    %v1518 = vrot.slane %v26, %v1517
    %v1520 = vsel %vm27, %v1509, 0
    %v1523 = vsel %vm27, %v1510, 0
    %1525 = vmatprep.subr.mxu0 0.0
    %1526 = vmatpush1.msra.mxu0 %v1511
    %1527 = vmatprep.subr.mxu0 0.0
    %1528 = vmatpush1.msra.mxu0 %v1512
    %1529 = vmatprep.subr.mxu0 0.0
    %1530 = vmatpush1.msra.mxu0 %v1513
    %1531 = vmatprep.subr.mxu0 0.0
    %1532 = vmatpush1.msra.mxu0 %v1514
    %1533 = vmatprep.subr.mxu0 0.0
    %1534 = vmatpush1.msra.mxu0 0.0
    %1535 = vmatprep.subr.mxu0 0.0
    %1536 = vmatpush1.msra.mxu0 0.0
    %1537 = vmatprep.subr.mxu0 0.0
    %1538 = vmatpush1.msra.mxu0 0.0
    %1539 = vmatprep.subr.mxu0 0.0
    %1540 = vmatpush1.msra.mxu0 0.0
    %1541 = vmatprep.subr.mxu0 0.0
    %1542 = vmatpush1.msra.mxu0 0.0
    %1543 = vmatprep.subr.mxu0 0.0
    %1544 = vmatpush1.msra.mxu0 0.0
    %1545 = vmatprep.subr.mxu0 0.0
    %1546 = vmatpush1.msra.mxu0 0.0
    %1547 = vmatprep.subr.mxu0 0.0
    %1548 = vmatpush1.msra.mxu0 0.0
    %1549 = vmatprep.subr.mxu0 0.0
    %1550 = vmatpush1.msra.mxu0 0.0
    %1551 = vmatprep.subr.mxu0 0.0
    %1552 = vmatpush1.msra.mxu0 0.0
    %1553 = vmatprep.subr.mxu0 0.0
    %1554 = vmatpush1.msra.mxu0 0.0
    %1555 = vmatprep.subr.mxu0 0.0
    %1556 = vmatpush1.msra.mxu0 0.0
    %1557 = vmatprep.subr.mxu0 0.0
    %1558 = vmatpush1.msra.mxu0 0.0
    %1559 = vmatprep.subr.mxu0 0.0
    %1560 = vmatpush1.msra.mxu0 0.0
    %1561 = vmatprep.subr.mxu0 0.0
    %1562 = vmatpush1.msra.mxu0 0.0
    %1563 = vmatprep.subr.mxu0 0.0
    %1564 = vmatpush1.msra.mxu0 0.0
    %1565 = vmatprep.subr.mxu0 0.0
    %1566 = vmatpush1.msra.mxu0 0.0
    %1567 = vmatprep.subr.mxu0 0.0
    %1568 = vmatpush1.msra.mxu0 0.0
    %1569 = vmatprep.subr.mxu0 0.0
    %1570 = vmatpush1.msra.mxu0 0.0
    %1571 = vmatprep.subr.mxu0 0.0
    %1572 = vmatpush1.msra.mxu0 0.0
    %1573 = vmatprep.subr.mxu0 0.0
    %1574 = vmatpush1.msra.mxu0 0.0
    %1575 = vmatprep.subr.mxu0 0.0
    %1576 = vmatpush1.msra.mxu0 0.0
    %1577 = vmatprep.subr.mxu0 0.0
    %1578 = vmatpush1.msra.mxu0 0.0
    %1579 = vmatprep.subr.mxu0 0.0
    %1580 = vmatpush1.msra.mxu0 0.0
    %1581 = vmatprep.subr.mxu0 0.0
    %1582 = vmatpush1.msra.mxu0 0.0
    %1583 = vmatprep.subr.mxu0 0.0
    %1584 = vmatpush1.msra.mxu0 0.0
    %1585 = vmatprep.subr.mxu0 0.0
    %1586 = vmatpush1.msra.mxu0 0.0
    %1587 = vmatprep.subr.mxu0 0.0
    %1588 = vmatpush1.msra.mxu0 0.0
    %1589 = vmatprep.mubr.f32.mxu0 0.0
    %1590 = vmatmul.mubr.f32.gmra.mrb[0].mxu0 %v1520
    %v1591 = vpop.f32.mrb[0].mxu0
    %v1592 = vadd.f32 %v1518, %v1591
    %v1593 = vpop.f32.mrb[0].mxu0
    %1594 = vmatprep.mubr.f32.mxu0 0.0
    %1595 = vmatmul.mubr.f32.gmra.mrb[0].mxu0 %v1523
    %v1596 = vpop.f32.mrb[0].mxu0
    %v1597 = vadd.f32 %v1518, %v1596
    %v1598 = vpop.f32.mrb[0].mxu0
    %1599 = vdwg.mxu0
    %v1600 = vadd.f32 %v1592, %v24
    %v1601 = vadd.f32 %v1597, %v25
    %v1602 = vsel %vm27, %v1600, 0.0
    %1603 = vadd.xlane.f32.xlu0 %v1602
    %v1604 = vpop.xlane.xlu0 %1603
    %v1605 = vsel %vm27, %v1601, 0.0
    %1606 = vadd.xlane.f32.xlu0 %v1605
    %v1607 = vpop.xlane.xlu0 %1606
    %v1608 = vmul.f32 %v1604, %v34
    %v1609 = vmul.f32 %v1607, %v34
    %v1610 = vsub.f32 %v1600, %v1608
    %v1611 = vsub.f32 %v1601, %v1609
    %v1612 = vmul.f32 %v1610, %v1610
    %v1613 = vmul.f32 %v1611, %v1611
    %v1614 = vsel %vm27, %v1612, 0.0
    %1615 = vadd.xlane.f32.xlu0 %v1614
    %v1616 = vpop.xlane.xlu0 %1615
    %v1617 = vsel %vm27, %v1613, 0.0
    %1618 = vadd.xlane.f32.xlu0 %v1617
    %v1619 = vpop.xlane.xlu0 %1618
    %v1620 = vmul.f32 %v1616, %v34
    %v1621 = vmul.f32 %v1619, %v34
    %v1622 = vadd.f32 %v1620, 1e-05
    %v1623 = vadd.f32 %v1621, 1e-05
    %v1624 = vrsqrt.pop %v1622
    %v1625 = vrsqrt.pop %v1623
    %v1626 = vmul.f32 %v1610, %v1624
    %v1627 = vmul.f32 %v1611, %v1625
    %v1628 = vlaneseq
    %v1629 = vshrl.u32 %v1628, 7
    %v1630 = vsub.s32 3, %v1629
    %v1631 = vrot.slane %v26, %v1630
    %v1632 = vmul.f32 %v1626, %v1631
    %v1633 = vmul.f32 %v1627, %v1631
    %v1634 = vlaneseq
    %v1635 = vshrl.u32 %v1634, 7
    %v1636 = vsub.s32 4, %v1635
    %v1637 = vrot.slane %v26, %v1636
    %v1638 = vadd.f32 %v1632, %v1637
    %v1639 = vadd.f32 %v1633, %v1637
    %v1640 = vld [vmem:[%s3] sm:$0xff]
    %v1641 = vld [vmem:[%s3 + $0x8] sm:$0xff]
    %v1642 = vld [vmem:[%s3 + $0x10] sm:$0xff]
    %v1643 = vld [vmem:[%s3 + $0x18] sm:$0xff]
    %v1644 = vlaneseq
    %v1645 = vshrl.u32 %v1644, 7
    %v1646 = vsub.s32 6, %v1645
    %v1647 = vrot.slane %v26, %v1646
    %v1649 = vsel %vm27, %v1638, 0
    %v1652 = vsel %vm27, %v1639, 0
    %1654 = vmatprep.subr.mxu0 0.0
    %1655 = vmatpush1.msra.mxu0 %v1640
    %1656 = vmatprep.subr.mxu0 0.0
    %1657 = vmatpush1.msra.mxu0 %v1641
    %1658 = vmatprep.subr.mxu0 0.0
    %1659 = vmatpush1.msra.mxu0 %v1642
    %1660 = vmatprep.subr.mxu0 0.0
    %1661 = vmatpush1.msra.mxu0 %v1643
    %1662 = vmatprep.subr.mxu0 0.0
    %1663 = vmatpush1.msra.mxu0 0.0
    %1664 = vmatprep.subr.mxu0 0.0
    %1665 = vmatpush1.msra.mxu0 0.0
    %1666 = vmatprep.subr.mxu0 0.0
    %1667 = vmatpush1.msra.mxu0 0.0
    %1668 = vmatprep.subr.mxu0 0.0
    %1669 = vmatpush1.msra.mxu0 0.0
    %1670 = vmatprep.subr.mxu0 0.0
    %1671 = vmatpush1.msra.mxu0 0.0
    %1672 = vmatprep.subr.mxu0 0.0
    %1673 = vmatpush1.msra.mxu0 0.0
    %1674 = vmatprep.subr.mxu0 0.0
    %1675 = vmatpush1.msra.mxu0 0.0
    %1676 = vmatprep.subr.mxu0 0.0
    %1677 = vmatpush1.msra.mxu0 0.0
    %1678 = vmatprep.subr.mxu0 0.0
    %1679 = vmatpush1.msra.mxu0 0.0
    %1680 = vmatprep.subr.mxu0 0.0
    %1681 = vmatpush1.msra.mxu0 0.0
    %1682 = vmatprep.subr.mxu0 0.0
    %1683 = vmatpush1.msra.mxu0 0.0
    %1684 = vmatprep.subr.mxu0 0.0
    %1685 = vmatpush1.msra.mxu0 0.0
    %1686 = vmatprep.subr.mxu0 0.0
    %1687 = vmatpush1.msra.mxu0 0.0
    %1688 = vmatprep.subr.mxu0 0.0
    %1689 = vmatpush1.msra.mxu0 0.0
    %1690 = vmatprep.subr.mxu0 0.0
    %1691 = vmatpush1.msra.mxu0 0.0
    %1692 = vmatprep.subr.mxu0 0.0
    %1693 = vmatpush1.msra.mxu0 0.0
    %1694 = vmatprep.subr.mxu0 0.0
    %1695 = vmatpush1.msra.mxu0 0.0
    %1696 = vmatprep.subr.mxu0 0.0
    %1697 = vmatpush1.msra.mxu0 0.0
    %1698 = vmatprep.subr.mxu0 0.0
    %1699 = vmatpush1.msra.mxu0 0.0
    %1700 = vmatprep.subr.mxu0 0.0
    %1701 = vmatpush1.msra.mxu0 0.0
    %1702 = vmatprep.subr.mxu0 0.0
    %1703 = vmatpush1.msra.mxu0 0.0
    %1704 = vmatprep.subr.mxu0 0.0
    %1705 = vmatpush1.msra.mxu0 0.0
    %1706 = vmatprep.subr.mxu0 0.0
    %1707 = vmatpush1.msra.mxu0 0.0
    %1708 = vmatprep.subr.mxu0 0.0
    %1709 = vmatpush1.msra.mxu0 0.0
    %1710 = vmatprep.subr.mxu0 0.0
    %1711 = vmatpush1.msra.mxu0 0.0
    %1712 = vmatprep.subr.mxu0 0.0
    %1713 = vmatpush1.msra.mxu0 0.0
    %1714 = vmatprep.subr.mxu0 0.0
    %1715 = vmatpush1.msra.mxu0 0.0
    %1716 = vmatprep.subr.mxu0 0.0
    %1717 = vmatpush1.msra.mxu0 0.0
    %1718 = vmatprep.mubr.f32.mxu0 0.0
    %1719 = vmatmul.mubr.f32.gmra.mrb[0].mxu0 %v1649
    %v1720 = vpop.f32.mrb[0].mxu0
    %v1721 = vadd.f32 %v1647, %v1720
    %v1722 = vpop.f32.mrb[0].mxu0
    %1723 = vmatprep.mubr.f32.mxu0 0.0
    %1724 = vmatmul.mubr.f32.gmra.mrb[0].mxu0 %v1652
    %v1725 = vpop.f32.mrb[0].mxu0
    %v1726 = vadd.f32 %v1647, %v1725
    %v1727 = vpop.f32.mrb[0].mxu0
    %1728 = vdwg.mxu0
    %v1729 = vmul.f32 %v1721, 0.5
    %v1730 = vmul.f32 %v1726, 0.5
    %v1731 = vmul.f32 %v1721, 0.70710677
    %v1732 = vmul.f32 %v1726, 0.70710677
    %v1733 = verf.f32.pop %v1731
    %v1734 = verf.f32.pop %v1732
    %v1735 = vadd.f32 %v1733, 1.0
    %v1736 = vadd.f32 %v1734, 1.0
    %v1737 = vmul.f32 %v1729, %v1735
    %v1738 = vmul.f32 %v1730, %v1736
    %v1739 = vld [vmem:[%s4] sm:$0xff]
    %v1740 = vld [vmem:[%s4 + $0x8] sm:$0xff]
    %v1741 = vld [vmem:[%s4 + $0x10] sm:$0xff]
    %v1742 = vld [vmem:[%s4 + $0x18] sm:$0xff]
    %v1743 = vld [vmem:[%s4 + $0x20] sm:$0xff]
    %v1744 = vld [vmem:[%s4 + $0x28] sm:$0xff]
    %v1745 = vld [vmem:[%s4 + $0x30] sm:$0xff]
    %v1746 = vld [vmem:[%s4 + $0x38] sm:$0xff]
    %v1747 = vlaneseq
    %v1748 = vshrl.u32 %v1747, 7
    %v1749 = vsub.s32 5, %v1748
    %v1750 = vrot.slane %v26, %v1749
    %vm1751 = vcmask 523264
    %v1753 = vsel %vm1751, %v1737, 0
    %v1756 = vsel %vm1751, %v1738, 0
    %1758 = vmatprep.subr.mxu0 0.0
    %1759 = vmatpush1.msra.mxu0 %v1739
    %1760 = vmatprep.subr.mxu0 0.0
    %1761 = vmatpush1.msra.mxu0 %v1740
    %1762 = vmatprep.subr.mxu0 0.0
    %1763 = vmatpush1.msra.mxu0 %v1741
    %1764 = vmatprep.subr.mxu0 0.0
    %1765 = vmatpush1.msra.mxu0 %v1742
    %1766 = vmatprep.subr.mxu0 0.0
    %1767 = vmatpush1.msra.mxu0 %v1743
    %1768 = vmatprep.subr.mxu0 0.0
    %1769 = vmatpush1.msra.mxu0 %v1744
    %1770 = vmatprep.subr.mxu0 0.0
    %1771 = vmatpush1.msra.mxu0 %v1745
    %1772 = vmatprep.subr.mxu0 0.0
    %1773 = vmatpush1.msra.mxu0 %v1746
    %1774 = vmatprep.subr.mxu0 0.0
    %1775 = vmatpush1.msra.mxu0 0.0
    %1776 = vmatprep.subr.mxu0 0.0
    %1777 = vmatpush1.msra.mxu0 0.0
    %1778 = vmatprep.subr.mxu0 0.0
    %1779 = vmatpush1.msra.mxu0 0.0
    %1780 = vmatprep.subr.mxu0 0.0
    %1781 = vmatpush1.msra.mxu0 0.0
    %1782 = vmatprep.subr.mxu0 0.0
    %1783 = vmatpush1.msra.mxu0 0.0
    %1784 = vmatprep.subr.mxu0 0.0
    %1785 = vmatpush1.msra.mxu0 0.0
    %1786 = vmatprep.subr.mxu0 0.0
    %1787 = vmatpush1.msra.mxu0 0.0
    %1788 = vmatprep.subr.mxu0 0.0
    %1789 = vmatpush1.msra.mxu0 0.0
    %1790 = vmatprep.subr.mxu0 0.0
    %1791 = vmatpush1.msra.mxu0 0.0
    %1792 = vmatprep.subr.mxu0 0.0
    %1793 = vmatpush1.msra.mxu0 0.0
    %1794 = vmatprep.subr.mxu0 0.0
    %1795 = vmatpush1.msra.mxu0 0.0
    %1796 = vmatprep.subr.mxu0 0.0
    %1797 = vmatpush1.msra.mxu0 0.0
    %1798 = vmatprep.subr.mxu0 0.0
    %1799 = vmatpush1.msra.mxu0 0.0
    %1800 = vmatprep.subr.mxu0 0.0
    %1801 = vmatpush1.msra.mxu0 0.0
    %1802 = vmatprep.subr.mxu0 0.0
    %1803 = vmatpush1.msra.mxu0 0.0
    %1804 = vmatprep.subr.mxu0 0.0
    %1805 = vmatpush1.msra.mxu0 0.0
    %1806 = vmatprep.subr.mxu0 0.0
    %1807 = vmatpush1.msra.mxu0 0.0
    %1808 = vmatprep.subr.mxu0 0.0
    %1809 = vmatpush1.msra.mxu0 0.0
    %1810 = vmatprep.subr.mxu0 0.0
    %1811 = vmatpush1.msra.mxu0 0.0
    %1812 = vmatprep.subr.mxu0 0.0
    %1813 = vmatpush1.msra.mxu0 0.0
    %1814 = vmatprep.subr.mxu0 0.0
    %1815 = vmatpush1.msra.mxu0 0.0
    %1816 = vmatprep.subr.mxu0 0.0
    %1817 = vmatpush1.msra.mxu0 0.0
    %1818 = vmatprep.subr.mxu0 0.0
    %1819 = vmatpush1.msra.mxu0 0.0
    %1820 = vmatprep.subr.mxu0 0.0
    %1821 = vmatpush1.msra.mxu0 0.0
    %1822 = vmatprep.mubr.f32.mxu0 0.0
    %1823 = vmatmul.mubr.f32.gmra.mrb[0].mxu0 %v1753
    %v1824 = vpop.f32.mrb[0].mxu0
    %v1825 = vadd.f32 %v1750, %v1824
    %v1826 = vpop.f32.mrb[0].mxu0
    %1827 = vmatprep.mubr.f32.mxu0 0.0
    %1828 = vmatmul.mubr.f32.gmra.mrb[0].mxu0 %v1756
    %v1829 = vpop.f32.mrb[0].mxu0
    %v1830 = vadd.f32 %v1750, %v1829
    %v1831 = vpop.f32.mrb[0].mxu0
    %1832 = vdwg.mxu0
    %v1833 = vadd.f32 %v1825, %v1600
    %v1834 = vadd.f32 %v1830, %v1601
    %s1835 = scalar_lea.vmem %s5, 8
    %v1836 = vld [vmem:[%s1835] sm:$0xff]
    %v1837 = vsel %vm27, %v1833, 0.0
    %1838 = vadd.xlane.f32.xlu0 %v1837
    %v1839 = vpop.xlane.xlu0 %1838
    %v1840 = vsel %vm27, %v1834, 0.0
    %1841 = vadd.xlane.f32.xlu0 %v1840
    %v1842 = vpop.xlane.xlu0 %1841
    %v1843 = vmul.f32 %v1839, %v34
    %v1844 = vmul.f32 %v1842, %v34
    %v1845 = vsub.f32 %v1833, %v1843
    %v1846 = vsub.f32 %v1834, %v1844
    %v1847 = vmul.f32 %v1845, %v1845
    %v1848 = vmul.f32 %v1846, %v1846
    %v1849 = vsel %vm27, %v1847, 0.0
    %1850 = vadd.xlane.f32.xlu0 %v1849
    %v1851 = vpop.xlane.xlu0 %1850
    %v1852 = vsel %vm27, %v1848, 0.0
    %1853 = vadd.xlane.f32.xlu0 %v1852
    %v1854 = vpop.xlane.xlu0 %1853
    %v1855 = vmul.f32 %v1851, %v34
    %v1856 = vmul.f32 %v1854, %v34
    %v1857 = vadd.f32 %v1855, 1e-05
    %v1858 = vadd.f32 %v1856, 1e-05
    %v1859 = vrsqrt.pop %v1857
    %v1860 = vrsqrt.pop %v1858
    %v1861 = vmul.f32 %v1845, %v1859
    %v1862 = vmul.f32 %v1846, %v1860
    %v1863 = vlaneseq
    %v1864 = vshrl.u32 %v1863, 7
    %v1865 = vsub.s32 0, %v1864
    %v1866 = vrot.slane %v1836, %v1865
    %v1867 = vmul.f32 %v1861, %v1866
    %v1868 = vmul.f32 %v1862, %v1866
    %v1869 = vlaneseq
    %v1870 = vshrl.u32 %v1869, 7
    %v1871 = vsub.s32 1, %v1870
    %v1872 = vrot.slane %v1836, %v1871
    %v1873 = vadd.f32 %v1867, %v1872
    %v1874 = vadd.f32 %v1868, %v1872
    %s1875 = scalar_lea.vmem %s1, 32
    %v1876 = vld [vmem:[%s1875] sm:$0xff]
    %v1877 = vld [vmem:[%s1875 + $0x8] sm:$0xff]
    %v1878 = vld [vmem:[%s1875 + $0x10] sm:$0xff]
    %v1879 = vld [vmem:[%s1875 + $0x18] sm:$0xff]
    %v1881 = vsel %vm27, %v1873, 0
    %v1884 = vsel %vm27, %v1874, 0
    %1886 = vmatprep.subr.mxu0 0.0
    %1887 = vmatpush1.msra.mxu0 %v1876
    %1888 = vmatprep.subr.mxu0 0.0
    %1889 = vmatpush1.msra.mxu0 %v1877
    %1890 = vmatprep.subr.mxu0 0.0
    %1891 = vmatpush1.msra.mxu0 %v1878
    %1892 = vmatprep.subr.mxu0 0.0
    %1893 = vmatpush1.msra.mxu0 %v1879
    %1894 = vmatprep.subr.mxu0 0.0
    %1895 = vmatpush1.msra.mxu0 0.0
    %1896 = vmatprep.subr.mxu0 0.0
    %1897 = vmatpush1.msra.mxu0 0.0
    %1898 = vmatprep.subr.mxu0 0.0
    %1899 = vmatpush1.msra.mxu0 0.0
    %1900 = vmatprep.subr.mxu0 0.0
    %1901 = vmatpush1.msra.mxu0 0.0
    %1902 = vmatprep.subr.mxu0 0.0
    %1903 = vmatpush1.msra.mxu0 0.0
    %1904 = vmatprep.subr.mxu0 0.0
    %1905 = vmatpush1.msra.mxu0 0.0
    %1906 = vmatprep.subr.mxu0 0.0
    %1907 = vmatpush1.msra.mxu0 0.0
    %1908 = vmatprep.subr.mxu0 0.0
    %1909 = vmatpush1.msra.mxu0 0.0
    %1910 = vmatprep.subr.mxu0 0.0
    %1911 = vmatpush1.msra.mxu0 0.0
    %1912 = vmatprep.subr.mxu0 0.0
    %1913 = vmatpush1.msra.mxu0 0.0
    %1914 = vmatprep.subr.mxu0 0.0
    %1915 = vmatpush1.msra.mxu0 0.0
    %1916 = vmatprep.subr.mxu0 0.0
    %1917 = vmatpush1.msra.mxu0 0.0
    %1918 = vmatprep.subr.mxu0 0.0
    %1919 = vmatpush1.msra.mxu0 0.0
    %1920 = vmatprep.subr.mxu0 0.0
    %1921 = vmatpush1.msra.mxu0 0.0
    %1922 = vmatprep.subr.mxu0 0.0
    %1923 = vmatpush1.msra.mxu0 0.0
    %1924 = vmatprep.subr.mxu0 0.0
    %1925 = vmatpush1.msra.mxu0 0.0
    %1926 = vmatprep.subr.mxu0 0.0
    %1927 = vmatpush1.msra.mxu0 0.0
    %1928 = vmatprep.subr.mxu0 0.0
    %1929 = vmatpush1.msra.mxu0 0.0
    %1930 = vmatprep.subr.mxu0 0.0
    %1931 = vmatpush1.msra.mxu0 0.0
    %1932 = vmatprep.subr.mxu0 0.0
    %1933 = vmatpush1.msra.mxu0 0.0
    %1934 = vmatprep.subr.mxu0 0.0
    %1935 = vmatpush1.msra.mxu0 0.0
    %1936 = vmatprep.subr.mxu0 0.0
    %1937 = vmatpush1.msra.mxu0 0.0
    %1938 = vmatprep.subr.mxu0 0.0
    %1939 = vmatpush1.msra.mxu0 0.0
    %1940 = vmatprep.subr.mxu0 0.0
    %1941 = vmatpush1.msra.mxu0 0.0
    %1942 = vmatprep.subr.mxu0 0.0
    %1943 = vmatpush1.msra.mxu0 0.0
    %1944 = vmatprep.subr.mxu0 0.0
    %1945 = vmatpush1.msra.mxu0 0.0
    %1946 = vmatprep.subr.mxu0 0.0
    %1947 = vmatpush1.msra.mxu0 0.0
    %1948 = vmatprep.subr.mxu0 0.0
    %1949 = vmatpush1.msra.mxu0 0.0
    %1950 = vmatprep.mubr.f32.mxu0 0.0
    %1951 = vmatmul.mubr.f32.gmra.mrb[0].mxu0 %v1881
    %v1952 = vpop.f32.mrb[0].mxu0
    %v1953 = vadd.f32 0.0, %v1952
    %v1954 = vpop.f32.mrb[0].mxu0
    %1955 = vmatprep.mubr.f32.mxu0 0.0
    %1956 = vmatmul.mubr.f32.gmra.mrb[0].mxu0 %v1884
    %v1957 = vpop.f32.mrb[0].mxu0
    %v1958 = vadd.f32 0.0, %v1957
    %v1959 = vpop.f32.mrb[0].mxu0
    %1960 = vdwg.mxu0
    %1962 = vrot.lane.b32.xlu0 %v1953, 96
    %v1963 = vpop.permute.xlu0 %1962
    %v1964 = vsel %vm155, %v1953, 0
    %v1966 = vsel %vm155, %v1963, 0
    %1968 = vmatprep.subr.mxu0 0.0
    %1969 = vmatpush1.xpose.msra.mxu0 %v1966
    %1970 = vmatprep.subr.mxu0 0.0
    %1971 = vmatpush1.xpose.msra.mxu0 0.0
    %1972 = vmatprep.subr.mxu0 0.0
    %1973 = vmatpush1.xpose.msra.mxu0 0.0
    %1974 = vmatprep.subr.mxu0 0.0
    %1975 = vmatpush1.xpose.msra.mxu0 0.0
    %1976 = vmatprep.subr.mxu0 0.0
    %1977 = vmatpush1.xpose.msra.mxu0 0.0
    %1978 = vmatprep.subr.mxu0 0.0
    %1979 = vmatpush1.xpose.msra.mxu0 0.0
    %1980 = vmatprep.subr.mxu0 0.0
    %1981 = vmatpush1.xpose.msra.mxu0 0.0
    %1982 = vmatprep.subr.mxu0 0.0
    %1983 = vmatpush1.xpose.msra.mxu0 0.0
    %1984 = vmatprep.subr.mxu0 0.0
    %1985 = vmatpush1.xpose.msra.mxu0 0.0
    %1986 = vmatprep.subr.mxu0 0.0
    %1987 = vmatpush1.xpose.msra.mxu0 0.0
    %1988 = vmatprep.subr.mxu0 0.0
    %1989 = vmatpush1.xpose.msra.mxu0 0.0
    %1990 = vmatprep.subr.mxu0 0.0
    %1991 = vmatpush1.xpose.msra.mxu0 0.0
    %1992 = vmatprep.subr.mxu0 0.0
    %1993 = vmatpush1.xpose.msra.mxu0 0.0
    %1994 = vmatprep.subr.mxu0 0.0
    %1995 = vmatpush1.xpose.msra.mxu0 0.0
    %1996 = vmatprep.subr.mxu0 0.0
    %1997 = vmatpush1.xpose.msra.mxu0 0.0
    %1998 = vmatprep.subr.mxu0 0.0
    %1999 = vmatpush1.xpose.msra.mxu0 0.0
    %2000 = vmatprep.subr.mxu0 0.0
    %2001 = vmatpush1.xpose.msra.mxu0 0.0
    %2002 = vmatprep.subr.mxu0 0.0
    %2003 = vmatpush1.xpose.msra.mxu0 0.0
    %2004 = vmatprep.subr.mxu0 0.0
    %2005 = vmatpush1.xpose.msra.mxu0 0.0
    %2006 = vmatprep.subr.mxu0 0.0
    %2007 = vmatpush1.xpose.msra.mxu0 0.0
    %2008 = vmatprep.subr.mxu0 0.0
    %2009 = vmatpush1.xpose.msra.mxu0 0.0
    %2010 = vmatprep.subr.mxu0 0.0
    %2011 = vmatpush1.xpose.msra.mxu0 0.0
    %2012 = vmatprep.subr.mxu0 0.0
    %2013 = vmatpush1.xpose.msra.mxu0 0.0
    %2014 = vmatprep.subr.mxu0 0.0
    %2015 = vmatpush1.xpose.msra.mxu0 0.0
    %2016 = vmatprep.subr.mxu0 0.0
    %2017 = vmatpush1.xpose.msra.mxu0 0.0
    %2018 = vmatprep.subr.mxu0 0.0
    %2019 = vmatpush1.xpose.msra.mxu0 0.0
    %2020 = vmatprep.subr.mxu0 0.0
    %2021 = vmatpush1.xpose.msra.mxu0 0.0
    %2022 = vmatprep.subr.mxu0 0.0
    %2023 = vmatpush1.xpose.msra.mxu0 0.0
    %2024 = vmatprep.subr.mxu0 0.0
    %2025 = vmatpush1.xpose.msra.mxu0 0.0
    %2026 = vmatprep.subr.mxu0 0.0
    %2027 = vmatpush1.xpose.msra.mxu0 0.0
    %2028 = vmatprep.subr.mxu0 0.0
    %2029 = vmatpush1.xpose.msra.mxu0 0.0
    %2030 = vmatprep.subr.mxu0 0.0
    %2031 = vmatpush1.xpose.msra.mxu0 0.0
    %2032 = vmatprep.mubr.f32.mxu0 0.0
    %2033 = vmatmul.mubr.f32.gmra.mrb[0].mxu0 %v1964
    %v2034 = vpop.f32.mrb[0].mxu0
    %v2035 = vadd.f32 0.0, %v2034
    %v2036 = vpop.f32.mrb[0].mxu0
    %2037 = vdwg.mxu0
    %2039 = vrot.lane.b32.xlu0 %v1958, 96
    %v2040 = vpop.permute.xlu0 %2039
    %v2041 = vsel %vm155, %v1958, 0
    %v2043 = vsel %vm155, %v2040, 0
    %2045 = vmatprep.subr.mxu0 0.0
    %2046 = vmatpush1.xpose.msra.mxu0 %v2043
    %2047 = vmatprep.subr.mxu0 0.0
    %2048 = vmatpush1.xpose.msra.mxu0 0.0
    %2049 = vmatprep.subr.mxu0 0.0
    %2050 = vmatpush1.xpose.msra.mxu0 0.0
    %2051 = vmatprep.subr.mxu0 0.0
    %2052 = vmatpush1.xpose.msra.mxu0 0.0
    %2053 = vmatprep.subr.mxu0 0.0
    %2054 = vmatpush1.xpose.msra.mxu0 0.0
    %2055 = vmatprep.subr.mxu0 0.0
    %2056 = vmatpush1.xpose.msra.mxu0 0.0
    %2057 = vmatprep.subr.mxu0 0.0
    %2058 = vmatpush1.xpose.msra.mxu0 0.0
    %2059 = vmatprep.subr.mxu0 0.0
    %2060 = vmatpush1.xpose.msra.mxu0 0.0
    %2061 = vmatprep.subr.mxu0 0.0
    %2062 = vmatpush1.xpose.msra.mxu0 0.0
    %2063 = vmatprep.subr.mxu0 0.0
    %2064 = vmatpush1.xpose.msra.mxu0 0.0
    %2065 = vmatprep.subr.mxu0 0.0
    %2066 = vmatpush1.xpose.msra.mxu0 0.0
    %2067 = vmatprep.subr.mxu0 0.0
    %2068 = vmatpush1.xpose.msra.mxu0 0.0
    %2069 = vmatprep.subr.mxu0 0.0
    %2070 = vmatpush1.xpose.msra.mxu0 0.0
    %2071 = vmatprep.subr.mxu0 0.0
    %2072 = vmatpush1.xpose.msra.mxu0 0.0
    %2073 = vmatprep.subr.mxu0 0.0
    %2074 = vmatpush1.xpose.msra.mxu0 0.0
    %2075 = vmatprep.subr.mxu0 0.0
    %2076 = vmatpush1.xpose.msra.mxu0 0.0
    %2077 = vmatprep.subr.mxu0 0.0
    %2078 = vmatpush1.xpose.msra.mxu0 0.0
    %2079 = vmatprep.subr.mxu0 0.0
    %2080 = vmatpush1.xpose.msra.mxu0 0.0
    %2081 = vmatprep.subr.mxu0 0.0
    %2082 = vmatpush1.xpose.msra.mxu0 0.0
    %2083 = vmatprep.subr.mxu0 0.0
    %2084 = vmatpush1.xpose.msra.mxu0 0.0
    %2085 = vmatprep.subr.mxu0 0.0
    %2086 = vmatpush1.xpose.msra.mxu0 0.0
    %2087 = vmatprep.subr.mxu0 0.0
    %2088 = vmatpush1.xpose.msra.mxu0 0.0
    %2089 = vmatprep.subr.mxu0 0.0
    %2090 = vmatpush1.xpose.msra.mxu0 0.0
    %2091 = vmatprep.subr.mxu0 0.0
    %2092 = vmatpush1.xpose.msra.mxu0 0.0
    %2093 = vmatprep.subr.mxu0 0.0
    %2094 = vmatpush1.xpose.msra.mxu0 0.0
    %2095 = vmatprep.subr.mxu0 0.0
    %2096 = vmatpush1.xpose.msra.mxu0 0.0
    %2097 = vmatprep.subr.mxu0 0.0
    %2098 = vmatpush1.xpose.msra.mxu0 0.0
    %2099 = vmatprep.subr.mxu0 0.0
    %2100 = vmatpush1.xpose.msra.mxu0 0.0
    %2101 = vmatprep.subr.mxu0 0.0
    %2102 = vmatpush1.xpose.msra.mxu0 0.0
    %2103 = vmatprep.subr.mxu0 0.0
    %2104 = vmatpush1.xpose.msra.mxu0 0.0
    %2105 = vmatprep.subr.mxu0 0.0
    %2106 = vmatpush1.xpose.msra.mxu0 0.0
    %2107 = vmatprep.subr.mxu0 0.0
    %2108 = vmatpush1.xpose.msra.mxu0 0.0
    %2109 = vmatprep.mubr.f32.mxu0 0.0
    %2110 = vmatmul.mubr.f32.gmra.mrb[0].mxu0 %v2041
    %v2111 = vpop.f32.mrb[0].mxu0
    %v2112 = vadd.f32 0.0, %v2111
    %v2113 = vpop.f32.mrb[0].mxu0
    %2114 = vdwg.mxu0
    %v2115 = vmul.f32 %v2035, 0.35355338
    %v2116 = vmul.f32 %v2112, 0.35355338
    %v2117 = vsel %vm155, %v2115, -inf
    %2118 = vmax.xlane.f32.xlu0 %v2117
    %v2119 = vpop.xlane.xlu0 %2118
    %v2120 = vsel %vm155, %v2116, -inf
    %2121 = vmax.xlane.f32.xlu0 %v2120
    %v2122 = vpop.xlane.xlu0 %2121
    %v2123 = vsub.f32 %v2115, %v2119
    %v2124 = vsub.f32 %v2116, %v2122
    %v2125 = vmul.f32 %v2123, 1.442695
    %v2126 = vpow.pop %v2125
    %v2127 = vmul.f32 %v2124, 1.442695
    %v2128 = vpow.pop %v2127
    %v2129 = vsel %vm155, %v2126, 0.0
    %2130 = vadd.xlane.f32.xlu0 %v2129
    %v2131 = vpop.xlane.xlu0 %2130
    %v2132 = vsel %vm155, %v2128, 0.0
    %2133 = vadd.xlane.f32.xlu0 %v2132
    %v2134 = vpop.xlane.xlu0 %2133
    %v2135 = vrcp.pop %v2131
    %v2136 = vmul.f32 %v2126, %v2135
    %v2137 = vrcp.pop %v2134
    %v2138 = vmul.f32 %v2128, %v2137
    %2139 = vrot.lane.b32.xlu0 %v1953, 64
    %v2140 = vpop.permute.xlu0 %2139
    %v2143 = vsel %vm155, %v2136, 0
    %2145 = vmatprep.subr.mxu0 0.0
    %2146 = vmatpush1.msra.mxu0 %v2140
    %2147 = vmatprep.subr.mxu0 0.0
    %2148 = vmatpush1.msra.mxu0 0.0
    %2149 = vmatprep.subr.mxu0 0.0
    %2150 = vmatpush1.msra.mxu0 0.0
    %2151 = vmatprep.subr.mxu0 0.0
    %2152 = vmatpush1.msra.mxu0 0.0
    %2153 = vmatprep.subr.mxu0 0.0
    %2154 = vmatpush1.msra.mxu0 0.0
    %2155 = vmatprep.subr.mxu0 0.0
    %2156 = vmatpush1.msra.mxu0 0.0
    %2157 = vmatprep.subr.mxu0 0.0
    %2158 = vmatpush1.msra.mxu0 0.0
    %2159 = vmatprep.subr.mxu0 0.0
    %2160 = vmatpush1.msra.mxu0 0.0
    %2161 = vmatprep.subr.mxu0 0.0
    %2162 = vmatpush1.msra.mxu0 0.0
    %2163 = vmatprep.subr.mxu0 0.0
    %2164 = vmatpush1.msra.mxu0 0.0
    %2165 = vmatprep.subr.mxu0 0.0
    %2166 = vmatpush1.msra.mxu0 0.0
    %2167 = vmatprep.subr.mxu0 0.0
    %2168 = vmatpush1.msra.mxu0 0.0
    %2169 = vmatprep.subr.mxu0 0.0
    %2170 = vmatpush1.msra.mxu0 0.0
    %2171 = vmatprep.subr.mxu0 0.0
    %2172 = vmatpush1.msra.mxu0 0.0
    %2173 = vmatprep.subr.mxu0 0.0
    %2174 = vmatpush1.msra.mxu0 0.0
    %2175 = vmatprep.subr.mxu0 0.0
    %2176 = vmatpush1.msra.mxu0 0.0
    %2177 = vmatprep.subr.mxu0 0.0
    %2178 = vmatpush1.msra.mxu0 0.0
    %2179 = vmatprep.subr.mxu0 0.0
    %2180 = vmatpush1.msra.mxu0 0.0
    %2181 = vmatprep.subr.mxu0 0.0
    %2182 = vmatpush1.msra.mxu0 0.0
    %2183 = vmatprep.subr.mxu0 0.0
    %2184 = vmatpush1.msra.mxu0 0.0
    %2185 = vmatprep.subr.mxu0 0.0
    %2186 = vmatpush1.msra.mxu0 0.0
    %2187 = vmatprep.subr.mxu0 0.0
    %2188 = vmatpush1.msra.mxu0 0.0
    %2189 = vmatprep.subr.mxu0 0.0
    %2190 = vmatpush1.msra.mxu0 0.0
    %2191 = vmatprep.subr.mxu0 0.0
    %2192 = vmatpush1.msra.mxu0 0.0
    %2193 = vmatprep.subr.mxu0 0.0
    %2194 = vmatpush1.msra.mxu0 0.0
    %2195 = vmatprep.subr.mxu0 0.0
    %2196 = vmatpush1.msra.mxu0 0.0
    %2197 = vmatprep.subr.mxu0 0.0
    %2198 = vmatpush1.msra.mxu0 0.0
    %2199 = vmatprep.subr.mxu0 0.0
    %2200 = vmatpush1.msra.mxu0 0.0
    %2201 = vmatprep.subr.mxu0 0.0
    %2202 = vmatpush1.msra.mxu0 0.0
    %2203 = vmatprep.subr.mxu0 0.0
    %2204 = vmatpush1.msra.mxu0 0.0
    %2205 = vmatprep.subr.mxu0 0.0
    %2206 = vmatpush1.msra.mxu0 0.0
    %2207 = vmatprep.subr.mxu0 0.0
    %2208 = vmatpush1.msra.mxu0 0.0
    %2209 = vmatprep.mubr.f32.mxu0 0.0
    %2210 = vmatmul.mubr.f32.gmra.mrb[0].mxu0 %v2143
    %v2211 = vpop.f32.mrb[0].mxu0
    %v2212 = vadd.f32 0.0, %v2211
    %v2213 = vpop.f32.mrb[0].mxu0
    %2214 = vdwg.mxu0
    %2215 = vrot.lane.b32.xlu0 %v1958, 64
    %v2216 = vpop.permute.xlu0 %2215
    %v2219 = vsel %vm155, %v2138, 0
    %2221 = vmatprep.subr.mxu0 0.0
    %2222 = vmatpush1.msra.mxu0 %v2216
    %2223 = vmatprep.subr.mxu0 0.0
    %2224 = vmatpush1.msra.mxu0 0.0
    %2225 = vmatprep.subr.mxu0 0.0
    %2226 = vmatpush1.msra.mxu0 0.0
    %2227 = vmatprep.subr.mxu0 0.0
    %2228 = vmatpush1.msra.mxu0 0.0
    %2229 = vmatprep.subr.mxu0 0.0
    %2230 = vmatpush1.msra.mxu0 0.0
    %2231 = vmatprep.subr.mxu0 0.0
    %2232 = vmatpush1.msra.mxu0 0.0
    %2233 = vmatprep.subr.mxu0 0.0
    %2234 = vmatpush1.msra.mxu0 0.0
    %2235 = vmatprep.subr.mxu0 0.0
    %2236 = vmatpush1.msra.mxu0 0.0
    %2237 = vmatprep.subr.mxu0 0.0
    %2238 = vmatpush1.msra.mxu0 0.0
    %2239 = vmatprep.subr.mxu0 0.0
    %2240 = vmatpush1.msra.mxu0 0.0
    %2241 = vmatprep.subr.mxu0 0.0
    %2242 = vmatpush1.msra.mxu0 0.0
    %2243 = vmatprep.subr.mxu0 0.0
    %2244 = vmatpush1.msra.mxu0 0.0
    %2245 = vmatprep.subr.mxu0 0.0
    %2246 = vmatpush1.msra.mxu0 0.0
    %2247 = vmatprep.subr.mxu0 0.0
    %2248 = vmatpush1.msra.mxu0 0.0
    %2249 = vmatprep.subr.mxu0 0.0
    %2250 = vmatpush1.msra.mxu0 0.0
    %2251 = vmatprep.subr.mxu0 0.0
    %2252 = vmatpush1.msra.mxu0 0.0
    %2253 = vmatprep.subr.mxu0 0.0
    %2254 = vmatpush1.msra.mxu0 0.0
    %2255 = vmatprep.subr.mxu0 0.0
    %2256 = vmatpush1.msra.mxu0 0.0
    %2257 = vmatprep.subr.mxu0 0.0
    %2258 = vmatpush1.msra.mxu0 0.0
    %2259 = vmatprep.subr.mxu0 0.0
    %2260 = vmatpush1.msra.mxu0 0.0
    %2261 = vmatprep.subr.mxu0 0.0
    %2262 = vmatpush1.msra.mxu0 0.0
    %2263 = vmatprep.subr.mxu0 0.0
    %2264 = vmatpush1.msra.mxu0 0.0
    %2265 = vmatprep.subr.mxu0 0.0
    %2266 = vmatpush1.msra.mxu0 0.0
    %2267 = vmatprep.subr.mxu0 0.0
    %2268 = vmatpush1.msra.mxu0 0.0
    %2269 = vmatprep.subr.mxu0 0.0
    %2270 = vmatpush1.msra.mxu0 0.0
    %2271 = vmatprep.subr.mxu0 0.0
    %2272 = vmatpush1.msra.mxu0 0.0
    %2273 = vmatprep.subr.mxu0 0.0
    %2274 = vmatpush1.msra.mxu0 0.0
    %2275 = vmatprep.subr.mxu0 0.0
    %2276 = vmatpush1.msra.mxu0 0.0
    %2277 = vmatprep.subr.mxu0 0.0
    %2278 = vmatpush1.msra.mxu0 0.0
    %2279 = vmatprep.subr.mxu0 0.0
    %2280 = vmatpush1.msra.mxu0 0.0
    %2281 = vmatprep.subr.mxu0 0.0
    %2282 = vmatpush1.msra.mxu0 0.0
    %2283 = vmatprep.subr.mxu0 0.0
    %2284 = vmatpush1.msra.mxu0 0.0
    %2285 = vmatprep.mubr.f32.mxu0 0.0
    %2286 = vmatmul.mubr.f32.gmra.mrb[0].mxu0 %v2219
    %v2287 = vpop.f32.mrb[0].mxu0
    %v2288 = vadd.f32 0.0, %v2287
    %v2289 = vpop.f32.mrb[0].mxu0
    %2290 = vdwg.mxu0
    %2291 = vrot.lane.b32.xlu0 %v1953, 120
    %v2292 = vpop.permute.xlu0 %2291
    %2293 = vrot.lane.b32.xlu0 %v1953, 88
    %v2294 = vpop.permute.xlu0 %2293
    %v2295 = vsel %vm155, %v2292, 0
    %v2297 = vsel %vm155, %v2294, 0
    %2299 = vmatprep.subr.mxu0 0.0
    %2300 = vmatpush1.xpose.msra.mxu0 %v2297
    %2301 = vmatprep.subr.mxu0 0.0
    %2302 = vmatpush1.xpose.msra.mxu0 0.0
    %2303 = vmatprep.subr.mxu0 0.0
    %2304 = vmatpush1.xpose.msra.mxu0 0.0
    %2305 = vmatprep.subr.mxu0 0.0
    %2306 = vmatpush1.xpose.msra.mxu0 0.0
    %2307 = vmatprep.subr.mxu0 0.0
    %2308 = vmatpush1.xpose.msra.mxu0 0.0
    %2309 = vmatprep.subr.mxu0 0.0
    %2310 = vmatpush1.xpose.msra.mxu0 0.0
    %2311 = vmatprep.subr.mxu0 0.0
    %2312 = vmatpush1.xpose.msra.mxu0 0.0
    %2313 = vmatprep.subr.mxu0 0.0
    %2314 = vmatpush1.xpose.msra.mxu0 0.0
    %2315 = vmatprep.subr.mxu0 0.0
    %2316 = vmatpush1.xpose.msra.mxu0 0.0
    %2317 = vmatprep.subr.mxu0 0.0
    %2318 = vmatpush1.xpose.msra.mxu0 0.0
    %2319 = vmatprep.subr.mxu0 0.0
    %2320 = vmatpush1.xpose.msra.mxu0 0.0
    %2321 = vmatprep.subr.mxu0 0.0
    %2322 = vmatpush1.xpose.msra.mxu0 0.0
    %2323 = vmatprep.subr.mxu0 0.0
    %2324 = vmatpush1.xpose.msra.mxu0 0.0
    %2325 = vmatprep.subr.mxu0 0.0
    %2326 = vmatpush1.xpose.msra.mxu0 0.0
    %2327 = vmatprep.subr.mxu0 0.0
    %2328 = vmatpush1.xpose.msra.mxu0 0.0
    %2329 = vmatprep.subr.mxu0 0.0
    %2330 = vmatpush1.xpose.msra.mxu0 0.0
    %2331 = vmatprep.subr.mxu0 0.0
    %2332 = vmatpush1.xpose.msra.mxu0 0.0
    %2333 = vmatprep.subr.mxu0 0.0
    %2334 = vmatpush1.xpose.msra.mxu0 0.0
    %2335 = vmatprep.subr.mxu0 0.0
    %2336 = vmatpush1.xpose.msra.mxu0 0.0
    %2337 = vmatprep.subr.mxu0 0.0
    %2338 = vmatpush1.xpose.msra.mxu0 0.0
    %2339 = vmatprep.subr.mxu0 0.0
    %2340 = vmatpush1.xpose.msra.mxu0 0.0
    %2341 = vmatprep.subr.mxu0 0.0
    %2342 = vmatpush1.xpose.msra.mxu0 0.0
    %2343 = vmatprep.subr.mxu0 0.0
    %2344 = vmatpush1.xpose.msra.mxu0 0.0
    %2345 = vmatprep.subr.mxu0 0.0
    %2346 = vmatpush1.xpose.msra.mxu0 0.0
    %2347 = vmatprep.subr.mxu0 0.0
    %2348 = vmatpush1.xpose.msra.mxu0 0.0
    %2349 = vmatprep.subr.mxu0 0.0
    %2350 = vmatpush1.xpose.msra.mxu0 0.0
    %2351 = vmatprep.subr.mxu0 0.0
    %2352 = vmatpush1.xpose.msra.mxu0 0.0
    %2353 = vmatprep.subr.mxu0 0.0
    %2354 = vmatpush1.xpose.msra.mxu0 0.0
    %2355 = vmatprep.subr.mxu0 0.0
    %2356 = vmatpush1.xpose.msra.mxu0 0.0
    %2357 = vmatprep.subr.mxu0 0.0
    %2358 = vmatpush1.xpose.msra.mxu0 0.0
    %2359 = vmatprep.subr.mxu0 0.0
    %2360 = vmatpush1.xpose.msra.mxu0 0.0
    %2361 = vmatprep.subr.mxu0 0.0
    %2362 = vmatpush1.xpose.msra.mxu0 0.0
    %2363 = vmatprep.mubr.f32.mxu0 0.0
    %2364 = vmatmul.mubr.f32.gmra.mrb[0].mxu0 %v2295
    %v2365 = vpop.f32.mrb[0].mxu0
    %v2366 = vadd.f32 0.0, %v2365
    %v2367 = vpop.f32.mrb[0].mxu0
    %2368 = vdwg.mxu0
    %2369 = vrot.lane.b32.xlu0 %v1958, 120
    %v2370 = vpop.permute.xlu0 %2369
    %2371 = vrot.lane.b32.xlu0 %v1958, 88
    %v2372 = vpop.permute.xlu0 %2371
    %v2373 = vsel %vm155, %v2370, 0
    %v2375 = vsel %vm155, %v2372, 0
    %2377 = vmatprep.subr.mxu0 0.0
    %2378 = vmatpush1.xpose.msra.mxu0 %v2375
    %2379 = vmatprep.subr.mxu0 0.0
    %2380 = vmatpush1.xpose.msra.mxu0 0.0
    %2381 = vmatprep.subr.mxu0 0.0
    %2382 = vmatpush1.xpose.msra.mxu0 0.0
    %2383 = vmatprep.subr.mxu0 0.0
    %2384 = vmatpush1.xpose.msra.mxu0 0.0
    %2385 = vmatprep.subr.mxu0 0.0
    %2386 = vmatpush1.xpose.msra.mxu0 0.0
    %2387 = vmatprep.subr.mxu0 0.0
    %2388 = vmatpush1.xpose.msra.mxu0 0.0
    %2389 = vmatprep.subr.mxu0 0.0
    %2390 = vmatpush1.xpose.msra.mxu0 0.0
    %2391 = vmatprep.subr.mxu0 0.0
    %2392 = vmatpush1.xpose.msra.mxu0 0.0
    %2393 = vmatprep.subr.mxu0 0.0
    %2394 = vmatpush1.xpose.msra.mxu0 0.0
    %2395 = vmatprep.subr.mxu0 0.0
    %2396 = vmatpush1.xpose.msra.mxu0 0.0
    %2397 = vmatprep.subr.mxu0 0.0
    %2398 = vmatpush1.xpose.msra.mxu0 0.0
    %2399 = vmatprep.subr.mxu0 0.0
    %2400 = vmatpush1.xpose.msra.mxu0 0.0
    %2401 = vmatprep.subr.mxu0 0.0
    %2402 = vmatpush1.xpose.msra.mxu0 0.0
    %2403 = vmatprep.subr.mxu0 0.0
    %2404 = vmatpush1.xpose.msra.mxu0 0.0
    %2405 = vmatprep.subr.mxu0 0.0
    %2406 = vmatpush1.xpose.msra.mxu0 0.0
    %2407 = vmatprep.subr.mxu0 0.0
    %2408 = vmatpush1.xpose.msra.mxu0 0.0
    %2409 = vmatprep.subr.mxu0 0.0
    %2410 = vmatpush1.xpose.msra.mxu0 0.0
    %2411 = vmatprep.subr.mxu0 0.0
    %2412 = vmatpush1.xpose.msra.mxu0 0.0
    %2413 = vmatprep.subr.mxu0 0.0
    %2414 = vmatpush1.xpose.msra.mxu0 0.0
    %2415 = vmatprep.subr.mxu0 0.0
    %2416 = vmatpush1.xpose.msra.mxu0 0.0
    %2417 = vmatprep.subr.mxu0 0.0
    %2418 = vmatpush1.xpose.msra.mxu0 0.0
    %2419 = vmatprep.subr.mxu0 0.0
    %2420 = vmatpush1.xpose.msra.mxu0 0.0
    %2421 = vmatprep.subr.mxu0 0.0
    %2422 = vmatpush1.xpose.msra.mxu0 0.0
    %2423 = vmatprep.subr.mxu0 0.0
    %2424 = vmatpush1.xpose.msra.mxu0 0.0
    %2425 = vmatprep.subr.mxu0 0.0
    %2426 = vmatpush1.xpose.msra.mxu0 0.0
    %2427 = vmatprep.subr.mxu0 0.0
    %2428 = vmatpush1.xpose.msra.mxu0 0.0
    %2429 = vmatprep.subr.mxu0 0.0
    %2430 = vmatpush1.xpose.msra.mxu0 0.0
    %2431 = vmatprep.subr.mxu0 0.0
    %2432 = vmatpush1.xpose.msra.mxu0 0.0
    %2433 = vmatprep.subr.mxu0 0.0
    %2434 = vmatpush1.xpose.msra.mxu0 0.0
    %2435 = vmatprep.subr.mxu0 0.0
    %2436 = vmatpush1.xpose.msra.mxu0 0.0
    %2437 = vmatprep.subr.mxu0 0.0
    %2438 = vmatpush1.xpose.msra.mxu0 0.0
    %2439 = vmatprep.subr.mxu0 0.0
    %2440 = vmatpush1.xpose.msra.mxu0 0.0
    %2441 = vmatprep.mubr.f32.mxu0 0.0
    %2442 = vmatmul.mubr.f32.gmra.mrb[0].mxu0 %v2373
    %v2443 = vpop.f32.mrb[0].mxu0
    %v2444 = vadd.f32 0.0, %v2443
    %v2445 = vpop.f32.mrb[0].mxu0
    %2446 = vdwg.mxu0
    %v2447 = vmul.f32 %v2366, 0.35355338
    %v2448 = vmul.f32 %v2444, 0.35355338
    %v2449 = vsel %vm155, %v2447, -inf
    %2450 = vmax.xlane.f32.xlu0 %v2449
    %v2451 = vpop.xlane.xlu0 %2450
    %v2452 = vsel %vm155, %v2448, -inf
    %2453 = vmax.xlane.f32.xlu0 %v2452
    %v2454 = vpop.xlane.xlu0 %2453
    %v2455 = vsub.f32 %v2447, %v2451
    %v2456 = vsub.f32 %v2448, %v2454
    %v2457 = vmul.f32 %v2455, 1.442695
    %v2458 = vpow.pop %v2457
    %v2459 = vmul.f32 %v2456, 1.442695
    %v2460 = vpow.pop %v2459
    %v2461 = vsel %vm155, %v2458, 0.0
    %2462 = vadd.xlane.f32.xlu0 %v2461
    %v2463 = vpop.xlane.xlu0 %2462
    %v2464 = vsel %vm155, %v2460, 0.0
    %2465 = vadd.xlane.f32.xlu0 %v2464
    %v2466 = vpop.xlane.xlu0 %2465
    %v2467 = vrcp.pop %v2463
    %v2468 = vmul.f32 %v2458, %v2467
    %v2469 = vrcp.pop %v2466
    %v2470 = vmul.f32 %v2460, %v2469
    %2471 = vrot.lane.b32.xlu0 %v1953, 56
    %v2472 = vpop.permute.xlu0 %2471
    %v2475 = vsel %vm155, %v2468, 0
    %2477 = vmatprep.subr.mxu0 0.0
    %2478 = vmatpush1.msra.mxu0 %v2472
    %2479 = vmatprep.subr.mxu0 0.0
    %2480 = vmatpush1.msra.mxu0 0.0
    %2481 = vmatprep.subr.mxu0 0.0
    %2482 = vmatpush1.msra.mxu0 0.0
    %2483 = vmatprep.subr.mxu0 0.0
    %2484 = vmatpush1.msra.mxu0 0.0
    %2485 = vmatprep.subr.mxu0 0.0
    %2486 = vmatpush1.msra.mxu0 0.0
    %2487 = vmatprep.subr.mxu0 0.0
    %2488 = vmatpush1.msra.mxu0 0.0
    %2489 = vmatprep.subr.mxu0 0.0
    %2490 = vmatpush1.msra.mxu0 0.0
    %2491 = vmatprep.subr.mxu0 0.0
    %2492 = vmatpush1.msra.mxu0 0.0
    %2493 = vmatprep.subr.mxu0 0.0
    %2494 = vmatpush1.msra.mxu0 0.0
    %2495 = vmatprep.subr.mxu0 0.0
    %2496 = vmatpush1.msra.mxu0 0.0
    %2497 = vmatprep.subr.mxu0 0.0
    %2498 = vmatpush1.msra.mxu0 0.0
    %2499 = vmatprep.subr.mxu0 0.0
    %2500 = vmatpush1.msra.mxu0 0.0
    %2501 = vmatprep.subr.mxu0 0.0
    %2502 = vmatpush1.msra.mxu0 0.0
    %2503 = vmatprep.subr.mxu0 0.0
    %2504 = vmatpush1.msra.mxu0 0.0
    %2505 = vmatprep.subr.mxu0 0.0
    %2506 = vmatpush1.msra.mxu0 0.0
    %2507 = vmatprep.subr.mxu0 0.0
    %2508 = vmatpush1.msra.mxu0 0.0
    %2509 = vmatprep.subr.mxu0 0.0
    %2510 = vmatpush1.msra.mxu0 0.0
    %2511 = vmatprep.subr.mxu0 0.0
    %2512 = vmatpush1.msra.mxu0 0.0
    %2513 = vmatprep.subr.mxu0 0.0
    %2514 = vmatpush1.msra.mxu0 0.0
    %2515 = vmatprep.subr.mxu0 0.0
    %2516 = vmatpush1.msra.mxu0 0.0
    %2517 = vmatprep.subr.mxu0 0.0
    %2518 = vmatpush1.msra.mxu0 0.0
    %2519 = vmatprep.subr.mxu0 0.0
    %2520 = vmatpush1.msra.mxu0 0.0
    %2521 = vmatprep.subr.mxu0 0.0
    %2522 = vmatpush1.msra.mxu0 0.0
    %2523 = vmatprep.subr.mxu0 0.0
    %2524 = vmatpush1.msra.mxu0 0.0
    %2525 = vmatprep.subr.mxu0 0.0
    %2526 = vmatpush1.msra.mxu0 0.0
    %2527 = vmatprep.subr.mxu0 0.0
    %2528 = vmatpush1.msra.mxu0 0.0
    %2529 = vmatprep.subr.mxu0 0.0
    %2530 = vmatpush1.msra.mxu0 0.0
    %2531 = vmatprep.subr.mxu0 0.0
    %2532 = vmatpush1.msra.mxu0 0.0
    %2533 = vmatprep.subr.mxu0 0.0
    %2534 = vmatpush1.msra.mxu0 0.0
    %2535 = vmatprep.subr.mxu0 0.0
    %2536 = vmatpush1.msra.mxu0 0.0
    %2537 = vmatprep.subr.mxu0 0.0
    %2538 = vmatpush1.msra.mxu0 0.0
    %2539 = vmatprep.subr.mxu0 0.0
    %2540 = vmatpush1.msra.mxu0 0.0
    %2541 = vmatprep.mubr.f32.mxu0 0.0
    %2542 = vmatmul.mubr.f32.gmra.mrb[0].mxu0 %v2475
    %v2543 = vpop.f32.mrb[0].mxu0
    %v2544 = vadd.f32 0.0, %v2543
    %v2545 = vpop.f32.mrb[0].mxu0
    %2546 = vdwg.mxu0
    %2547 = vrot.lane.b32.xlu0 %v1958, 56
    %v2548 = vpop.permute.xlu0 %2547
    %v2551 = vsel %vm155, %v2470, 0
    %2553 = vmatprep.subr.mxu0 0.0
    %2554 = vmatpush1.msra.mxu0 %v2548
    %2555 = vmatprep.subr.mxu0 0.0
    %2556 = vmatpush1.msra.mxu0 0.0
    %2557 = vmatprep.subr.mxu0 0.0
    %2558 = vmatpush1.msra.mxu0 0.0
    %2559 = vmatprep.subr.mxu0 0.0
    %2560 = vmatpush1.msra.mxu0 0.0
    %2561 = vmatprep.subr.mxu0 0.0
    %2562 = vmatpush1.msra.mxu0 0.0
    %2563 = vmatprep.subr.mxu0 0.0
    %2564 = vmatpush1.msra.mxu0 0.0
    %2565 = vmatprep.subr.mxu0 0.0
    %2566 = vmatpush1.msra.mxu0 0.0
    %2567 = vmatprep.subr.mxu0 0.0
    %2568 = vmatpush1.msra.mxu0 0.0
    %2569 = vmatprep.subr.mxu0 0.0
    %2570 = vmatpush1.msra.mxu0 0.0
    %2571 = vmatprep.subr.mxu0 0.0
    %2572 = vmatpush1.msra.mxu0 0.0
    %2573 = vmatprep.subr.mxu0 0.0
    %2574 = vmatpush1.msra.mxu0 0.0
    %2575 = vmatprep.subr.mxu0 0.0
    %2576 = vmatpush1.msra.mxu0 0.0
    %2577 = vmatprep.subr.mxu0 0.0
    %2578 = vmatpush1.msra.mxu0 0.0
    %2579 = vmatprep.subr.mxu0 0.0
    %2580 = vmatpush1.msra.mxu0 0.0
    %2581 = vmatprep.subr.mxu0 0.0
    %2582 = vmatpush1.msra.mxu0 0.0
    %2583 = vmatprep.subr.mxu0 0.0
    %2584 = vmatpush1.msra.mxu0 0.0
    %2585 = vmatprep.subr.mxu0 0.0
    %2586 = vmatpush1.msra.mxu0 0.0
    %2587 = vmatprep.subr.mxu0 0.0
    %2588 = vmatpush1.msra.mxu0 0.0
    %2589 = vmatprep.subr.mxu0 0.0
    %2590 = vmatpush1.msra.mxu0 0.0
    %2591 = vmatprep.subr.mxu0 0.0
    %2592 = vmatpush1.msra.mxu0 0.0
    %2593 = vmatprep.subr.mxu0 0.0
    %2594 = vmatpush1.msra.mxu0 0.0
    %2595 = vmatprep.subr.mxu0 0.0
    %2596 = vmatpush1.msra.mxu0 0.0
    %2597 = vmatprep.subr.mxu0 0.0
    %2598 = vmatpush1.msra.mxu0 0.0
    %2599 = vmatprep.subr.mxu0 0.0
    %2600 = vmatpush1.msra.mxu0 0.0
    %2601 = vmatprep.subr.mxu0 0.0
    %2602 = vmatpush1.msra.mxu0 0.0
    %2603 = vmatprep.subr.mxu0 0.0
    %2604 = vmatpush1.msra.mxu0 0.0
    %2605 = vmatprep.subr.mxu0 0.0
    %2606 = vmatpush1.msra.mxu0 0.0
    %2607 = vmatprep.subr.mxu0 0.0
    %2608 = vmatpush1.msra.mxu0 0.0
    %2609 = vmatprep.subr.mxu0 0.0
    %2610 = vmatpush1.msra.mxu0 0.0
    %2611 = vmatprep.subr.mxu0 0.0
    %2612 = vmatpush1.msra.mxu0 0.0
    %2613 = vmatprep.subr.mxu0 0.0
    %2614 = vmatpush1.msra.mxu0 0.0
    %2615 = vmatprep.subr.mxu0 0.0
    %2616 = vmatpush1.msra.mxu0 0.0
    %2617 = vmatprep.mubr.f32.mxu0 0.0
    %2618 = vmatmul.mubr.f32.gmra.mrb[0].mxu0 %v2551
    %v2619 = vpop.f32.mrb[0].mxu0
    %v2620 = vadd.f32 0.0, %v2619
    %v2621 = vpop.f32.mrb[0].mxu0
    %2622 = vdwg.mxu0
    %2623 = vrot.lane.b32.xlu0 %v1953, 112
    %v2624 = vpop.permute.xlu0 %2623
    %2625 = vrot.lane.b32.xlu0 %v1953, 80
    %v2626 = vpop.permute.xlu0 %2625
    %v2627 = vsel %vm155, %v2624, 0
    %v2629 = vsel %vm155, %v2626, 0
    %2631 = vmatprep.subr.mxu0 0.0
    %2632 = vmatpush1.xpose.msra.mxu0 %v2629
    %2633 = vmatprep.subr.mxu0 0.0
    %2634 = vmatpush1.xpose.msra.mxu0 0.0
    %2635 = vmatprep.subr.mxu0 0.0
    %2636 = vmatpush1.xpose.msra.mxu0 0.0
    %2637 = vmatprep.subr.mxu0 0.0
    %2638 = vmatpush1.xpose.msra.mxu0 0.0
    %2639 = vmatprep.subr.mxu0 0.0
    %2640 = vmatpush1.xpose.msra.mxu0 0.0
    %2641 = vmatprep.subr.mxu0 0.0
    %2642 = vmatpush1.xpose.msra.mxu0 0.0
    %2643 = vmatprep.subr.mxu0 0.0
    %2644 = vmatpush1.xpose.msra.mxu0 0.0
    %2645 = vmatprep.subr.mxu0 0.0
    %2646 = vmatpush1.xpose.msra.mxu0 0.0
    %2647 = vmatprep.subr.mxu0 0.0
    %2648 = vmatpush1.xpose.msra.mxu0 0.0
    %2649 = vmatprep.subr.mxu0 0.0
    %2650 = vmatpush1.xpose.msra.mxu0 0.0
    %2651 = vmatprep.subr.mxu0 0.0
    %2652 = vmatpush1.xpose.msra.mxu0 0.0
    %2653 = vmatprep.subr.mxu0 0.0
    %2654 = vmatpush1.xpose.msra.mxu0 0.0
    %2655 = vmatprep.subr.mxu0 0.0
    %2656 = vmatpush1.xpose.msra.mxu0 0.0
    %2657 = vmatprep.subr.mxu0 0.0
    %2658 = vmatpush1.xpose.msra.mxu0 0.0
    %2659 = vmatprep.subr.mxu0 0.0
    %2660 = vmatpush1.xpose.msra.mxu0 0.0
    %2661 = vmatprep.subr.mxu0 0.0
    %2662 = vmatpush1.xpose.msra.mxu0 0.0
    %2663 = vmatprep.subr.mxu0 0.0
    %2664 = vmatpush1.xpose.msra.mxu0 0.0
    %2665 = vmatprep.subr.mxu0 0.0
    %2666 = vmatpush1.xpose.msra.mxu0 0.0
    %2667 = vmatprep.subr.mxu0 0.0
    %2668 = vmatpush1.xpose.msra.mxu0 0.0
    %2669 = vmatprep.subr.mxu0 0.0
    %2670 = vmatpush1.xpose.msra.mxu0 0.0
    %2671 = vmatprep.subr.mxu0 0.0
    %2672 = vmatpush1.xpose.msra.mxu0 0.0
    %2673 = vmatprep.subr.mxu0 0.0
    %2674 = vmatpush1.xpose.msra.mxu0 0.0
    %2675 = vmatprep.subr.mxu0 0.0
    %2676 = vmatpush1.xpose.msra.mxu0 0.0
    %2677 = vmatprep.subr.mxu0 0.0
    %2678 = vmatpush1.xpose.msra.mxu0 0.0
    %2679 = vmatprep.subr.mxu0 0.0
    %2680 = vmatpush1.xpose.msra.mxu0 0.0
    %2681 = vmatprep.subr.mxu0 0.0
    %2682 = vmatpush1.xpose.msra.mxu0 0.0
    %2683 = vmatprep.subr.mxu0 0.0
    %2684 = vmatpush1.xpose.msra.mxu0 0.0
    %2685 = vmatprep.subr.mxu0 0.0
    %2686 = vmatpush1.xpose.msra.mxu0 0.0
    %2687 = vmatprep.subr.mxu0 0.0
    %2688 = vmatpush1.xpose.msra.mxu0 0.0
    %2689 = vmatprep.subr.mxu0 0.0
    %2690 = vmatpush1.xpose.msra.mxu0 0.0
    %2691 = vmatprep.subr.mxu0 0.0
    %2692 = vmatpush1.xpose.msra.mxu0 0.0
    %2693 = vmatprep.subr.mxu0 0.0
    %2694 = vmatpush1.xpose.msra.mxu0 0.0
    %2695 = vmatprep.mubr.f32.mxu0 0.0
    %2696 = vmatmul.mubr.f32.gmra.mrb[0].mxu0 %v2627
    %v2697 = vpop.f32.mrb[0].mxu0
    %v2698 = vadd.f32 0.0, %v2697
    %v2699 = vpop.f32.mrb[0].mxu0
    %2700 = vdwg.mxu0
    %2701 = vrot.lane.b32.xlu0 %v1958, 112
    %v2702 = vpop.permute.xlu0 %2701
    %2703 = vrot.lane.b32.xlu0 %v1958, 80
    %v2704 = vpop.permute.xlu0 %2703
    %v2705 = vsel %vm155, %v2702, 0
    %v2707 = vsel %vm155, %v2704, 0
    %2709 = vmatprep.subr.mxu0 0.0
    %2710 = vmatpush1.xpose.msra.mxu0 %v2707
    %2711 = vmatprep.subr.mxu0 0.0
    %2712 = vmatpush1.xpose.msra.mxu0 0.0
    %2713 = vmatprep.subr.mxu0 0.0
    %2714 = vmatpush1.xpose.msra.mxu0 0.0
    %2715 = vmatprep.subr.mxu0 0.0
    %2716 = vmatpush1.xpose.msra.mxu0 0.0
    %2717 = vmatprep.subr.mxu0 0.0
    %2718 = vmatpush1.xpose.msra.mxu0 0.0
    %2719 = vmatprep.subr.mxu0 0.0
    %2720 = vmatpush1.xpose.msra.mxu0 0.0
    %2721 = vmatprep.subr.mxu0 0.0
    %2722 = vmatpush1.xpose.msra.mxu0 0.0
    %2723 = vmatprep.subr.mxu0 0.0
    %2724 = vmatpush1.xpose.msra.mxu0 0.0
    %2725 = vmatprep.subr.mxu0 0.0
    %2726 = vmatpush1.xpose.msra.mxu0 0.0
    %2727 = vmatprep.subr.mxu0 0.0
    %2728 = vmatpush1.xpose.msra.mxu0 0.0
    %2729 = vmatprep.subr.mxu0 0.0
    %2730 = vmatpush1.xpose.msra.mxu0 0.0
    %2731 = vmatprep.subr.mxu0 0.0
    %2732 = vmatpush1.xpose.msra.mxu0 0.0
    %2733 = vmatprep.subr.mxu0 0.0
    %2734 = vmatpush1.xpose.msra.mxu0 0.0
    %2735 = vmatprep.subr.mxu0 0.0
    %2736 = vmatpush1.xpose.msra.mxu0 0.0
    %2737 = vmatprep.subr.mxu0 0.0
    %2738 = vmatpush1.xpose.msra.mxu0 0.0
    %2739 = vmatprep.subr.mxu0 0.0
    %2740 = vmatpush1.xpose.msra.mxu0 0.0
    %2741 = vmatprep.subr.mxu0 0.0
    %2742 = vmatpush1.xpose.msra.mxu0 0.0
    %2743 = vmatprep.subr.mxu0 0.0
    %2744 = vmatpush1.xpose.msra.mxu0 0.0
    %2745 = vmatprep.subr.mxu0 0.0
    %2746 = vmatpush1.xpose.msra.mxu0 0.0
    %2747 = vmatprep.subr.mxu0 0.0
    %2748 = vmatpush1.xpose.msra.mxu0 0.0
    %2749 = vmatprep.subr.mxu0 0.0
    %2750 = vmatpush1.xpose.msra.mxu0 0.0
    %2751 = vmatprep.subr.mxu0 0.0
    %2752 = vmatpush1.xpose.msra.mxu0 0.0
    %2753 = vmatprep.subr.mxu0 0.0
    %2754 = vmatpush1.xpose.msra.mxu0 0.0
    %2755 = vmatprep.subr.mxu0 0.0
    %2756 = vmatpush1.xpose.msra.mxu0 0.0
    %2757 = vmatprep.subr.mxu0 0.0
    %2758 = vmatpush1.xpose.msra.mxu0 0.0
    %2759 = vmatprep.subr.mxu0 0.0
    %2760 = vmatpush1.xpose.msra.mxu0 0.0
    %2761 = vmatprep.subr.mxu0 0.0
    %2762 = vmatpush1.xpose.msra.mxu0 0.0
    %2763 = vmatprep.subr.mxu0 0.0
    %2764 = vmatpush1.xpose.msra.mxu0 0.0
    %2765 = vmatprep.subr.mxu0 0.0
    %2766 = vmatpush1.xpose.msra.mxu0 0.0
    %2767 = vmatprep.subr.mxu0 0.0
    %2768 = vmatpush1.xpose.msra.mxu0 0.0
    %2769 = vmatprep.subr.mxu0 0.0
    %2770 = vmatpush1.xpose.msra.mxu0 0.0
    %2771 = vmatprep.subr.mxu0 0.0
    %2772 = vmatpush1.xpose.msra.mxu0 0.0
    %2773 = vmatprep.mubr.f32.mxu0 0.0
    %2774 = vmatmul.mubr.f32.gmra.mrb[0].mxu0 %v2705
    %v2775 = vpop.f32.mrb[0].mxu0
    %v2776 = vadd.f32 0.0, %v2775
    %v2777 = vpop.f32.mrb[0].mxu0
    %2778 = vdwg.mxu0
    %v2779 = vmul.f32 %v2698, 0.35355338
    %v2780 = vmul.f32 %v2776, 0.35355338
    %v2781 = vsel %vm155, %v2779, -inf
    %2782 = vmax.xlane.f32.xlu0 %v2781
    %v2783 = vpop.xlane.xlu0 %2782
    %v2784 = vsel %vm155, %v2780, -inf
    %2785 = vmax.xlane.f32.xlu0 %v2784
    %v2786 = vpop.xlane.xlu0 %2785
    %v2787 = vsub.f32 %v2779, %v2783
    %v2788 = vsub.f32 %v2780, %v2786
    %v2789 = vmul.f32 %v2787, 1.442695
    %v2790 = vpow.pop %v2789
    %v2791 = vmul.f32 %v2788, 1.442695
    %v2792 = vpow.pop %v2791
    %v2793 = vsel %vm155, %v2790, 0.0
    %2794 = vadd.xlane.f32.xlu0 %v2793
    %v2795 = vpop.xlane.xlu0 %2794
    %v2796 = vsel %vm155, %v2792, 0.0
    %2797 = vadd.xlane.f32.xlu0 %v2796
    %v2798 = vpop.xlane.xlu0 %2797
    %v2799 = vrcp.pop %v2795
    %v2800 = vmul.f32 %v2790, %v2799
    %v2801 = vrcp.pop %v2798
    %v2802 = vmul.f32 %v2792, %v2801
    %2803 = vrot.lane.b32.xlu0 %v1953, 48
    %v2804 = vpop.permute.xlu0 %2803
    %v2807 = vsel %vm155, %v2800, 0
    %2809 = vmatprep.subr.mxu0 0.0
    %2810 = vmatpush1.msra.mxu0 %v2804
    %2811 = vmatprep.subr.mxu0 0.0
    %2812 = vmatpush1.msra.mxu0 0.0
    %2813 = vmatprep.subr.mxu0 0.0
    %2814 = vmatpush1.msra.mxu0 0.0
    %2815 = vmatprep.subr.mxu0 0.0
    %2816 = vmatpush1.msra.mxu0 0.0
    %2817 = vmatprep.subr.mxu0 0.0
    %2818 = vmatpush1.msra.mxu0 0.0
    %2819 = vmatprep.subr.mxu0 0.0
    %2820 = vmatpush1.msra.mxu0 0.0
    %2821 = vmatprep.subr.mxu0 0.0
    %2822 = vmatpush1.msra.mxu0 0.0
    %2823 = vmatprep.subr.mxu0 0.0
    %2824 = vmatpush1.msra.mxu0 0.0
    %2825 = vmatprep.subr.mxu0 0.0
    %2826 = vmatpush1.msra.mxu0 0.0
    %2827 = vmatprep.subr.mxu0 0.0
    %2828 = vmatpush1.msra.mxu0 0.0
    %2829 = vmatprep.subr.mxu0 0.0
    %2830 = vmatpush1.msra.mxu0 0.0
    %2831 = vmatprep.subr.mxu0 0.0
    %2832 = vmatpush1.msra.mxu0 0.0
    %2833 = vmatprep.subr.mxu0 0.0
    %2834 = vmatpush1.msra.mxu0 0.0
    %2835 = vmatprep.subr.mxu0 0.0
    %2836 = vmatpush1.msra.mxu0 0.0
    %2837 = vmatprep.subr.mxu0 0.0
    %2838 = vmatpush1.msra.mxu0 0.0
    %2839 = vmatprep.subr.mxu0 0.0
    %2840 = vmatpush1.msra.mxu0 0.0
    %2841 = vmatprep.subr.mxu0 0.0
    %2842 = vmatpush1.msra.mxu0 0.0
    %2843 = vmatprep.subr.mxu0 0.0
    %2844 = vmatpush1.msra.mxu0 0.0
    %2845 = vmatprep.subr.mxu0 0.0
    %2846 = vmatpush1.msra.mxu0 0.0
    %2847 = vmatprep.subr.mxu0 0.0
    %2848 = vmatpush1.msra.mxu0 0.0
    %2849 = vmatprep.subr.mxu0 0.0
    %2850 = vmatpush1.msra.mxu0 0.0
    %2851 = vmatprep.subr.mxu0 0.0
    %2852 = vmatpush1.msra.mxu0 0.0
    %2853 = vmatprep.subr.mxu0 0.0
    %2854 = vmatpush1.msra.mxu0 0.0
    %2855 = vmatprep.subr.mxu0 0.0
    %2856 = vmatpush1.msra.mxu0 0.0
    %2857 = vmatprep.subr.mxu0 0.0
    %2858 = vmatpush1.msra.mxu0 0.0
    %2859 = vmatprep.subr.mxu0 0.0
    %2860 = vmatpush1.msra.mxu0 0.0
    %2861 = vmatprep.subr.mxu0 0.0
    %2862 = vmatpush1.msra.mxu0 0.0
    %2863 = vmatprep.subr.mxu0 0.0
    %2864 = vmatpush1.msra.mxu0 0.0
    %2865 = vmatprep.subr.mxu0 0.0
    %2866 = vmatpush1.msra.mxu0 0.0
    %2867 = vmatprep.subr.mxu0 0.0
    %2868 = vmatpush1.msra.mxu0 0.0
    %2869 = vmatprep.subr.mxu0 0.0
    %2870 = vmatpush1.msra.mxu0 0.0
    %2871 = vmatprep.subr.mxu0 0.0
    %2872 = vmatpush1.msra.mxu0 0.0
    %2873 = vmatprep.mubr.f32.mxu0 0.0
    %2874 = vmatmul.mubr.f32.gmra.mrb[0].mxu0 %v2807
    %v2875 = vpop.f32.mrb[0].mxu0
    %v2876 = vadd.f32 0.0, %v2875
    %v2877 = vpop.f32.mrb[0].mxu0
    %2878 = vdwg.mxu0
    %2879 = vrot.lane.b32.xlu0 %v1958, 48
    %v2880 = vpop.permute.xlu0 %2879
    %v2883 = vsel %vm155, %v2802, 0
    %2885 = vmatprep.subr.mxu0 0.0
    %2886 = vmatpush1.msra.mxu0 %v2880
    %2887 = vmatprep.subr.mxu0 0.0
    %2888 = vmatpush1.msra.mxu0 0.0
    %2889 = vmatprep.subr.mxu0 0.0
    %2890 = vmatpush1.msra.mxu0 0.0
    %2891 = vmatprep.subr.mxu0 0.0
    %2892 = vmatpush1.msra.mxu0 0.0
    %2893 = vmatprep.subr.mxu0 0.0
    %2894 = vmatpush1.msra.mxu0 0.0
    %2895 = vmatprep.subr.mxu0 0.0
    %2896 = vmatpush1.msra.mxu0 0.0
    %2897 = vmatprep.subr.mxu0 0.0
    %2898 = vmatpush1.msra.mxu0 0.0
    %2899 = vmatprep.subr.mxu0 0.0
    %2900 = vmatpush1.msra.mxu0 0.0
    %2901 = vmatprep.subr.mxu0 0.0
    %2902 = vmatpush1.msra.mxu0 0.0
    %2903 = vmatprep.subr.mxu0 0.0
    %2904 = vmatpush1.msra.mxu0 0.0
    %2905 = vmatprep.subr.mxu0 0.0
    %2906 = vmatpush1.msra.mxu0 0.0
    %2907 = vmatprep.subr.mxu0 0.0
    %2908 = vmatpush1.msra.mxu0 0.0
    %2909 = vmatprep.subr.mxu0 0.0
    %2910 = vmatpush1.msra.mxu0 0.0
    %2911 = vmatprep.subr.mxu0 0.0
    %2912 = vmatpush1.msra.mxu0 0.0
    %2913 = vmatprep.subr.mxu0 0.0
    %2914 = vmatpush1.msra.mxu0 0.0
    %2915 = vmatprep.subr.mxu0 0.0
    %2916 = vmatpush1.msra.mxu0 0.0
    %2917 = vmatprep.subr.mxu0 0.0
    %2918 = vmatpush1.msra.mxu0 0.0
    %2919 = vmatprep.subr.mxu0 0.0
    %2920 = vmatpush1.msra.mxu0 0.0
    %2921 = vmatprep.subr.mxu0 0.0
    %2922 = vmatpush1.msra.mxu0 0.0
    %2923 = vmatprep.subr.mxu0 0.0
    %2924 = vmatpush1.msra.mxu0 0.0
    %2925 = vmatprep.subr.mxu0 0.0
    %2926 = vmatpush1.msra.mxu0 0.0
    %2927 = vmatprep.subr.mxu0 0.0
    %2928 = vmatpush1.msra.mxu0 0.0
    %2929 = vmatprep.subr.mxu0 0.0
    %2930 = vmatpush1.msra.mxu0 0.0
    %2931 = vmatprep.subr.mxu0 0.0
    %2932 = vmatpush1.msra.mxu0 0.0
    %2933 = vmatprep.subr.mxu0 0.0
    %2934 = vmatpush1.msra.mxu0 0.0
    %2935 = vmatprep.subr.mxu0 0.0
    %2936 = vmatpush1.msra.mxu0 0.0
    %2937 = vmatprep.subr.mxu0 0.0
    %2938 = vmatpush1.msra.mxu0 0.0
    %2939 = vmatprep.subr.mxu0 0.0
    %2940 = vmatpush1.msra.mxu0 0.0
    %2941 = vmatprep.subr.mxu0 0.0
    %2942 = vmatpush1.msra.mxu0 0.0
    %2943 = vmatprep.subr.mxu0 0.0
    %2944 = vmatpush1.msra.mxu0 0.0
    %2945 = vmatprep.subr.mxu0 0.0
    %2946 = vmatpush1.msra.mxu0 0.0
    %2947 = vmatprep.subr.mxu0 0.0
    %2948 = vmatpush1.msra.mxu0 0.0
    %2949 = vmatprep.mubr.f32.mxu0 0.0
    %2950 = vmatmul.mubr.f32.gmra.mrb[0].mxu0 %v2883
    %v2951 = vpop.f32.mrb[0].mxu0
    %v2952 = vadd.f32 0.0, %v2951
    %v2953 = vpop.f32.mrb[0].mxu0
    %2954 = vdwg.mxu0
    %2955 = vrot.lane.b32.xlu0 %v1953, 104
    %v2956 = vpop.permute.xlu0 %2955
    %2957 = vrot.lane.b32.xlu0 %v1953, 72
    %v2958 = vpop.permute.xlu0 %2957
    %v2959 = vsel %vm155, %v2956, 0
    %v2961 = vsel %vm155, %v2958, 0
    %2963 = vmatprep.subr.mxu0 0.0
    %2964 = vmatpush1.xpose.msra.mxu0 %v2961
    %2965 = vmatprep.subr.mxu0 0.0
    %2966 = vmatpush1.xpose.msra.mxu0 0.0
    %2967 = vmatprep.subr.mxu0 0.0
    %2968 = vmatpush1.xpose.msra.mxu0 0.0
    %2969 = vmatprep.subr.mxu0 0.0
    %2970 = vmatpush1.xpose.msra.mxu0 0.0
    %2971 = vmatprep.subr.mxu0 0.0
    %2972 = vmatpush1.xpose.msra.mxu0 0.0
    %2973 = vmatprep.subr.mxu0 0.0
    %2974 = vmatpush1.xpose.msra.mxu0 0.0
    %2975 = vmatprep.subr.mxu0 0.0
    %2976 = vmatpush1.xpose.msra.mxu0 0.0
    %2977 = vmatprep.subr.mxu0 0.0
    %2978 = vmatpush1.xpose.msra.mxu0 0.0
    %2979 = vmatprep.subr.mxu0 0.0
    %2980 = vmatpush1.xpose.msra.mxu0 0.0
    %2981 = vmatprep.subr.mxu0 0.0
    %2982 = vmatpush1.xpose.msra.mxu0 0.0
    %2983 = vmatprep.subr.mxu0 0.0
    %2984 = vmatpush1.xpose.msra.mxu0 0.0
    %2985 = vmatprep.subr.mxu0 0.0
    %2986 = vmatpush1.xpose.msra.mxu0 0.0
    %2987 = vmatprep.subr.mxu0 0.0
    %2988 = vmatpush1.xpose.msra.mxu0 0.0
    %2989 = vmatprep.subr.mxu0 0.0
    %2990 = vmatpush1.xpose.msra.mxu0 0.0
    %2991 = vmatprep.subr.mxu0 0.0
    %2992 = vmatpush1.xpose.msra.mxu0 0.0
    %2993 = vmatprep.subr.mxu0 0.0
    %2994 = vmatpush1.xpose.msra.mxu0 0.0
    %2995 = vmatprep.subr.mxu0 0.0
    %2996 = vmatpush1.xpose.msra.mxu0 0.0
    %2997 = vmatprep.subr.mxu0 0.0
    %2998 = vmatpush1.xpose.msra.mxu0 0.0
    %2999 = vmatprep.subr.mxu0 0.0
    %3000 = vmatpush1.xpose.msra.mxu0 0.0
    %3001 = vmatprep.subr.mxu0 0.0
    %3002 = vmatpush1.xpose.msra.mxu0 0.0
    %3003 = vmatprep.subr.mxu0 0.0
    %3004 = vmatpush1.xpose.msra.mxu0 0.0
    %3005 = vmatprep.subr.mxu0 0.0
    %3006 = vmatpush1.xpose.msra.mxu0 0.0
    %3007 = vmatprep.subr.mxu0 0.0
    %3008 = vmatpush1.xpose.msra.mxu0 0.0
    %3009 = vmatprep.subr.mxu0 0.0
    %3010 = vmatpush1.xpose.msra.mxu0 0.0
    %3011 = vmatprep.subr.mxu0 0.0
    %3012 = vmatpush1.xpose.msra.mxu0 0.0
    %3013 = vmatprep.subr.mxu0 0.0
    %3014 = vmatpush1.xpose.msra.mxu0 0.0
    %3015 = vmatprep.subr.mxu0 0.0
    %3016 = vmatpush1.xpose.msra.mxu0 0.0
    %3017 = vmatprep.subr.mxu0 0.0
    %3018 = vmatpush1.xpose.msra.mxu0 0.0
    %3019 = vmatprep.subr.mxu0 0.0
    %3020 = vmatpush1.xpose.msra.mxu0 0.0
    %3021 = vmatprep.subr.mxu0 0.0
    %3022 = vmatpush1.xpose.msra.mxu0 0.0
    %3023 = vmatprep.subr.mxu0 0.0
    %3024 = vmatpush1.xpose.msra.mxu0 0.0
    %3025 = vmatprep.subr.mxu0 0.0
    %3026 = vmatpush1.xpose.msra.mxu0 0.0
    %3027 = vmatprep.mubr.f32.mxu0 0.0
    %3028 = vmatmul.mubr.f32.gmra.mrb[0].mxu0 %v2959
    %v3029 = vpop.f32.mrb[0].mxu0
    %v3030 = vadd.f32 0.0, %v3029
    %v3031 = vpop.f32.mrb[0].mxu0
    %3032 = vdwg.mxu0
    %3033 = vrot.lane.b32.xlu0 %v1958, 104
    %v3034 = vpop.permute.xlu0 %3033
    %3035 = vrot.lane.b32.xlu0 %v1958, 72
    %v3036 = vpop.permute.xlu0 %3035
    %v3037 = vsel %vm155, %v3034, 0
    %v3039 = vsel %vm155, %v3036, 0
    %3041 = vmatprep.subr.mxu0 0.0
    %3042 = vmatpush1.xpose.msra.mxu0 %v3039
    %3043 = vmatprep.subr.mxu0 0.0
    %3044 = vmatpush1.xpose.msra.mxu0 0.0
    %3045 = vmatprep.subr.mxu0 0.0
    %3046 = vmatpush1.xpose.msra.mxu0 0.0
    %3047 = vmatprep.subr.mxu0 0.0
    %3048 = vmatpush1.xpose.msra.mxu0 0.0
    %3049 = vmatprep.subr.mxu0 0.0
    %3050 = vmatpush1.xpose.msra.mxu0 0.0
    %3051 = vmatprep.subr.mxu0 0.0
    %3052 = vmatpush1.xpose.msra.mxu0 0.0
    %3053 = vmatprep.subr.mxu0 0.0
    %3054 = vmatpush1.xpose.msra.mxu0 0.0
    %3055 = vmatprep.subr.mxu0 0.0
    %3056 = vmatpush1.xpose.msra.mxu0 0.0
    %3057 = vmatprep.subr.mxu0 0.0
    %3058 = vmatpush1.xpose.msra.mxu0 0.0
    %3059 = vmatprep.subr.mxu0 0.0
    %3060 = vmatpush1.xpose.msra.mxu0 0.0
    %3061 = vmatprep.subr.mxu0 0.0
    %3062 = vmatpush1.xpose.msra.mxu0 0.0
    %3063 = vmatprep.subr.mxu0 0.0
    %3064 = vmatpush1.xpose.msra.mxu0 0.0
    %3065 = vmatprep.subr.mxu0 0.0
    %3066 = vmatpush1.xpose.msra.mxu0 0.0
    %3067 = vmatprep.subr.mxu0 0.0
    %3068 = vmatpush1.xpose.msra.mxu0 0.0
    %3069 = vmatprep.subr.mxu0 0.0
    %3070 = vmatpush1.xpose.msra.mxu0 0.0
    %3071 = vmatprep.subr.mxu0 0.0
    %3072 = vmatpush1.xpose.msra.mxu0 0.0
    %3073 = vmatprep.subr.mxu0 0.0
    %3074 = vmatpush1.xpose.msra.mxu0 0.0
    %3075 = vmatprep.subr.mxu0 0.0
    %3076 = vmatpush1.xpose.msra.mxu0 0.0
    %3077 = vmatprep.subr.mxu0 0.0
    %3078 = vmatpush1.xpose.msra.mxu0 0.0
    %3079 = vmatprep.subr.mxu0 0.0
    %3080 = vmatpush1.xpose.msra.mxu0 0.0
    %3081 = vmatprep.subr.mxu0 0.0
    %3082 = vmatpush1.xpose.msra.mxu0 0.0
    %3083 = vmatprep.subr.mxu0 0.0
    %3084 = vmatpush1.xpose.msra.mxu0 0.0
    %3085 = vmatprep.subr.mxu0 0.0
    %3086 = vmatpush1.xpose.msra.mxu0 0.0
    %3087 = vmatprep.subr.mxu0 0.0
    %3088 = vmatpush1.xpose.msra.mxu0 0.0
    %3089 = vmatprep.subr.mxu0 0.0
    %3090 = vmatpush1.xpose.msra.mxu0 0.0
    %3091 = vmatprep.subr.mxu0 0.0
    %3092 = vmatpush1.xpose.msra.mxu0 0.0
    %3093 = vmatprep.subr.mxu0 0.0
    %3094 = vmatpush1.xpose.msra.mxu0 0.0
    %3095 = vmatprep.subr.mxu0 0.0
    %3096 = vmatpush1.xpose.msra.mxu0 0.0
    %3097 = vmatprep.subr.mxu0 0.0
    %3098 = vmatpush1.xpose.msra.mxu0 0.0
    %3099 = vmatprep.subr.mxu0 0.0
    %3100 = vmatpush1.xpose.msra.mxu0 0.0
    %3101 = vmatprep.subr.mxu0 0.0
    %3102 = vmatpush1.xpose.msra.mxu0 0.0
    %3103 = vmatprep.subr.mxu0 0.0
    %3104 = vmatpush1.xpose.msra.mxu0 0.0
    %3105 = vmatprep.mubr.f32.mxu0 0.0
    %3106 = vmatmul.mubr.f32.gmra.mrb[0].mxu0 %v3037
    %v3107 = vpop.f32.mrb[0].mxu0
    %v3108 = vadd.f32 0.0, %v3107
    %v3109 = vpop.f32.mrb[0].mxu0
    %3110 = vdwg.mxu0
    %v3111 = vmul.f32 %v3030, 0.35355338
    %v3112 = vmul.f32 %v3108, 0.35355338
    %v3113 = vsel %vm155, %v3111, -inf
    %3114 = vmax.xlane.f32.xlu0 %v3113
    %v3115 = vpop.xlane.xlu0 %3114
    %v3116 = vsel %vm155, %v3112, -inf
    %3117 = vmax.xlane.f32.xlu0 %v3116
    %v3118 = vpop.xlane.xlu0 %3117
    %v3119 = vsub.f32 %v3111, %v3115
    %v3120 = vsub.f32 %v3112, %v3118
    %v3121 = vmul.f32 %v3119, 1.442695
    %v3122 = vpow.pop %v3121
    %v3123 = vmul.f32 %v3120, 1.442695
    %v3124 = vpow.pop %v3123
    %v3125 = vsel %vm155, %v3122, 0.0
    %3126 = vadd.xlane.f32.xlu0 %v3125
    %v3127 = vpop.xlane.xlu0 %3126
    %v3128 = vsel %vm155, %v3124, 0.0
    %3129 = vadd.xlane.f32.xlu0 %v3128
    %v3130 = vpop.xlane.xlu0 %3129
    %v3131 = vrcp.pop %v3127
    %v3132 = vmul.f32 %v3122, %v3131
    %v3133 = vrcp.pop %v3130
    %v3134 = vmul.f32 %v3124, %v3133
    %3135 = vrot.lane.b32.xlu0 %v1953, 40
    %v3136 = vpop.permute.xlu0 %3135
    %v3139 = vsel %vm155, %v3132, 0
    %3141 = vmatprep.subr.mxu0 0.0
    %3142 = vmatpush1.msra.mxu0 %v3136
    %3143 = vmatprep.subr.mxu0 0.0
    %3144 = vmatpush1.msra.mxu0 0.0
    %3145 = vmatprep.subr.mxu0 0.0
    %3146 = vmatpush1.msra.mxu0 0.0
    %3147 = vmatprep.subr.mxu0 0.0
    %3148 = vmatpush1.msra.mxu0 0.0
    %3149 = vmatprep.subr.mxu0 0.0
    %3150 = vmatpush1.msra.mxu0 0.0
    %3151 = vmatprep.subr.mxu0 0.0
    %3152 = vmatpush1.msra.mxu0 0.0
    %3153 = vmatprep.subr.mxu0 0.0
    %3154 = vmatpush1.msra.mxu0 0.0
    %3155 = vmatprep.subr.mxu0 0.0
    %3156 = vmatpush1.msra.mxu0 0.0
    %3157 = vmatprep.subr.mxu0 0.0
    %3158 = vmatpush1.msra.mxu0 0.0
    %3159 = vmatprep.subr.mxu0 0.0
    %3160 = vmatpush1.msra.mxu0 0.0
    %3161 = vmatprep.subr.mxu0 0.0
    %3162 = vmatpush1.msra.mxu0 0.0
    %3163 = vmatprep.subr.mxu0 0.0
    %3164 = vmatpush1.msra.mxu0 0.0
    %3165 = vmatprep.subr.mxu0 0.0
    %3166 = vmatpush1.msra.mxu0 0.0
    %3167 = vmatprep.subr.mxu0 0.0
    %3168 = vmatpush1.msra.mxu0 0.0
    %3169 = vmatprep.subr.mxu0 0.0
    %3170 = vmatpush1.msra.mxu0 0.0
    %3171 = vmatprep.subr.mxu0 0.0
    %3172 = vmatpush1.msra.mxu0 0.0
    %3173 = vmatprep.subr.mxu0 0.0
    %3174 = vmatpush1.msra.mxu0 0.0
    %3175 = vmatprep.subr.mxu0 0.0
    %3176 = vmatpush1.msra.mxu0 0.0
    %3177 = vmatprep.subr.mxu0 0.0
    %3178 = vmatpush1.msra.mxu0 0.0
    %3179 = vmatprep.subr.mxu0 0.0
    %3180 = vmatpush1.msra.mxu0 0.0
    %3181 = vmatprep.subr.mxu0 0.0
    %3182 = vmatpush1.msra.mxu0 0.0
    %3183 = vmatprep.subr.mxu0 0.0
    %3184 = vmatpush1.msra.mxu0 0.0
    %3185 = vmatprep.subr.mxu0 0.0
    %3186 = vmatpush1.msra.mxu0 0.0
    %3187 = vmatprep.subr.mxu0 0.0
    %3188 = vmatpush1.msra.mxu0 0.0
    %3189 = vmatprep.subr.mxu0 0.0
    %3190 = vmatpush1.msra.mxu0 0.0
    %3191 = vmatprep.subr.mxu0 0.0
    %3192 = vmatpush1.msra.mxu0 0.0
    %3193 = vmatprep.subr.mxu0 0.0
    %3194 = vmatpush1.msra.mxu0 0.0
    %3195 = vmatprep.subr.mxu0 0.0
    %3196 = vmatpush1.msra.mxu0 0.0
    %3197 = vmatprep.subr.mxu0 0.0
    %3198 = vmatpush1.msra.mxu0 0.0
    %3199 = vmatprep.subr.mxu0 0.0
    %3200 = vmatpush1.msra.mxu0 0.0
    %3201 = vmatprep.subr.mxu0 0.0
    %3202 = vmatpush1.msra.mxu0 0.0
    %3203 = vmatprep.subr.mxu0 0.0
    %3204 = vmatpush1.msra.mxu0 0.0
    %3205 = vmatprep.mubr.f32.mxu0 0.0
    %3206 = vmatmul.mubr.f32.gmra.mrb[0].mxu0 %v3139
    %v3207 = vpop.f32.mrb[0].mxu0
    %v3208 = vadd.f32 0.0, %v3207
    %v3209 = vpop.f32.mrb[0].mxu0
    %3210 = vdwg.mxu0
    %3211 = vrot.lane.b32.xlu0 %v1958, 40
    %v3212 = vpop.permute.xlu0 %3211
    %v3215 = vsel %vm155, %v3134, 0
    %3217 = vmatprep.subr.mxu0 0.0
    %3218 = vmatpush1.msra.mxu0 %v3212
    %3219 = vmatprep.subr.mxu0 0.0
    %3220 = vmatpush1.msra.mxu0 0.0
    %3221 = vmatprep.subr.mxu0 0.0
    %3222 = vmatpush1.msra.mxu0 0.0
    %3223 = vmatprep.subr.mxu0 0.0
    %3224 = vmatpush1.msra.mxu0 0.0
    %3225 = vmatprep.subr.mxu0 0.0
    %3226 = vmatpush1.msra.mxu0 0.0
    %3227 = vmatprep.subr.mxu0 0.0
    %3228 = vmatpush1.msra.mxu0 0.0
    %3229 = vmatprep.subr.mxu0 0.0
    %3230 = vmatpush1.msra.mxu0 0.0
    %3231 = vmatprep.subr.mxu0 0.0
    %3232 = vmatpush1.msra.mxu0 0.0
    %3233 = vmatprep.subr.mxu0 0.0
    %3234 = vmatpush1.msra.mxu0 0.0
    %3235 = vmatprep.subr.mxu0 0.0
    %3236 = vmatpush1.msra.mxu0 0.0
    %3237 = vmatprep.subr.mxu0 0.0
    %3238 = vmatpush1.msra.mxu0 0.0
    %3239 = vmatprep.subr.mxu0 0.0
    %3240 = vmatpush1.msra.mxu0 0.0
    %3241 = vmatprep.subr.mxu0 0.0
    %3242 = vmatpush1.msra.mxu0 0.0
    %3243 = vmatprep.subr.mxu0 0.0
    %3244 = vmatpush1.msra.mxu0 0.0
    %3245 = vmatprep.subr.mxu0 0.0
    %3246 = vmatpush1.msra.mxu0 0.0
    %3247 = vmatprep.subr.mxu0 0.0
    %3248 = vmatpush1.msra.mxu0 0.0
    %3249 = vmatprep.subr.mxu0 0.0
    %3250 = vmatpush1.msra.mxu0 0.0
    %3251 = vmatprep.subr.mxu0 0.0
    %3252 = vmatpush1.msra.mxu0 0.0
    %3253 = vmatprep.subr.mxu0 0.0
    %3254 = vmatpush1.msra.mxu0 0.0
    %3255 = vmatprep.subr.mxu0 0.0
    %3256 = vmatpush1.msra.mxu0 0.0
    %3257 = vmatprep.subr.mxu0 0.0
    %3258 = vmatpush1.msra.mxu0 0.0
    %3259 = vmatprep.subr.mxu0 0.0
    %3260 = vmatpush1.msra.mxu0 0.0
    %3261 = vmatprep.subr.mxu0 0.0
    %3262 = vmatpush1.msra.mxu0 0.0
    %3263 = vmatprep.subr.mxu0 0.0
    %3264 = vmatpush1.msra.mxu0 0.0
    %3265 = vmatprep.subr.mxu0 0.0
    %3266 = vmatpush1.msra.mxu0 0.0
    %3267 = vmatprep.subr.mxu0 0.0
    %3268 = vmatpush1.msra.mxu0 0.0
    %3269 = vmatprep.subr.mxu0 0.0
    %3270 = vmatpush1.msra.mxu0 0.0
    %3271 = vmatprep.subr.mxu0 0.0
    %3272 = vmatpush1.msra.mxu0 0.0
    %3273 = vmatprep.subr.mxu0 0.0
    %3274 = vmatpush1.msra.mxu0 0.0
    %3275 = vmatprep.subr.mxu0 0.0
    %3276 = vmatpush1.msra.mxu0 0.0
    %3277 = vmatprep.subr.mxu0 0.0
    %3278 = vmatpush1.msra.mxu0 0.0
    %3279 = vmatprep.subr.mxu0 0.0
    %3280 = vmatpush1.msra.mxu0 0.0
    %3281 = vmatprep.mubr.f32.mxu0 0.0
    %3282 = vmatmul.mubr.f32.gmra.mrb[0].mxu0 %v3215
    %v3283 = vpop.f32.mrb[0].mxu0
    %v3284 = vadd.f32 0.0, %v3283
    %v3285 = vpop.f32.mrb[0].mxu0
    %3286 = vdwg.mxu0
    %3289 = vrot.lane.b32.xlu0 %v2544, 8
    %v3290 = vpop.permute.xlu0 %3289
    %3291 = vrot.lane.b32.xlu0 %v2620, 8
    %v3292 = vpop.permute.xlu0 %3291
    %3297 = vrot.lane.b32.xlu0 %v2876, 16
    %v3298 = vpop.permute.xlu0 %3297
    %3299 = vrot.lane.b32.xlu0 %v2952, 16
    %v3300 = vpop.permute.xlu0 %3299
    %3305 = vrot.lane.b32.xlu0 %v3208, 24
    %v3306 = vpop.permute.xlu0 %3305
    %3307 = vrot.lane.b32.xlu0 %v3284, 24
    %v3308 = vpop.permute.xlu0 %3307
    %v3311 = vsel %vm155, %v2212, %v3290
    %v3312 = vsel %vm155, %v2288, %v3292
    %v3313 = vsel %vm1505, %v3311, %v3298
    %v3314 = vsel %vm1505, %v3312, %v3300
    %v3315 = vsel %vm1508, %v3313, %v3306
    %v3316 = vsel %vm1508, %v3314, %v3308
    %s3317 = scalar_lea.vmem %s2, 32
    %v3318 = vld [vmem:[%s3317] sm:$0xff]
    %v3319 = vld [vmem:[%s3317 + $0x8] sm:$0xff]
    %v3320 = vld [vmem:[%s3317 + $0x10] sm:$0xff]
    %v3321 = vld [vmem:[%s3317 + $0x18] sm:$0xff]
    %v3322 = vlaneseq
    %v3323 = vshrl.u32 %v3322, 7
    %v3324 = vsub.s32 2, %v3323
    %v3325 = vrot.slane %v1836, %v3324
    %v3327 = vsel %vm27, %v3315, 0
    %v3330 = vsel %vm27, %v3316, 0
    %3332 = vmatprep.subr.mxu0 0.0
    %3333 = vmatpush1.msra.mxu0 %v3318
    %3334 = vmatprep.subr.mxu0 0.0
    %3335 = vmatpush1.msra.mxu0 %v3319
    %3336 = vmatprep.subr.mxu0 0.0
    %3337 = vmatpush1.msra.mxu0 %v3320
    %3338 = vmatprep.subr.mxu0 0.0
    %3339 = vmatpush1.msra.mxu0 %v3321
    %3340 = vmatprep.subr.mxu0 0.0
    %3341 = vmatpush1.msra.mxu0 0.0
    %3342 = vmatprep.subr.mxu0 0.0
    %3343 = vmatpush1.msra.mxu0 0.0
    %3344 = vmatprep.subr.mxu0 0.0
    %3345 = vmatpush1.msra.mxu0 0.0
    %3346 = vmatprep.subr.mxu0 0.0
    %3347 = vmatpush1.msra.mxu0 0.0
    %3348 = vmatprep.subr.mxu0 0.0
    %3349 = vmatpush1.msra.mxu0 0.0
    %3350 = vmatprep.subr.mxu0 0.0
    %3351 = vmatpush1.msra.mxu0 0.0
    %3352 = vmatprep.subr.mxu0 0.0
    %3353 = vmatpush1.msra.mxu0 0.0
    %3354 = vmatprep.subr.mxu0 0.0
    %3355 = vmatpush1.msra.mxu0 0.0
    %3356 = vmatprep.subr.mxu0 0.0
    %3357 = vmatpush1.msra.mxu0 0.0
    %3358 = vmatprep.subr.mxu0 0.0
    %3359 = vmatpush1.msra.mxu0 0.0
    %3360 = vmatprep.subr.mxu0 0.0
    %3361 = vmatpush1.msra.mxu0 0.0
    %3362 = vmatprep.subr.mxu0 0.0
    %3363 = vmatpush1.msra.mxu0 0.0
    %3364 = vmatprep.subr.mxu0 0.0
    %3365 = vmatpush1.msra.mxu0 0.0
    %3366 = vmatprep.subr.mxu0 0.0
    %3367 = vmatpush1.msra.mxu0 0.0
    %3368 = vmatprep.subr.mxu0 0.0
    %3369 = vmatpush1.msra.mxu0 0.0
    %3370 = vmatprep.subr.mxu0 0.0
    %3371 = vmatpush1.msra.mxu0 0.0
    %3372 = vmatprep.subr.mxu0 0.0
    %3373 = vmatpush1.msra.mxu0 0.0
    %3374 = vmatprep.subr.mxu0 0.0
    %3375 = vmatpush1.msra.mxu0 0.0
    %3376 = vmatprep.subr.mxu0 0.0
    %3377 = vmatpush1.msra.mxu0 0.0
    %3378 = vmatprep.subr.mxu0 0.0
    %3379 = vmatpush1.msra.mxu0 0.0
    %3380 = vmatprep.subr.mxu0 0.0
    %3381 = vmatpush1.msra.mxu0 0.0
    %3382 = vmatprep.subr.mxu0 0.0
    %3383 = vmatpush1.msra.mxu0 0.0
    %3384 = vmatprep.subr.mxu0 0.0
    %3385 = vmatpush1.msra.mxu0 0.0
    %3386 = vmatprep.subr.mxu0 0.0
    %3387 = vmatpush1.msra.mxu0 0.0
    %3388 = vmatprep.subr.mxu0 0.0
    %3389 = vmatpush1.msra.mxu0 0.0
    %3390 = vmatprep.subr.mxu0 0.0
    %3391 = vmatpush1.msra.mxu0 0.0
    %3392 = vmatprep.subr.mxu0 0.0
    %3393 = vmatpush1.msra.mxu0 0.0
    %3394 = vmatprep.subr.mxu0 0.0
    %3395 = vmatpush1.msra.mxu0 0.0
    %3396 = vmatprep.mubr.f32.mxu0 0.0
    %3397 = vmatmul.mubr.f32.gmra.mrb[0].mxu0 %v3327
    %v3398 = vpop.f32.mrb[0].mxu0
    %v3399 = vadd.f32 %v3325, %v3398
    %v3400 = vpop.f32.mrb[0].mxu0
    %3401 = vmatprep.mubr.f32.mxu0 0.0
    %3402 = vmatmul.mubr.f32.gmra.mrb[0].mxu0 %v3330
    %v3403 = vpop.f32.mrb[0].mxu0
    %v3404 = vadd.f32 %v3325, %v3403
    %v3405 = vpop.f32.mrb[0].mxu0
    %3406 = vdwg.mxu0
    %v3407 = vadd.f32 %v3399, %v1833
    %v3408 = vadd.f32 %v3404, %v1834
    %v3409 = vsel %vm27, %v3407, 0.0
    %3410 = vadd.xlane.f32.xlu0 %v3409
    %v3411 = vpop.xlane.xlu0 %3410
    %v3412 = vsel %vm27, %v3408, 0.0
    %3413 = vadd.xlane.f32.xlu0 %v3412
    %v3414 = vpop.xlane.xlu0 %3413
    %v3415 = vmul.f32 %v3411, %v34
    %v3416 = vmul.f32 %v3414, %v34
    %v3417 = vsub.f32 %v3407, %v3415
    %v3418 = vsub.f32 %v3408, %v3416
    %v3419 = vmul.f32 %v3417, %v3417
    %v3420 = vmul.f32 %v3418, %v3418
    %v3421 = vsel %vm27, %v3419, 0.0
    %3422 = vadd.xlane.f32.xlu0 %v3421
    %v3423 = vpop.xlane.xlu0 %3422
    %v3424 = vsel %vm27, %v3420, 0.0
    %3425 = vadd.xlane.f32.xlu0 %v3424
    %v3426 = vpop.xlane.xlu0 %3425
    %v3427 = vmul.f32 %v3423, %v34
    %v3428 = vmul.f32 %v3426, %v34
    %v3429 = vadd.f32 %v3427, 1e-05
    %v3430 = vadd.f32 %v3428, 1e-05
    %v3431 = vrsqrt.pop %v3429
    %v3432 = vrsqrt.pop %v3430
    %v3433 = vmul.f32 %v3417, %v3431
    %v3434 = vmul.f32 %v3418, %v3432
    %v3435 = vlaneseq
    %v3436 = vshrl.u32 %v3435, 7
    %v3437 = vsub.s32 3, %v3436
    %v3438 = vrot.slane %v1836, %v3437
    %v3439 = vmul.f32 %v3433, %v3438
    %v3440 = vmul.f32 %v3434, %v3438
    %v3441 = vlaneseq
    %v3442 = vshrl.u32 %v3441, 7
    %v3443 = vsub.s32 4, %v3442
    %v3444 = vrot.slane %v1836, %v3443
    %v3445 = vadd.f32 %v3439, %v3444
    %v3446 = vadd.f32 %v3440, %v3444
    %s3447 = scalar_lea.vmem %s3, 32
    %v3448 = vld [vmem:[%s3447] sm:$0xff]
    %v3449 = vld [vmem:[%s3447 + $0x8] sm:$0xff]
    %v3450 = vld [vmem:[%s3447 + $0x10] sm:$0xff]
    %v3451 = vld [vmem:[%s3447 + $0x18] sm:$0xff]
    %v3452 = vlaneseq
    %v3453 = vshrl.u32 %v3452, 7
    %v3454 = vsub.s32 6, %v3453
    %v3455 = vrot.slane %v1836, %v3454
    %v3457 = vsel %vm27, %v3445, 0
    %v3460 = vsel %vm27, %v3446, 0
    %3462 = vmatprep.subr.mxu0 0.0
    %3463 = vmatpush1.msra.mxu0 %v3448
    %3464 = vmatprep.subr.mxu0 0.0
    %3465 = vmatpush1.msra.mxu0 %v3449
    %3466 = vmatprep.subr.mxu0 0.0
    %3467 = vmatpush1.msra.mxu0 %v3450
    %3468 = vmatprep.subr.mxu0 0.0
    %3469 = vmatpush1.msra.mxu0 %v3451
    %3470 = vmatprep.subr.mxu0 0.0
    %3471 = vmatpush1.msra.mxu0 0.0
    %3472 = vmatprep.subr.mxu0 0.0
    %3473 = vmatpush1.msra.mxu0 0.0
    %3474 = vmatprep.subr.mxu0 0.0
    %3475 = vmatpush1.msra.mxu0 0.0
    %3476 = vmatprep.subr.mxu0 0.0
    %3477 = vmatpush1.msra.mxu0 0.0
    %3478 = vmatprep.subr.mxu0 0.0
    %3479 = vmatpush1.msra.mxu0 0.0
    %3480 = vmatprep.subr.mxu0 0.0
    %3481 = vmatpush1.msra.mxu0 0.0
    %3482 = vmatprep.subr.mxu0 0.0
    %3483 = vmatpush1.msra.mxu0 0.0
    %3484 = vmatprep.subr.mxu0 0.0
    %3485 = vmatpush1.msra.mxu0 0.0
    %3486 = vmatprep.subr.mxu0 0.0
    %3487 = vmatpush1.msra.mxu0 0.0
    %3488 = vmatprep.subr.mxu0 0.0
    %3489 = vmatpush1.msra.mxu0 0.0
    %3490 = vmatprep.subr.mxu0 0.0
    %3491 = vmatpush1.msra.mxu0 0.0
    %3492 = vmatprep.subr.mxu0 0.0
    %3493 = vmatpush1.msra.mxu0 0.0
    %3494 = vmatprep.subr.mxu0 0.0
    %3495 = vmatpush1.msra.mxu0 0.0
    %3496 = vmatprep.subr.mxu0 0.0
    %3497 = vmatpush1.msra.mxu0 0.0
    %3498 = vmatprep.subr.mxu0 0.0
    %3499 = vmatpush1.msra.mxu0 0.0
    %3500 = vmatprep.subr.mxu0 0.0
    %3501 = vmatpush1.msra.mxu0 0.0
    %3502 = vmatprep.subr.mxu0 0.0
    %3503 = vmatpush1.msra.mxu0 0.0
    %3504 = vmatprep.subr.mxu0 0.0
    %3505 = vmatpush1.msra.mxu0 0.0
    %3506 = vmatprep.subr.mxu0 0.0
    %3507 = vmatpush1.msra.mxu0 0.0
    %3508 = vmatprep.subr.mxu0 0.0
    %3509 = vmatpush1.msra.mxu0 0.0
    %3510 = vmatprep.subr.mxu0 0.0
    %3511 = vmatpush1.msra.mxu0 0.0
    %3512 = vmatprep.subr.mxu0 0.0
    %3513 = vmatpush1.msra.mxu0 0.0
    %3514 = vmatprep.subr.mxu0 0.0
    %3515 = vmatpush1.msra.mxu0 0.0
    %3516 = vmatprep.subr.mxu0 0.0
    %3517 = vmatpush1.msra.mxu0 0.0
    %3518 = vmatprep.subr.mxu0 0.0
    %3519 = vmatpush1.msra.mxu0 0.0
    %3520 = vmatprep.subr.mxu0 0.0
    %3521 = vmatpush1.msra.mxu0 0.0
    %3522 = vmatprep.subr.mxu0 0.0
    %3523 = vmatpush1.msra.mxu0 0.0
    %3524 = vmatprep.subr.mxu0 0.0
    %3525 = vmatpush1.msra.mxu0 0.0
    %3526 = vmatprep.mubr.f32.mxu0 0.0
    %3527 = vmatmul.mubr.f32.gmra.mrb[0].mxu0 %v3457
    %v3528 = vpop.f32.mrb[0].mxu0
    %v3529 = vadd.f32 %v3455, %v3528
    %v3530 = vpop.f32.mrb[0].mxu0
    %3531 = vmatprep.mubr.f32.mxu0 0.0
    %3532 = vmatmul.mubr.f32.gmra.mrb[0].mxu0 %v3460
    %v3533 = vpop.f32.mrb[0].mxu0
    %v3534 = vadd.f32 %v3455, %v3533
    %v3535 = vpop.f32.mrb[0].mxu0
    %3536 = vdwg.mxu0
    %v3537 = vmul.f32 %v3529, 0.5
    %v3538 = vmul.f32 %v3534, 0.5
    %v3539 = vmul.f32 %v3529, 0.70710677
    %v3540 = vmul.f32 %v3534, 0.70710677
    %v3541 = verf.f32.pop %v3539
    %v3542 = verf.f32.pop %v3540
    %v3543 = vadd.f32 %v3541, 1.0
    %v3544 = vadd.f32 %v3542, 1.0
    %v3545 = vmul.f32 %v3537, %v3543
    %v3546 = vmul.f32 %v3538, %v3544
    %s3547 = scalar_lea.vmem %s4, 64
    %v3548 = vld [vmem:[%s3547] sm:$0xff]
    %v3549 = vld [vmem:[%s3547 + $0x8] sm:$0xff]
    %v3550 = vld [vmem:[%s3547 + $0x10] sm:$0xff]
    %v3551 = vld [vmem:[%s3547 + $0x18] sm:$0xff]
    %v3552 = vld [vmem:[%s3547 + $0x20] sm:$0xff]
    %v3553 = vld [vmem:[%s3547 + $0x28] sm:$0xff]
    %v3554 = vld [vmem:[%s3547 + $0x30] sm:$0xff]
    %v3555 = vld [vmem:[%s3547 + $0x38] sm:$0xff]
    %v3556 = vlaneseq
    %v3557 = vshrl.u32 %v3556, 7
    %v3558 = vsub.s32 5, %v3557
    %v3559 = vrot.slane %v1836, %v3558
    %v3561 = vsel %vm1751, %v3545, 0
    %v3564 = vsel %vm1751, %v3546, 0
    %3566 = vmatprep.subr.mxu0 0.0
    %3567 = vmatpush1.msra.mxu0 %v3548
    %3568 = vmatprep.subr.mxu0 0.0
    %3569 = vmatpush1.msra.mxu0 %v3549
    %3570 = vmatprep.subr.mxu0 0.0
    %3571 = vmatpush1.msra.mxu0 %v3550
    %3572 = vmatprep.subr.mxu0 0.0
    %3573 = vmatpush1.msra.mxu0 %v3551
    %3574 = vmatprep.subr.mxu0 0.0
    %3575 = vmatpush1.msra.mxu0 %v3552
    %3576 = vmatprep.subr.mxu0 0.0
    %3577 = vmatpush1.msra.mxu0 %v3553
    %3578 = vmatprep.subr.mxu0 0.0
    %3579 = vmatpush1.msra.mxu0 %v3554
    %3580 = vmatprep.subr.mxu0 0.0
    %3581 = vmatpush1.msra.mxu0 %v3555
    %3582 = vmatprep.subr.mxu0 0.0
    %3583 = vmatpush1.msra.mxu0 0.0
    %3584 = vmatprep.subr.mxu0 0.0
    %3585 = vmatpush1.msra.mxu0 0.0
    %3586 = vmatprep.subr.mxu0 0.0
    %3587 = vmatpush1.msra.mxu0 0.0
    %3588 = vmatprep.subr.mxu0 0.0
    %3589 = vmatpush1.msra.mxu0 0.0
    %3590 = vmatprep.subr.mxu0 0.0
    %3591 = vmatpush1.msra.mxu0 0.0
    %3592 = vmatprep.subr.mxu0 0.0
    %3593 = vmatpush1.msra.mxu0 0.0
    %3594 = vmatprep.subr.mxu0 0.0
    %3595 = vmatpush1.msra.mxu0 0.0
    %3596 = vmatprep.subr.mxu0 0.0
    %3597 = vmatpush1.msra.mxu0 0.0
    %3598 = vmatprep.subr.mxu0 0.0
    %3599 = vmatpush1.msra.mxu0 0.0
    %3600 = vmatprep.subr.mxu0 0.0
    %3601 = vmatpush1.msra.mxu0 0.0
    %3602 = vmatprep.subr.mxu0 0.0
    %3603 = vmatpush1.msra.mxu0 0.0
    %3604 = vmatprep.subr.mxu0 0.0
    %3605 = vmatpush1.msra.mxu0 0.0
    %3606 = vmatprep.subr.mxu0 0.0
    %3607 = vmatpush1.msra.mxu0 0.0
    %3608 = vmatprep.subr.mxu0 0.0
    %3609 = vmatpush1.msra.mxu0 0.0
    %3610 = vmatprep.subr.mxu0 0.0
    %3611 = vmatpush1.msra.mxu0 0.0
    %3612 = vmatprep.subr.mxu0 0.0
    %3613 = vmatpush1.msra.mxu0 0.0
    %3614 = vmatprep.subr.mxu0 0.0
    %3615 = vmatpush1.msra.mxu0 0.0
    %3616 = vmatprep.subr.mxu0 0.0
    %3617 = vmatpush1.msra.mxu0 0.0
    %3618 = vmatprep.subr.mxu0 0.0
    %3619 = vmatpush1.msra.mxu0 0.0
    %3620 = vmatprep.subr.mxu0 0.0
    %3621 = vmatpush1.msra.mxu0 0.0
    %3622 = vmatprep.subr.mxu0 0.0
    %3623 = vmatpush1.msra.mxu0 0.0
    %3624 = vmatprep.subr.mxu0 0.0
    %3625 = vmatpush1.msra.mxu0 0.0
    %3626 = vmatprep.subr.mxu0 0.0
    %3627 = vmatpush1.msra.mxu0 0.0
    %3628 = vmatprep.subr.mxu0 0.0
    %3629 = vmatpush1.msra.mxu0 0.0
    %3630 = vmatprep.mubr.f32.mxu0 0.0
    %3631 = vmatmul.mubr.f32.gmra.mrb[0].mxu0 %v3561
    %v3632 = vpop.f32.mrb[0].mxu0
    %v3633 = vadd.f32 %v3559, %v3632
    %v3634 = vpop.f32.mrb[0].mxu0
    %3635 = vmatprep.mubr.f32.mxu0 0.0
    %3636 = vmatmul.mubr.f32.gmra.mrb[0].mxu0 %v3564
    %v3637 = vpop.f32.mrb[0].mxu0
    %v3638 = vadd.f32 %v3559, %v3637
    %v3639 = vpop.f32.mrb[0].mxu0
    %3640 = vdwg.mxu0
    %v3641 = vadd.f32 %v3633, %v3407
    %v3642 = vadd.f32 %v3638, %v3408
    %3643 = vst.msk [vmem:[#allocation2] sm:$0xff] %vm27, %v3641
    %3644 = vst.msk [vmem:[#allocation2 + $0x8] sm:$0xff] %vm27, %v3642
    // Predicated region
    $region26: #{transformer_forward.1} parent=1 // pred_check
      _
    $region27: #{transformer_forward.1} parent=1 // pred_check_branch
      %3646 = sbr.rel (0) target = $region29
    $region28: #{transformer_forward.1} parent=1 // pred_region
      %s3648 = ssub.s32 256, 256
      %3649 = vsyncadd [#allocation3], %s3648
      %s3650 = sshll.u32 [#allocation2], 4
      %s3651 = int_to_ptr.vmem [resolvable:$true] %s3650
      %3656 = dma.vmem_to_hbm [thread:$0]  %s3651, 256, %s6, [#allocation3], 128, 128, 8
    $region29: #{transformer_forward.1} parent=1 // pred_fallthru
      _
    // Predicated region
    $region30: #{transformer_forward.1} parent=1 // pred_check
      _
    $region31: #{transformer_forward.1} parent=1 // pred_check_branch
      %3658 = sbr.rel (0) target = $region33
    $region32: #{transformer_forward.1} parent=1 // pred_region
      %3659 = dma.done [#allocation3], 256
    $region33: #{transformer_forward.1} parent=1 // pred_fallthru
      _
    %3660 = vsyncpa [#allocation3], 1

</llo_original>
